<compile_context>
chip_gen: v5e
topology: v5e:2x2
jax: 0.10.0
libtpu: 0.0.40
codegen_flags: <defaults>
</compile_context>

<pallas_src>
import functools

import jax
import jax.numpy as jnp
from jax import lax
from jax.experimental import pallas as pl
from jax.experimental.pallas import tpu as pltpu

EPS = 1e-5
TILE_M = 512          # rows per grid step (fits comfortably in VMEM on v5e/v6e/v7x)
LANE = 128
VMEM_LIMIT = 32 * 1024 * 1024


# ----------------------------- Pallas kernels ------------------------------

def conv_stats_kernel(p_ref, w_ref, y_ref, sum_ref, ssq_ref):
    """Tiled conv-as-matmul; also accumulates per-channel sum / sum-of-squares."""
    y = jnp.dot(p_ref[...], w_ref[...], preferred_element_type=jnp.float32)
    y_ref[...] = y

    @pl.when(pl.program_id(0) == 0)
    def _init():
        sum_ref[...] = jnp.zeros_like(sum_ref)
        ssq_ref[...] = jnp.zeros_like(ssq_ref)

    sum_ref[...] += jnp.sum(y, axis=0, keepdims=True)
    ssq_ref[...] += jnp.sum(y * y, axis=0, keepdims=True)


def bn_relu_kernel(y_ref, sum_ref, ssq_ref, gamma_ref, beta_ref, out_ref, *, inv_m):
    """Normalize with the batch stats gathered by conv_stats_kernel, then ReLU."""
    y = y_ref[...]
    mean = sum_ref[...] * inv_m
    var = ssq_ref[...] * inv_m - mean * mean
    scale = gamma_ref[...] * lax.rsqrt(var + EPS)
    out = jnp.maximum((y - mean) * scale + beta_ref[...], 0.0)
    out_ref[...] = out.astype(out_ref.dtype)


def bn_res_relu_kernel(y_ref, sum_ref, ssq_ref, gamma_ref, beta_ref,
                       xres_ref, wres_ref, bres_ref, out_ref, *, inv_m):
    """Normalize (conv2 stats) + 1x1x1 residual projection + add + ReLU."""
    y = y_ref[...]
    mean = sum_ref[...] * inv_m
    var = ssq_ref[...] * inv_m - mean * mean
    scale = gamma_ref[...] * lax.rsqrt(var + EPS)
    z = (y - mean) * scale + beta_ref[...]
    res = jnp.dot(xres_ref[...], wres_ref[...], preferred_element_type=jnp.float32)
    res = res + bres_ref[...]
    out_ref[...] = jnp.maximum(z + res, 0.0).astype(out_ref.dtype)


# ------------------------------- JAX glue -----------------------------------

def _round_up(x, m):
    return (x + m - 1) // m * m


def _pad_axis(a, axis, size):
    pad = size - a.shape[axis]
    if pad <= 0:
        return a
    widths = [(0, 0)] * a.ndim
    widths[axis] = (0, pad)
    return jnp.pad(a, widths)


def im2col_3x3x3(x):
    """(N, D, H, W, C) -> (N*D*H*W, 27*C), tap-major / channel-minor ordering."""
    n, d, h, w, c = x.shape
    xp = jnp.pad(x, ((0, 0), (1, 1), (1, 1), (1, 1), (0, 0)))
    cols = []
    for kd in range(3):
        for kh in range(3):
            for kw in range(3):
                cols.append(xp[:, kd:kd + d, kh:kh + h, kw:kw + w, :])
    return jnp.concatenate(cols, axis=-1).reshape(n * d * h * w, 27 * c)


def _conv_bn_stats(patches, weight, *, tile_m):
    """Tiled (M,K)@(K,C) matmul; returns pre-BN activations + per-channel sum/sumsq."""
    m_pad, k_pad = patches.shape
    c_pad = weight.shape[1]
    grid_m = m_pad // tile_m
    return pl.pallas_call(
        conv_stats_kernel,
        grid=(grid_m,),
        in_specs=[
            pl.BlockSpec((tile_m, k_pad), lambda i: (i, 0)),
            pl.BlockSpec((k_pad, c_pad), lambda i: (0, 0)),     # weights resident
        ],
        out_specs=(
            pl.BlockSpec((tile_m, c_pad), lambda i: (i, 0)),
            pl.BlockSpec((1, c_pad), lambda i: (0, 0)),         # grid-resident accumulators
            pl.BlockSpec((1, c_pad), lambda i: (0, 0)),
        ),
        out_shape=(
            jax.ShapeDtypeStruct((m_pad, c_pad), jnp.float32),
            jax.ShapeDtypeStruct((1, c_pad), jnp.float32),
            jax.ShapeDtypeStruct((1, c_pad), jnp.float32),
        ),
        compiler_params=pltpu.CompilerParams(
            dimension_semantics=("arbitrary",),   # stats accumulate sequentially over M tiles
            vmem_limit_bytes=VMEM_LIMIT),
    )(patches, weight)


def _bn_relu(y, s, ss, gamma, beta, m_real, out_dtype, *, tile_m):
    m_pad, c_pad = y.shape
    grid_m = m_pad // tile_m
    vec = pl.BlockSpec((1, c_pad), lambda i: (0, 0))
    return pl.pallas_call(
        functools.partial(bn_relu_kernel, inv_m=1.0 / m_real),
        grid=(grid_m,),
        in_specs=[pl.BlockSpec((tile_m, c_pad), lambda i: (i, 0)), vec, vec, vec, vec],
        out_specs=pl.BlockSpec((tile_m, c_pad), lambda i: (i, 0)),
        out_shape=jax.ShapeDtypeStruct((m_pad, c_pad), out_dtype),
        compiler_params=pltpu.CompilerParams(
            dimension_semantics=("parallel",),
            vmem_limit_bytes=VMEM_LIMIT),
    )(y, s, ss, gamma, beta)


def _bn_res_relu(y, s, ss, gamma, beta, xres, wres, bres, m_real, *, tile_m):
    m_pad, c_pad = y.shape
    cres_pad = xres.shape[1]
    grid_m = m_pad // tile_m
    vec = pl.BlockSpec((1, c_pad), lambda i: (0, 0))
    return pl.pallas_call(
        functools.partial(bn_res_relu_kernel, inv_m=1.0 / m_real),
        grid=(grid_m,),
        in_specs=[
            pl.BlockSpec((tile_m, c_pad), lambda i: (i, 0)),
            vec, vec, vec, vec,
            pl.BlockSpec((tile_m, cres_pad), lambda i: (i, 0)),
            pl.BlockSpec((cres_pad, c_pad), lambda i: (0, 0)),  # res weights resident
            vec,
        ],
        out_specs=pl.BlockSpec((tile_m, c_pad), lambda i: (i, 0)),
        out_shape=jax.ShapeDtypeStruct((m_pad, c_pad), jnp.float32),
        compiler_params=pltpu.CompilerParams(
            dimension_semantics=("parallel",),
            vmem_limit_bytes=VMEM_LIMIT),
    )(y, s, ss, gamma, beta, xres, wres, bres)


def resblock_forward(x_ncdhw, params, tile_m=TILE_M):
    n, cin, d, h, w = x_ncdhw.shape
    cout = params["w1"].shape[-1]
    x = jnp.transpose(x_ncdhw, (0, 2, 3, 4, 1)).astype(jnp.float32)  # NDHWC
    m = n * d * h * w

    tile_m = min(tile_m, _round_up(m, 8))
    m_pad = _round_up(m, tile_m)
    c_pad = _round_up(cout, LANE)

    def pad_rows(a):
        return _pad_axis(a, 0, m_pad)

    def pad_vec(v):
        return _pad_axis(v.reshape(1, -1).astype(jnp.float32), 1, c_pad)

    # --- conv1 (+ batch stats) -----------------------------------------------
    k1 = 27 * cin
    k1_pad = _round_up(k1, LANE)
    patches1 = _pad_axis(pad_rows(im2col_3x3x3(x.astype(jnp.bfloat16))), 1, k1_pad)
    w1 = _pad_axis(_pad_axis(params["w1"].reshape(k1, cout), 0, k1_pad), 1, c_pad)
    y1_raw, s1, ss1 = _conv_bn_stats(patches1, w1.astype(jnp.bfloat16), tile_m=tile_m)

    # --- bn1 + relu (bf16 output feeds conv2) ---------------------------------
    y1 = _bn_relu(y1_raw, s1, ss1, pad_vec(params["gamma1"]), pad_vec(params["beta1"]),
                  m, jnp.bfloat16, tile_m=tile_m)
    y1 = y1[:m, :cout].reshape(n, d, h, w, cout)

    # --- conv2 (+ batch stats) -----------------------------------------------
    k2 = 27 * cout
    k2_pad = _round_up(k2, LANE)
    patches2 = _pad_axis(pad_rows(im2col_3x3x3(y1)), 1, k2_pad)
    w2 = _pad_axis(_pad_axis(params["w2"].reshape(k2, cout), 0, k2_pad), 1, c_pad)
    y2_raw, s2, ss2 = _conv_bn_stats(patches2, w2.astype(jnp.bfloat16), tile_m=tile_m)

    # --- bn2 + residual + relu -----------------------------------------------
    if cin != cout:
        wres, bres = params["wres"], params["bres"]
    else:
        wres = jnp.eye(cin, dtype=jnp.float32)          # identity residual as 1x1 matmul
        bres = jnp.zeros((1, cout), jnp.float32)
    cres_pad = _round_up(cin, LANE)
    xres = _pad_axis(pad_rows(x.reshape(m, cin).astype(jnp.bfloat16)), 1, cres_pad)
    wres = _pad_axis(_pad_axis(wres, 0, cres_pad), 1, c_pad).astype(jnp.bfloat16)

    out = _bn_res_relu(y2_raw, s2, ss2, pad_vec(params["gamma2"]), pad_vec(params["beta2"]),
                       xres, wres, pad_vec(bres), m, tile_m=tile_m)

    out = out[:m, :cout].reshape(n, d, h, w, cout)
    return jnp.transpose(out, (0, 4, 1, 2, 3))  # NCDHW


# ------------------------- params & pure-JAX reference ----------------------

def init_params(key, cin, cout):
    ks = jax.random.split(key, 10)

    def u(k, shape, fan_in):
        bound = 1.0 / jnp.sqrt(jnp.float32(fan_in))
        return jax.random.uniform(k, shape, jnp.float32, -bound, bound)

    return {
        # conv weights stored DHWIO (3,3,3,Cin,Cout) — reshape gives the im2col matrix
        "w1": u(ks[0], (3, 3, 3, cin, cout), 27 * cin),
        "b1": u(ks[1], (1, cout), 27 * cin),
        "w2": u(ks[2], (3, 3, 3, cout, cout), 27 * cout),
        "b2": u(ks[3], (1, cout), 27 * cout),
        "wres": u(ks[4], (cin, cout), cin),
        "bres": u(ks[5], (1, cout), cin),
        "gamma1": 1.0 + 0.1 * jax.random.normal(ks[6], (1, cout), jnp.float32),
        "beta1": 0.1 * jax.random.normal(ks[7], (1, cout), jnp.float32),
        "gamma2": 1.0 + 0.1 * jax.random.normal(ks[8], (1, cout), jnp.float32),
        "beta2": 0.1 * jax.random.normal(ks[9], (1, cout), jnp.float32),
    }


def reference(x_ncdhw, p):
    x = jnp.transpose(x_ncdhw, (0, 2, 3, 4, 1)).astype(jnp.float32)

    def conv(xx, w, b):
        return lax.conv_general_dilated(
            xx, w, (1, 1, 1), ((1, 1), (1, 1), (1, 1)),
            dimension_numbers=("NDHWC", "DHWIO", "NDHWC"),
            precision=lax.Precision.HIGHEST) + b

    def bn(y, g, bta):
        mean = jnp.mean(y, axis=(0, 1, 2, 3), keepdims=True)
        var = jnp.mean((y - mean) ** 2, axis=(0, 1, 2, 3), keepdims=True)
        return (y - mean) * lax.rsqrt(var + EPS) * g + bta

    y = jnp.maximum(bn(conv(x, p["w1"], p["b1"]), p["gamma1"], p["beta1"]), 0.0)
    z = bn(conv(y, p["w2"], p["b2"]), p["gamma2"], p["beta2"])
    cin, cout = x.shape[-1], p["w1"].shape[-1]
    if cin != cout:
        res = jnp.einsum("ndhwc,co->ndhwo", x, p["wres"],
                         precision=lax.Precision.HIGHEST) + p["bres"]
    else:
        res = x
    out = jnp.maximum(z + res, 0.0)
    return jnp.transpose(out, (0, 4, 1, 2, 3))


# ---------------------------------- main -------------------------------------

if __name__ == "__main__":
    key = jax.random.PRNGKey(0)
    kx, kp = jax.random.split(key)

    N, Cin, Cout, D, H, W = 2, 4, 8, 8, 8, 8
    x = jax.random.normal(kx, (N, Cin, D, H, W), jnp.float32)
    params = init_params(kp, Cin, Cout)

    out = jax.block_until_ready(jax.jit(resblock_forward)(x, params))
    ref = jax.block_until_ready(reference(x, params))

    assert out.shape == (N, Cout, D, H, W), out.shape
    err = float(jnp.max(jnp.abs(out - ref)))
    # bf16 MXU operands (f32 accumulation) vs f32 HIGHEST-precision reference.
    if err > 1e-1:
        raise AssertionError(f"mismatch vs reference: max abs err = {err}")
    print("KERNEL_OK")
</pallas_src>

<mosaic_0001>
module attributes {stable_mosaic.version = 11 : i64} {
  func.func @bn_relu_kernel(%arg0: i32, %arg1: memref<512x128xf32, #tpu.memory_space<vmem>>, %arg2: memref<1x128xf32, #tpu.memory_space<vmem>>, %arg3: memref<1x128xf32, #tpu.memory_space<vmem>>, %arg4: memref<1x128xf32, #tpu.memory_space<vmem>>, %arg5: memref<1x128xf32, #tpu.memory_space<vmem>>, %arg6: memref<512x128xbf16, #tpu.memory_space<vmem>>) attributes {dimension_semantics = [#tpu.dimension_semantics<parallel>], iteration_bounds = array<i64: 2>, scalar_prefetch = 0 : i64, scratch_operands = 0 : i64, tpu.core_type = #tpu.core_type<tc>, window_params = [{transform_indices = @transform_0, window_bounds = array<i64: 512, 128>}, {pipeline_mode = #tpu.pipeline_mode<synchronous>, transform_indices = @transform_1, window_bounds = array<i64: 1, 128>}, {pipeline_mode = #tpu.pipeline_mode<synchronous>, transform_indices = @transform_2, window_bounds = array<i64: 1, 128>}, {pipeline_mode = #tpu.pipeline_mode<synchronous>, transform_indices = @transform_3, window_bounds = array<i64: 1, 128>}, {pipeline_mode = #tpu.pipeline_mode<synchronous>, transform_indices = @transform_4, window_bounds = array<i64: 1, 128>}, {transform_indices = @transform_5, window_bounds = array<i64: 512, 128>}]} {
    %c0 = arith.constant 0 : index
    %c0_0 = arith.constant 0 : index
    %0 = vector.load %arg1[%c0, %c0_0] : memref<512x128xf32, #tpu.memory_space<vmem>>, vector<512x128xf32>
    %c0_1 = arith.constant 0 : index
    %c0_2 = arith.constant 0 : index
    %1 = vector.load %arg2[%c0_1, %c0_2] : memref<1x128xf32, #tpu.memory_space<vmem>>, vector<1x128xf32>
    %cst = arith.constant 9.765625E-4 : f32
    %2 = vector.broadcast %cst : f32 to vector<1x128xf32>
    %3 = arith.mulf %1, %2 : vector<1x128xf32>
    %c0_3 = arith.constant 0 : index
    %c0_4 = arith.constant 0 : index
    %4 = vector.load %arg3[%c0_3, %c0_4] : memref<1x128xf32, #tpu.memory_space<vmem>>, vector<1x128xf32>
    %cst_5 = arith.constant 9.765625E-4 : f32
    %5 = vector.broadcast %cst_5 : f32 to vector<1x128xf32>
    %6 = arith.mulf %4, %5 : vector<1x128xf32>
    %7 = arith.mulf %3, %3 : vector<1x128xf32>
    %8 = arith.subf %6, %7 : vector<1x128xf32>
    %c0_6 = arith.constant 0 : index
    %c0_7 = arith.constant 0 : index
    %9 = vector.load %arg4[%c0_6, %c0_7] : memref<1x128xf32, #tpu.memory_space<vmem>>, vector<1x128xf32>
    %cst_8 = arith.constant 9.99999974E-6 : f32
    %10 = vector.broadcast %cst_8 : f32 to vector<1x128xf32>
    %11 = arith.addf %8, %10 : vector<1x128xf32>
    %12 = math.rsqrt %11 : vector<1x128xf32>
    %13 = arith.mulf %9, %12 : vector<1x128xf32>
    %14 = vector.broadcast %3 : vector<1x128xf32> to vector<512x128xf32>
    %15 = arith.subf %0, %14 : vector<512x128xf32>
    %16 = vector.broadcast %13 : vector<1x128xf32> to vector<512x128xf32>
    %17 = arith.mulf %15, %16 : vector<512x128xf32>
    %c0_9 = arith.constant 0 : index
    %c0_10 = arith.constant 0 : index
    %18 = vector.load %arg5[%c0_9, %c0_10] : memref<1x128xf32, #tpu.memory_space<vmem>>, vector<1x128xf32>
    %19 = vector.broadcast %18 : vector<1x128xf32> to vector<512x128xf32>
    %20 = arith.addf %17, %19 : vector<512x128xf32>
    %cst_11 = arith.constant 0.000000e+00 : f32
    %21 = vector.broadcast %cst_11 : f32 to vector<512x128xf32>
    %22 = arith.maximumf %20, %21 : vector<512x128xf32>
    %23 = arith.truncf %22 : vector<512x128xf32> to vector<512x128xbf16>
    %c0_12 = arith.constant 0 : index
    %c0_13 = arith.constant 0 : index
    %24 = vector.load %arg6[%c0_12, %c0_13] : memref<512x128xbf16, #tpu.memory_space<vmem>>, vector<512x128xbf16>
    tpu.vector_store %arg6[%c0_12, %c0_13], %23 {strides = array<i32>} : memref<512x128xbf16, #tpu.memory_space<vmem>>, vector<512x128xbf16>,
    return
  }
  func.func @transform_0(%arg0: i32) -> (i32, i32) {
    %c0_i32 = arith.constant 0 : i32
    %c0_i32_0 = arith.constant 0 : i32
    return %arg0, %c0_i32 : i32, i32
  }
  func.func @transform_1(%arg0: i32) -> (i32, i32) {
    %c0_i32 = arith.constant 0 : i32
    %c0_i32_0 = arith.constant 0 : i32
    %c0_i32_1 = arith.constant 0 : i32
    return %c0_i32, %c0_i32_0 : i32, i32
  }
  func.func @transform_2(%arg0: i32) -> (i32, i32) {
    %c0_i32 = arith.constant 0 : i32
    %c0_i32_0 = arith.constant 0 : i32
    %c0_i32_1 = arith.constant 0 : i32
    return %c0_i32, %c0_i32_0 : i32, i32
  }
  func.func @transform_3(%arg0: i32) -> (i32, i32) {
    %c0_i32 = arith.constant 0 : i32
    %c0_i32_0 = arith.constant 0 : i32
    %c0_i32_1 = arith.constant 0 : i32
    return %c0_i32, %c0_i32_0 : i32, i32
  }
  func.func @transform_4(%arg0: i32) -> (i32, i32) {
    %c0_i32 = arith.constant 0 : i32
    %c0_i32_0 = arith.constant 0 : i32
    %c0_i32_1 = arith.constant 0 : i32
    return %c0_i32, %c0_i32_0 : i32, i32
  }
  func.func @transform_5(%arg0: i32) -> (i32, i32) {
    %c0_i32 = arith.constant 0 : i32
    %c0_i32_0 = arith.constant 0 : i32
    return %arg0, %c0_i32 : i32, i32
  }
}

module attributes {stable_mosaic.version = 11 : i64} {
  func.func @conv_stats_kernel(%arg0: i32, %arg1: memref<512x128xbf16, #tpu.memory_space<vmem>>, %arg2: memref<128x128xbf16, #tpu.memory_space<vmem>>, %arg3: memref<512x128xf32, #tpu.memory_space<vmem>>, %arg4: memref<1x128xf32, #tpu.memory_space<vmem>>, %arg5: memref<1x128xf32, #tpu.memory_space<vmem>>) attributes {dimension_semantics = [#tpu.dimension_semantics<arbitrary>], iteration_bounds = array<i64: 2>, scalar_prefetch = 0 : i64, scratch_operands = 0 : i64, tpu.core_type = #tpu.core_type<tc>, window_params = [{transform_indices = @transform_0, window_bounds = array<i64: 512, 128>}, {pipeline_mode = #tpu.pipeline_mode<synchronous>, transform_indices = @transform_1, window_bounds = array<i64: 128, 128>}, {transform_indices = @transform_2, window_bounds = array<i64: 512, 128>}, {pipeline_mode = #tpu.pipeline_mode<synchronous>, transform_indices = @transform_3, window_bounds = array<i64: 1, 128>}, {pipeline_mode = #tpu.pipeline_mode<synchronous>, transform_indices = @transform_4, window_bounds = array<i64: 1, 128>}]} {
    %c0 = arith.constant 0 : index
    %c0_0 = arith.constant 0 : index
    %0 = vector.load %arg1[%c0, %c0_0] : memref<512x128xbf16, #tpu.memory_space<vmem>>, vector<512x128xbf16>
    %c0_1 = arith.constant 0 : index
    %c0_2 = arith.constant 0 : index
    %1 = vector.load %arg2[%c0_1, %c0_2] : memref<128x128xbf16, #tpu.memory_space<vmem>>, vector<128x128xbf16>
    %cst = arith.constant dense<0.000000e+00> : vector<512x128xf32>
    %2 = tpu.matmul %0, %1, %cst {dimension_numbers = #tpu.dot_dimension_numbers<[1], [0], [0], [1], [0, 0, 1, 1], [], []>} : vector<512x128xbf16>, vector<128x128xbf16>, vector<512x128xf32> -> vector<512x128xf32>
    %c0_3 = arith.constant 0 : index
    %c0_4 = arith.constant 0 : index
    %3 = vector.load %arg3[%c0_3, %c0_4] : memref<512x128xf32, #tpu.memory_space<vmem>>, vector<512x128xf32>
    tpu.vector_store %arg3[%c0_3, %c0_4], %2 {strides = array<i32>} : memref<512x128xf32, #tpu.memory_space<vmem>>, vector<512x128xf32>,
    %c0_i32 = arith.constant 0 : i32
    %4 = arith.cmpi eq, %arg0, %c0_i32 : i32
    %5 = arith.extui %4 : i1 to i32
    %c0_i32_5 = arith.constant 0 : i32
    %6 = arith.cmpi ne, %5, %c0_i32_5 : i32
    scf.if %6 {
      %cst_16 = arith.constant 0.000000e+00 : f32
      %18 = vector.broadcast %cst_16 : f32 to vector<1x128xf32>
      %c0_17 = arith.constant 0 : index
      %c0_18 = arith.constant 0 : index
      %19 = vector.load %arg4[%c0_17, %c0_18] : memref<1x128xf32, #tpu.memory_space<vmem>>, vector<1x128xf32>
      tpu.vector_store %arg4[%c0_17, %c0_18], %18 {strides = array<i32>} : memref<1x128xf32, #tpu.memory_space<vmem>>, vector<1x128xf32>,
      %cst_19 = arith.constant 0.000000e+00 : f32
      %20 = vector.broadcast %cst_19 : f32 to vector<1x128xf32>
      %c0_20 = arith.constant 0 : index
      %c0_21 = arith.constant 0 : index
      %21 = vector.load %arg5[%c0_20, %c0_21] : memref<1x128xf32, #tpu.memory_space<vmem>>, vector<1x128xf32>
      tpu.vector_store %arg5[%c0_20, %c0_21], %20 {strides = array<i32>} : memref<1x128xf32, #tpu.memory_space<vmem>>, vector<1x128xf32>,
    } else {
    }
    %c0_6 = arith.constant 0 : index
    %c0_7 = arith.constant 0 : index
    %7 = vector.load %arg4[%c0_6, %c0_7] : memref<1x128xf32, #tpu.memory_space<vmem>>, vector<1x128xf32>
    %cst_8 = arith.constant dense<0.000000e+00> : vector<128xf32>
    %8 = vector.multi_reduction <add>, %2, %cst_8 [0] : vector<512x128xf32> to vector<128xf32>
    %9 = vector.shape_cast %8 : vector<128xf32> to vector<1x128xf32>
    %10 = arith.addf %7, %9 : vector<1x128xf32>
    %c0_9 = arith.constant 0 : index
    %c0_10 = arith.constant 0 : index
    %11 = vector.load %arg4[%c0_9, %c0_10] : memref<1x128xf32, #tpu.memory_space<vmem>>, vector<1x128xf32>
    tpu.vector_store %arg4[%c0_9, %c0_10], %10 {strides = array<i32>} : memref<1x128xf32, #tpu.memory_space<vmem>>, vector<1x128xf32>,
    %c0_11 = arith.constant 0 : index
    %c0_12 = arith.constant 0 : index
    %12 = vector.load %arg5[%c0_11, %c0_12] : memref<1x128xf32, #tpu.memory_space<vmem>>, vector<1x128xf32>
    %13 = arith.mulf %2, %2 : vector<512x128xf32>
    %cst_13 = arith.constant dense<0.000000e+00> : vector<128xf32>
    %14 = vector.multi_reduction <add>, %13, %cst_13 [0] : vector<512x128xf32> to vector<128xf32>
    %15 = vector.shape_cast %14 : vector<128xf32> to vector<1x128xf32>
    %16 = arith.addf %12, %15 : vector<1x128xf32>
    %c0_14 = arith.constant 0 : index
    %c0_15 = arith.constant 0 : index
    %17 = vector.load %arg5[%c0_14, %c0_15] : memref<1x128xf32, #tpu.memory_space<vmem>>, vector<1x128xf32>
    tpu.vector_store %arg5[%c0_14, %c0_15], %16 {strides = array<i32>} : memref<1x128xf32, #tpu.memory_space<vmem>>, vector<1x128xf32>,
    return
  }
  func.func @transform_0(%arg0: i32) -> (i32, i32) {
    %c0_i32 = arith.constant 0 : i32
    %c0_i32_0 = arith.constant 0 : i32
    return %arg0, %c0_i32 : i32, i32
  }
  func.func @transform_1(%arg0: i32) -> (i32, i32) {
    %c0_i32 = arith.constant 0 : i32
    %c0_i32_0 = arith.constant 0 : i32
    %c0_i32_1 = arith.constant 0 : i32
    return %c0_i32, %c0_i32_0 : i32, i32
  }
  func.func @transform_2(%arg0: i32) -> (i32, i32) {
    %c0_i32 = arith.constant 0 : i32
    %c0_i32_0 = arith.constant 0 : i32
    return %arg0, %c0_i32 : i32, i32
  }
  func.func @transform_3(%arg0: i32) -> (i32, i32) {
    %c0_i32 = arith.constant 0 : i32
    %c0_i32_0 = arith.constant 0 : i32
    %c0_i32_1 = arith.constant 0 : i32
    return %c0_i32, %c0_i32_0 : i32, i32
  }
  func.func @transform_4(%arg0: i32) -> (i32, i32) {
    %c0_i32 = arith.constant 0 : i32
    %c0_i32_0 = arith.constant 0 : i32
    %c0_i32_1 = arith.constant 0 : i32
    return %c0_i32, %c0_i32_0 : i32, i32
  }
}

module attributes {stable_mosaic.version = 11 : i64} {
  func.func @conv_stats_kernel(%arg0: i32, %arg1: memref<512x256xbf16, #tpu.memory_space<vmem>>, %arg2: memref<256x128xbf16, #tpu.memory_space<vmem>>, %arg3: memref<512x128xf32, #tpu.memory_space<vmem>>, %arg4: memref<1x128xf32, #tpu.memory_space<vmem>>, %arg5: memref<1x128xf32, #tpu.memory_space<vmem>>) attributes {dimension_semantics = [#tpu.dimension_semantics<arbitrary>], iteration_bounds = array<i64: 2>, scalar_prefetch = 0 : i64, scratch_operands = 0 : i64, tpu.core_type = #tpu.core_type<tc>, window_params = [{transform_indices = @transform_0, window_bounds = array<i64: 512, 256>}, {pipeline_mode = #tpu.pipeline_mode<synchronous>, transform_indices = @transform_1, window_bounds = array<i64: 256, 128>}, {transform_indices = @transform_2, window_bounds = array<i64: 512, 128>}, {pipeline_mode = #tpu.pipeline_mode<synchronous>, transform_indices = @transform_3, window_bounds = array<i64: 1, 128>}, {pipeline_mode = #tpu.pipeline_mode<synchronous>, transform_indices = @transform_4, window_bounds = array<i64: 1, 128>}]} {
    %c0 = arith.constant 0 : index
    %c0_0 = arith.constant 0 : index
    %0 = vector.load %arg1[%c0, %c0_0] : memref<512x256xbf16, #tpu.memory_space<vmem>>, vector<512x256xbf16>
    %c0_1 = arith.constant 0 : index
    %c0_2 = arith.constant 0 : index
    %1 = vector.load %arg2[%c0_1, %c0_2] : memref<256x128xbf16, #tpu.memory_space<vmem>>, vector<256x128xbf16>
    %cst = arith.constant dense<0.000000e+00> : vector<512x128xf32>
    %2 = tpu.matmul %0, %1, %cst {dimension_numbers = #tpu.dot_dimension_numbers<[1], [0], [0], [1], [0, 0, 1, 1], [], []>} : vector<512x256xbf16>, vector<256x128xbf16>, vector<512x128xf32> -> vector<512x128xf32>
    %c0_3 = arith.constant 0 : index
    %c0_4 = arith.constant 0 : index
    %3 = vector.load %arg3[%c0_3, %c0_4] : memref<512x128xf32, #tpu.memory_space<vmem>>, vector<512x128xf32>
    tpu.vector_store %arg3[%c0_3, %c0_4], %2 {strides = array<i32>} : memref<512x128xf32, #tpu.memory_space<vmem>>, vector<512x128xf32>,
    %c0_i32 = arith.constant 0 : i32
    %4 = arith.cmpi eq, %arg0, %c0_i32 : i32
    %5 = arith.extui %4 : i1 to i32
    %c0_i32_5 = arith.constant 0 : i32
    %6 = arith.cmpi ne, %5, %c0_i32_5 : i32
    scf.if %6 {
      %cst_16 = arith.constant 0.000000e+00 : f32
      %18 = vector.broadcast %cst_16 : f32 to vector<1x128xf32>
      %c0_17 = arith.constant 0 : index
      %c0_18 = arith.constant 0 : index
      %19 = vector.load %arg4[%c0_17, %c0_18] : memref<1x128xf32, #tpu.memory_space<vmem>>, vector<1x128xf32>
      tpu.vector_store %arg4[%c0_17, %c0_18], %18 {strides = array<i32>} : memref<1x128xf32, #tpu.memory_space<vmem>>, vector<1x128xf32>,
      %cst_19 = arith.constant 0.000000e+00 : f32
      %20 = vector.broadcast %cst_19 : f32 to vector<1x128xf32>
      %c0_20 = arith.constant 0 : index
      %c0_21 = arith.constant 0 : index
      %21 = vector.load %arg5[%c0_20, %c0_21] : memref<1x128xf32, #tpu.memory_space<vmem>>, vector<1x128xf32>
      tpu.vector_store %arg5[%c0_20, %c0_21], %20 {strides = array<i32>} : memref<1x128xf32, #tpu.memory_space<vmem>>, vector<1x128xf32>,
    } else {
    }
    %c0_6 = arith.constant 0 : index
    %c0_7 = arith.constant 0 : index
    %7 = vector.load %arg4[%c0_6, %c0_7] : memref<1x128xf32, #tpu.memory_space<vmem>>, vector<1x128xf32>
    %cst_8 = arith.constant dense<0.000000e+00> : vector<128xf32>
    %8 = vector.multi_reduction <add>, %2, %cst_8 [0] : vector<512x128xf32> to vector<128xf32>
    %9 = vector.shape_cast %8 : vector<128xf32> to vector<1x128xf32>
    %10 = arith.addf %7, %9 : vector<1x128xf32>
    %c0_9 = arith.constant 0 : index
    %c0_10 = arith.constant 0 : index
    %11 = vector.load %arg4[%c0_9, %c0_10] : memref<1x128xf32, #tpu.memory_space<vmem>>, vector<1x128xf32>
    tpu.vector_store %arg4[%c0_9, %c0_10], %10 {strides = array<i32>} : memref<1x128xf32, #tpu.memory_space<vmem>>, vector<1x128xf32>,
    %c0_11 = arith.constant 0 : index
    %c0_12 = arith.constant 0 : index
    %12 = vector.load %arg5[%c0_11, %c0_12] : memref<1x128xf32, #tpu.memory_space<vmem>>, vector<1x128xf32>
    %13 = arith.mulf %2, %2 : vector<512x128xf32>
    %cst_13 = arith.constant dense<0.000000e+00> : vector<128xf32>
    %14 = vector.multi_reduction <add>, %13, %cst_13 [0] : vector<512x128xf32> to vector<128xf32>
    %15 = vector.shape_cast %14 : vector<128xf32> to vector<1x128xf32>
    %16 = arith.addf %12, %15 : vector<1x128xf32>
    %c0_14 = arith.constant 0 : index
    %c0_15 = arith.constant 0 : index
    %17 = vector.load %arg5[%c0_14, %c0_15] : memref<1x128xf32, #tpu.memory_space<vmem>>, vector<1x128xf32>
    tpu.vector_store %arg5[%c0_14, %c0_15], %16 {strides = array<i32>} : memref<1x128xf32, #tpu.memory_space<vmem>>, vector<1x128xf32>,
    return
  }
  func.func @transform_0(%arg0: i32) -> (i32, i32) {
    %c0_i32 = arith.constant 0 : i32
    %c0_i32_0 = arith.constant 0 : i32
    return %arg0, %c0_i32 : i32, i32
  }
  func.func @transform_1(%arg0: i32) -> (i32, i32) {
    %c0_i32 = arith.constant 0 : i32
    %c0_i32_0 = arith.constant 0 : i32
    %c0_i32_1 = arith.constant 0 : i32
    return %c0_i32, %c0_i32_0 : i32, i32
  }
  func.func @transform_2(%arg0: i32) -> (i32, i32) {
    %c0_i32 = arith.constant 0 : i32
    %c0_i32_0 = arith.constant 0 : i32
    return %arg0, %c0_i32 : i32, i32
  }
  func.func @transform_3(%arg0: i32) -> (i32, i32) {
    %c0_i32 = arith.constant 0 : i32
    %c0_i32_0 = arith.constant 0 : i32
    %c0_i32_1 = arith.constant 0 : i32
    return %c0_i32, %c0_i32_0 : i32, i32
  }
  func.func @transform_4(%arg0: i32) -> (i32, i32) {
    %c0_i32 = arith.constant 0 : i32
    %c0_i32_0 = arith.constant 0 : i32
    %c0_i32_1 = arith.constant 0 : i32
    return %c0_i32, %c0_i32_0 : i32, i32
  }
}

module attributes {stable_mosaic.version = 11 : i64} {
  func.func @bn_res_relu_kernel(%arg0: i32, %arg1: memref<512x128xf32, #tpu.memory_space<vmem>>, %arg2: memref<1x128xf32, #tpu.memory_space<vmem>>, %arg3: memref<1x128xf32, #tpu.memory_space<vmem>>, %arg4: memref<1x128xf32, #tpu.memory_space<vmem>>, %arg5: memref<1x128xf32, #tpu.memory_space<vmem>>, %arg6: memref<512x128xbf16, #tpu.memory_space<vmem>>, %arg7: memref<128x128xbf16, #tpu.memory_space<vmem>>, %arg8: memref<1x128xf32, #tpu.memory_space<vmem>>, %arg9: memref<512x128xf32, #tpu.memory_space<vmem>>) attributes {dimension_semantics = [#tpu.dimension_semantics<parallel>], iteration_bounds = array<i64: 2>, scalar_prefetch = 0 : i64, scratch_operands = 0 : i64, tpu.core_type = #tpu.core_type<tc>, window_params = [{transform_indices = @transform_0, window_bounds = array<i64: 512, 128>}, {pipeline_mode = #tpu.pipeline_mode<synchronous>, transform_indices = @transform_1, window_bounds = array<i64: 1, 128>}, {pipeline_mode = #tpu.pipeline_mode<synchronous>, transform_indices = @transform_2, window_bounds = array<i64: 1, 128>}, {pipeline_mode = #tpu.pipeline_mode<synchronous>, transform_indices = @transform_3, window_bounds = array<i64: 1, 128>}, {pipeline_mode = #tpu.pipeline_mode<synchronous>, transform_indices = @transform_4, window_bounds = array<i64: 1, 128>}, {transform_indices = @transform_5, window_bounds = array<i64: 512, 128>}, {pipeline_mode = #tpu.pipeline_mode<synchronous>, transform_indices = @transform_6, window_bounds = array<i64: 128, 128>}, {pipeline_mode = #tpu.pipeline_mode<synchronous>, transform_indices = @transform_7, window_bounds = array<i64: 1, 128>}, {transform_indices = @transform_8, window_bounds = array<i64: 512, 128>}]} {
    %c0 = arith.constant 0 : index
    %c0_0 = arith.constant 0 : index
    %0 = vector.load %arg1[%c0, %c0_0] : memref<512x128xf32, #tpu.memory_space<vmem>>, vector<512x128xf32>
    %c0_1 = arith.constant 0 : index
    %c0_2 = arith.constant 0 : index
    %1 = vector.load %arg2[%c0_1, %c0_2] : memref<1x128xf32, #tpu.memory_space<vmem>>, vector<1x128xf32>
    %cst = arith.constant 9.765625E-4 : f32
    %2 = vector.broadcast %cst : f32 to vector<1x128xf32>
    %3 = arith.mulf %1, %2 : vector<1x128xf32>
    %c0_3 = arith.constant 0 : index
    %c0_4 = arith.constant 0 : index
    %4 = vector.load %arg3[%c0_3, %c0_4] : memref<1x128xf32, #tpu.memory_space<vmem>>, vector<1x128xf32>
    %cst_5 = arith.constant 9.765625E-4 : f32
    %5 = vector.broadcast %cst_5 : f32 to vector<1x128xf32>
    %6 = arith.mulf %4, %5 : vector<1x128xf32>
    %7 = arith.mulf %3, %3 : vector<1x128xf32>
    %8 = arith.subf %6, %7 : vector<1x128xf32>
    %c0_6 = arith.constant 0 : index
    %c0_7 = arith.constant 0 : index
    %9 = vector.load %arg4[%c0_6, %c0_7] : memref<1x128xf32, #tpu.memory_space<vmem>>, vector<1x128xf32>
    %cst_8 = arith.constant 9.99999974E-6 : f32
    %10 = vector.broadcast %cst_8 : f32 to vector<1x128xf32>
    %11 = arith.addf %8, %10 : vector<1x128xf32>
    %12 = math.rsqrt %11 : vector<1x128xf32>
    %13 = arith.mulf %9, %12 : vector<1x128xf32>
    %14 = vector.broadcast %3 : vector<1x128xf32> to vector<512x128xf32>
    %15 = arith.subf %0, %14 : vector<512x128xf32>
    %16 = vector.broadcast %13 : vector<1x128xf32> to vector<512x128xf32>
    %17 = arith.mulf %15, %16 : vector<512x128xf32>
    %c0_9 = arith.constant 0 : index
    %c0_10 = arith.constant 0 : index
    %18 = vector.load %arg5[%c0_9, %c0_10] : memref<1x128xf32, #tpu.memory_space<vmem>>, vector<1x128xf32>
    %19 = vector.broadcast %18 : vector<1x128xf32> to vector<512x128xf32>
    %20 = arith.addf %17, %19 : vector<512x128xf32>
    %c0_11 = arith.constant 0 : index
    %c0_12 = arith.constant 0 : index
    %21 = vector.load %arg6[%c0_11, %c0_12] : memref<512x128xbf16, #tpu.memory_space<vmem>>, vector<512x128xbf16>
    %c0_13 = arith.constant 0 : index
    %c0_14 = arith.constant 0 : index
    %22 = vector.load %arg7[%c0_13, %c0_14] : memref<128x128xbf16, #tpu.memory_space<vmem>>, vector<128x128xbf16>
    %cst_15 = arith.constant dense<0.000000e+00> : vector<512x128xf32>
    %23 = tpu.matmul %21, %22, %cst_15 {dimension_numbers = #tpu.dot_dimension_numbers<[1], [0], [0], [1], [0, 0, 1, 1], [], []>} : vector<512x128xbf16>, vector<128x128xbf16>, vector<512x128xf32> -> vector<512x128xf32>
    %c0_16 = arith.constant 0 : index
    %c0_17 = arith.constant 0 : index
    %24 = vector.load %arg8[%c0_16, %c0_17] : memref<1x128xf32, #tpu.memory_space<vmem>>, vector<1x128xf32>
    %25 = vector.broadcast %24 : vector<1x128xf32> to vector<512x128xf32>
    %26 = arith.addf %23, %25 : vector<512x128xf32>
    %27 = arith.addf %20, %26 : vector<512x128xf32>
    %cst_18 = arith.constant 0.000000e+00 : f32
    %28 = vector.broadcast %cst_18 : f32 to vector<512x128xf32>
    %29 = arith.maximumf %27, %28 : vector<512x128xf32>
    %c0_19 = arith.constant 0 : index
    %c0_20 = arith.constant 0 : index
    %30 = vector.load %arg9[%c0_19, %c0_20] : memref<512x128xf32, #tpu.memory_space<vmem>>, vector<512x128xf32>
    tpu.vector_store %arg9[%c0_19, %c0_20], %29 {strides = array<i32>} : memref<512x128xf32, #tpu.memory_space<vmem>>, vector<512x128xf32>,
    return
  }
  func.func @transform_0(%arg0: i32) -> (i32, i32) {
    %c0_i32 = arith.constant 0 : i32
    %c0_i32_0 = arith.constant 0 : i32
    return %arg0, %c0_i32 : i32, i32
  }
  func.func @transform_1(%arg0: i32) -> (i32, i32) {
    %c0_i32 = arith.constant 0 : i32
    %c0_i32_0 = arith.constant 0 : i32
    %c0_i32_1 = arith.constant 0 : i32
    return %c0_i32, %c0_i32_0 : i32, i32
  }
  func.func @transform_2(%arg0: i32) -> (i32, i32) {
    %c0_i32 = arith.constant 0 : i32
    %c0_i32_0 = arith.constant 0 : i32
    %c0_i32_1 = arith.constant 0 : i32
    return %c0_i32, %c0_i32_0 : i32, i32
  }
  func.func @transform_3(%arg0: i32) -> (i32, i32) {
    %c0_i32 = arith.constant 0 : i32
    %c0_i32_0 = arith.constant 0 : i32
    %c0_i32_1 = arith.constant 0 : i32
    return %c0_i32, %c0_i32_0 : i32, i32
  }
  func.func @transform_4(%arg0: i32) -> (i32, i32) {
    %c0_i32 = arith.constant 0 : i32
    %c0_i32_0 = arith.constant 0 : i32
    %c0_i32_1 = arith.constant 0 : i32
    return %c0_i32, %c0_i32_0 : i32, i32
  }
  func.func @transform_5(%arg0: i32) -> (i32, i32) {
    %c0_i32 = arith.constant 0 : i32
    %c0_i32_0 = arith.constant 0 : i32
    return %arg0, %c0_i32 : i32, i32
  }
  func.func @transform_6(%arg0: i32) -> (i32, i32) {
    %c0_i32 = arith.constant 0 : i32
    %c0_i32_0 = arith.constant 0 : i32
    %c0_i32_1 = arith.constant 0 : i32
    return %c0_i32, %c0_i32_0 : i32, i32
  }
  func.func @transform_7(%arg0: i32) -> (i32, i32) {
    %c0_i32 = arith.constant 0 : i32
    %c0_i32_0 = arith.constant 0 : i32
    %c0_i32_1 = arith.constant 0 : i32
    return %c0_i32, %c0_i32_0 : i32, i32
  }
  func.func @transform_8(%arg0: i32) -> (i32, i32) {
    %c0_i32 = arith.constant 0 : i32
    %c0_i32_0 = arith.constant 0 : i32
    return %arg0, %c0_i32 : i32, i32
  }
}

</mosaic_0001>

<llo_original>
// kernel: resblock_forward.5
$region0: #{resblock_forward.5}
  #allocation0 [shape = 'u32[]', space=smem, size = 0x4, offset = 0x4, fixed_abs, tag = 'smem constant byte address 0x4 - core index']
  #allocation1 [shape = 'u32[72,128]{1,0:T(1,128)}', space=vmem, size = 0x9000, scoped, tag = 'internal scratch']
  %s0 = inlined_call_operand.vmem [shape: f32[1024,128], index: 0, kind: input, shape index: {}]
  %s1 = inlined_call_operand.vmem [shape: f32[1,128], index: 1, kind: input, shape index: {}]
  %s2 = inlined_call_operand.vmem [shape: f32[1,128], index: 2, kind: input, shape index: {}]
  %s3 = inlined_call_operand.vmem [shape: f32[1,128], index: 3, kind: input, shape index: {}]
  %s4 = inlined_call_operand.vmem [shape: f32[1,128], index: 4, kind: input, shape index: {}]
  %s5 = inlined_call_operand.vmem [shape: bf16[1024,128], index: 5, kind: output, shape index: {}]
  %s6 = sld [smem:[#allocation0]]
  $region53: #{resblock_forward.5} parent=0
    _
  %s8 = ssub.s32 1, %s6
  %s9 = scalar_select 0, %s8, %s6
  loop: start=0, step=1, limit=4
  $region2: #{resblock_forward.5} parent=0 // loop_pre_header
    _
  $region3: #{resblock_forward.5} parent=0 // loop_header
    %s11 = sphi 0, %s15
    %p12 = scmp.ge.s32.totalorder %s11, 4
    %s21 = sphi 0, %s23
    %s24 = sphi 0, %s21
    %s25 = sphi 0, %s24
    %s41 = sphi 0, %s25
    %s45 = sphi 0, %s45
    %s47 = sphi 0, %s45
    %s48 = sphi 0, %s47
    %s62 = sphi 0, %s48
    %s66 = sphi 0, %s66
    %s68 = sphi 0, %s66
    %s69 = sphi 0, %s68
    %s83 = sphi 0, %s69
    %s87 = sphi 0, %s87
    %s89 = sphi 0, %s87
    %s90 = sphi 0, %s89
    %s104 = sphi 0, %s90
    %s108 = sphi 0, %s108
    %s110 = sphi 0, %s108
    %s111 = sphi 0, %s110
    %s125 = sphi 0, %s111
    %s131 = sphi 0, %s133
    %s134 = sphi 0, %s131
    %s135 = sphi 0, %s134
    %s151 = sphi 0, %s135
  $region4: #{resblock_forward.5} parent=0 // loop_header_branch
    %14 = sbr.rel (%p12) target = $region8
  $region5: #{resblock_forward.5} parent=0 // loop_body
    %s16 = ssub.s32 %s11, 1
    %s17 = ssub.s32 %s11, 2
    %s18 = sadd.s32 %s11, 1
    %s19 = ssub.s32 %s11, %s18
    %p20 = scmp.eq.s32.totalorder %s19, 0
    %s22 = sadd.s32 %s21, 1
    %s23 = scalar_select %p20, %s21, %s22
    %p26 = pneg %p20
    %p27 = scmp.eq.s32.totalorder %s11, 1
    %p28 = por %p26, %p27
    %p29 = scmp.ne.s32.totalorder %s21, %s24
    %p30 = scmp.eq.s32.totalorder %s11, 0
    %p31 = por %p29, %p30
    %p32 = scmp.ne.s32.totalorder %s21, %s24
    %p33 = scmp.eq.s32.totalorder %s16, 1
    %p34 = por %p32, %p33
    %p35 = scmp.ne.s32.totalorder %s24, %s25
    %p36 = scmp.eq.s32.totalorder %s16, 0
    %p37 = por %p35, %p36
    %p38 = scmp.ne.s32.totalorder %s24, %s25
    %p39 = scmp.eq.s32.totalorder %s17, 1
    %p40 = por %p38, %p39
    %p42 = scmp.ne.s32.totalorder %s25, %s41
    %p43 = scmp.eq.s32.totalorder %s17, 0
    %p44 = por %p42, %p43
    %s46 = sadd.s32 %s45, 1
    %p49 = scmp.eq.s32.totalorder %s11, 1
    %p50 = scmp.ne.s32.totalorder %s45, %s47
    %p51 = scmp.eq.s32.totalorder %s11, 0
    %p52 = por %p50, %p51
    %p53 = scmp.ne.s32.totalorder %s45, %s47
    %p54 = scmp.eq.s32.totalorder %s16, 1
    %p55 = por %p53, %p54
    %p56 = scmp.ne.s32.totalorder %s47, %s48
    %p57 = scmp.eq.s32.totalorder %s16, 0
    %p58 = por %p56, %p57
    %p59 = scmp.ne.s32.totalorder %s47, %s48
    %p60 = scmp.eq.s32.totalorder %s17, 1
    %p61 = por %p59, %p60
    %p63 = scmp.ne.s32.totalorder %s48, %s62
    %p64 = scmp.eq.s32.totalorder %s17, 0
    %p65 = por %p63, %p64
    %s67 = sadd.s32 %s66, 1
    %p70 = scmp.eq.s32.totalorder %s11, 1
    %p71 = scmp.ne.s32.totalorder %s66, %s68
    %p72 = scmp.eq.s32.totalorder %s11, 0
    %p73 = por %p71, %p72
    %p74 = scmp.ne.s32.totalorder %s66, %s68
    %p75 = scmp.eq.s32.totalorder %s16, 1
    %p76 = por %p74, %p75
    %p77 = scmp.ne.s32.totalorder %s68, %s69
    %p78 = scmp.eq.s32.totalorder %s16, 0
    %p79 = por %p77, %p78
    %p80 = scmp.ne.s32.totalorder %s68, %s69
    %p81 = scmp.eq.s32.totalorder %s17, 1
    %p82 = por %p80, %p81
    %p84 = scmp.ne.s32.totalorder %s69, %s83
    %p85 = scmp.eq.s32.totalorder %s17, 0
    %p86 = por %p84, %p85
    %s88 = sadd.s32 %s87, 1
    %p91 = scmp.eq.s32.totalorder %s11, 1
    %p92 = scmp.ne.s32.totalorder %s87, %s89
    %p93 = scmp.eq.s32.totalorder %s11, 0
    %p94 = por %p92, %p93
    %p95 = scmp.ne.s32.totalorder %s87, %s89
    %p96 = scmp.eq.s32.totalorder %s16, 1
    %p97 = por %p95, %p96
    %p98 = scmp.ne.s32.totalorder %s89, %s90
    %p99 = scmp.eq.s32.totalorder %s16, 0
    %p100 = por %p98, %p99
    %p101 = scmp.ne.s32.totalorder %s89, %s90
    %p102 = scmp.eq.s32.totalorder %s17, 1
    %p103 = por %p101, %p102
    %p105 = scmp.ne.s32.totalorder %s90, %s104
    %p106 = scmp.eq.s32.totalorder %s17, 0
    %p107 = por %p105, %p106
    %s109 = sadd.s32 %s108, 1
    %p112 = scmp.eq.s32.totalorder %s11, 1
    %p113 = scmp.ne.s32.totalorder %s108, %s110
    %p114 = scmp.eq.s32.totalorder %s11, 0
    %p115 = por %p113, %p114
    %p116 = scmp.ne.s32.totalorder %s108, %s110
    %p117 = scmp.eq.s32.totalorder %s16, 1
    %p118 = por %p116, %p117
    %p119 = scmp.ne.s32.totalorder %s110, %s111
    %p120 = scmp.eq.s32.totalorder %s16, 0
    %p121 = por %p119, %p120
    %p122 = scmp.ne.s32.totalorder %s110, %s111
    %p123 = scmp.eq.s32.totalorder %s17, 1
    %p124 = por %p122, %p123
    %p126 = scmp.ne.s32.totalorder %s111, %s125
    %p127 = scmp.eq.s32.totalorder %s17, 0
    %p128 = por %p126, %p127
    %s129 = ssub.s32 %s11, %s18
    %p130 = scmp.eq.s32.totalorder %s129, 0
    %s132 = sadd.s32 %s131, 1
    %s133 = scalar_select %p130, %s131, %s132
    %p136 = pneg %p130
    %p137 = scmp.eq.s32.totalorder %s11, 1
    %p138 = por %p136, %p137
    %p139 = scmp.ne.s32.totalorder %s131, %s134
    %p140 = scmp.eq.s32.totalorder %s11, 0
    %p141 = por %p139, %p140
    %p142 = scmp.ne.s32.totalorder %s131, %s134
    %p143 = scmp.eq.s32.totalorder %s16, 1
    %p144 = por %p142, %p143
    %p145 = scmp.ne.s32.totalorder %s134, %s135
    %p146 = scmp.eq.s32.totalorder %s16, 0
    %p147 = por %p145, %p146
    %p148 = scmp.ne.s32.totalorder %s134, %s135
    %p149 = scmp.eq.s32.totalorder %s17, 1
    %p150 = por %p148, %p149
    %p152 = scmp.ne.s32.totalorder %s135, %s151
    %p153 = scmp.eq.s32.totalorder %s17, 0
    %p154 = por %p152, %p153
    %p155 = scmp.le.s32.totalorder 1, %s11
    %p156 = scmp.lt.s32.totalorder %s11, 3
    %p157 = pnand %p155, %p156
    %p158 = pneg %p157
    // Predicated region
    $region9: #{resblock_forward.5} parent=5 // pred_check
      _
    $region10: #{resblock_forward.5} parent=5 // pred_check_branch
      %160 = sbr.rel (%p157) target = $region12
    $region11: #{resblock_forward.5} parent=5 // pred_region
      %s161 = ssub.s32 %s11, 1
      // Predicated region
      $region13: #{resblock_forward.5} parent=11 // pred_check
        %p162 = pneg %p58
      $region14: #{resblock_forward.5} parent=11 // pred_check_branch
        %164 = sbr.rel (%p162) target = $region16
      $region15: #{resblock_forward.5} parent=11 // pred_region
        _
      $region16: #{resblock_forward.5} parent=11 // pred_fallthru
        _
      // Predicated region
      $region17: #{resblock_forward.5} parent=11 // pred_check
        %p165 = pneg %p79
      $region18: #{resblock_forward.5} parent=11 // pred_check_branch
        %167 = sbr.rel (%p165) target = $region20
      $region19: #{resblock_forward.5} parent=11 // pred_region
        _
      $region20: #{resblock_forward.5} parent=11 // pred_fallthru
        _
      // Predicated region
      $region21: #{resblock_forward.5} parent=11 // pred_check
        %p168 = pneg %p100
      $region22: #{resblock_forward.5} parent=11 // pred_check_branch
        %170 = sbr.rel (%p168) target = $region24
      $region23: #{resblock_forward.5} parent=11 // pred_region
        _
      $region24: #{resblock_forward.5} parent=11 // pred_fallthru
        _
      // Predicated region
      $region25: #{resblock_forward.5} parent=11 // pred_check
        %p171 = pneg %p121
      $region26: #{resblock_forward.5} parent=11 // pred_check_branch
        %173 = sbr.rel (%p171) target = $region28
      $region27: #{resblock_forward.5} parent=11 // pred_region
        _
      $region28: #{resblock_forward.5} parent=11 // pred_fallthru
        _
    $region12: #{resblock_forward.5} parent=5 // pred_fallthru
      _
    %p174 = scmp.lt.s32.totalorder %s11, 2
    // Predicated region
    $region29: #{resblock_forward.5} parent=5 // pred_check
      %p175 = pneg %p174
    $region30: #{resblock_forward.5} parent=5 // pred_check_branch
      %177 = sbr.rel (%p175) target = $region32
    $region31: #{resblock_forward.5} parent=5 // pred_region
      // Predicated region
      $region33: #{resblock_forward.5} parent=31 // pred_check
        %p178 = pneg %p31
      $region34: #{resblock_forward.5} parent=31 // pred_check_branch
        %180 = sbr.rel (%p178) target = $region36
      $region35: #{resblock_forward.5} parent=31 // pred_region
        %s181 = smul.u32 64, %s11
        %p182 = scmp.lt.s32.totalorder %s181, 127
        %s183 = scalar_select %p182, %s181, 127
        %s184 = smul.addr %s183, 8
        %s185 = scalar_lea.vmem %s0, %s184
        %s186 = smul.u32 64, %s11
      $region36: #{resblock_forward.5} parent=31 // pred_fallthru
        _
    $region32: #{resblock_forward.5} parent=5 // pred_fallthru
      _
    %p187 = scmp.le.s32.totalorder 1, %s11
    %p188 = scmp.lt.s32.totalorder %s11, 3
    %p189 = pnand %p187, %p188
    %p190 = pneg %p189
    // Predicated region
    $region37: #{resblock_forward.5} parent=5 // pred_check
      _
    $region38: #{resblock_forward.5} parent=5 // pred_check_branch
      %192 = sbr.rel (%p189) target = $region40
    $region39: #{resblock_forward.5} parent=5 // pred_region
      %s193 = ssub.s32 %s11, 1
      %s194 = smul.u32 64, %s16
      %p195 = scmp.lt.s32.totalorder %s194, 127
      %s196 = scalar_select %p195, %s194, 127
      %s197 = smul.addr %s196, 8
      %s198 = scalar_lea.vmem %s0, %s197
      %p199 = pneg %p37
      %p200 = pneg %p34
      %p201 = pneg %p58
      %p202 = pneg %p55
      %p203 = pneg %p79
      %p204 = pneg %p76
      %p205 = pneg %p100
      %p206 = pneg %p97
      %p207 = pneg %p121
      %p208 = pneg %p118
      %p209 = pneg %p147
      %p210 = pneg %p144
      %s211 = smul.u32 64, %s16
      %p212 = scmp.lt.s32.totalorder %s211, 127
      %s213 = scalar_select %p212, %s211, 127
      %s214 = smul.addr %s213, 4
      %s215 = scalar_lea.vmem %s5, %s214
      %s216 = smul.u32 64, %s16
      %p217 = scmp.lt.s32.totalorder %s216, 127
      %s218 = scalar_select %p217, %s216, 127
      %s219 = smul.addr %s218, 8
      %s220 = scalar_lea.vmem %s0, %s219
      %s221 = smul.u32 64, %s16
      %s222 = smul.u32 64, %s16
      %p223 = scmp.lt.s32.totalorder %s222, 127
      %s224 = scalar_select %p223, %s222, 127
      %s225 = smul.addr %s224, 4
      %s226 = scalar_lea.vmem %s5, %s225
      %s227 = smul.u32 64, %s16
      %v228 = vld [vmem:[%s220] sm:$0xff]
      %v229 = vld [vmem:[%s220 + $0x8] sm:$0xff]
      %v230 = vld [vmem:[%s220 + $0x10] sm:$0xff]
      %v231 = vld [vmem:[%s220 + $0x18] sm:$0xff]
      %v232 = vld [vmem:[%s220 + $0x20] sm:$0xff]
      %v233 = vld [vmem:[%s220 + $0x28] sm:$0xff]
      %v234 = vld [vmem:[%s220 + $0x30] sm:$0xff]
      %v235 = vld [vmem:[%s220 + $0x38] sm:$0xff]
      %v236 = vld [vmem:[%s220 + $0x40] sm:$0xff]
      %v237 = vld [vmem:[%s220 + $0x48] sm:$0xff]
      %v238 = vld [vmem:[%s220 + $0x50] sm:$0xff]
      %v239 = vld [vmem:[%s220 + $0x58] sm:$0xff]
      %v240 = vld [vmem:[%s220 + $0x60] sm:$0xff]
      %v241 = vld [vmem:[%s220 + $0x68] sm:$0xff]
      %v242 = vld [vmem:[%s220 + $0x70] sm:$0xff]
      %v243 = vld [vmem:[%s220 + $0x78] sm:$0xff]
      %v244 = vld [vmem:[%s220 + $0x80] sm:$0xff]
      %v245 = vld [vmem:[%s220 + $0x88] sm:$0xff]
      %v246 = vld [vmem:[%s220 + $0x90] sm:$0xff]
      %v247 = vld [vmem:[%s220 + $0x98] sm:$0xff]
      %v248 = vld [vmem:[%s220 + $0xa0] sm:$0xff]
      %v249 = vld [vmem:[%s220 + $0xa8] sm:$0xff]
      %v250 = vld [vmem:[%s220 + $0xb0] sm:$0xff]
      %v251 = vld [vmem:[%s220 + $0xb8] sm:$0xff]
      %v252 = vld [vmem:[%s220 + $0xc0] sm:$0xff]
      %v253 = vld [vmem:[%s220 + $0xc8] sm:$0xff]
      %v254 = vld [vmem:[%s220 + $0xd0] sm:$0xff]
      %v255 = vld [vmem:[%s220 + $0xd8] sm:$0xff]
      %v256 = vld [vmem:[%s220 + $0xe0] sm:$0xff]
      %v257 = vld [vmem:[%s220 + $0xe8] sm:$0xff]
      %v258 = vld [vmem:[%s220 + $0xf0] sm:$0xff]
      %v259 = vld [vmem:[%s220 + $0xf8] sm:$0xff]
      %v260 = vld [vmem:[%s220 + $0x100] sm:$0xff]
      %v261 = vld [vmem:[%s220 + $0x108] sm:$0xff]
      %v262 = vld [vmem:[%s220 + $0x110] sm:$0xff]
      %v263 = vld [vmem:[%s220 + $0x118] sm:$0xff]
      %v264 = vld [vmem:[%s220 + $0x120] sm:$0xff]
      %v265 = vld [vmem:[%s220 + $0x128] sm:$0xff]
      %v266 = vld [vmem:[%s220 + $0x130] sm:$0xff]
      %v267 = vld [vmem:[%s220 + $0x138] sm:$0xff]
      %v268 = vld [vmem:[%s220 + $0x140] sm:$0xff]
      %v269 = vld [vmem:[%s220 + $0x148] sm:$0xff]
      %v270 = vld [vmem:[%s220 + $0x150] sm:$0xff]
      %v271 = vld [vmem:[%s220 + $0x158] sm:$0xff]
      %v272 = vld [vmem:[%s220 + $0x160] sm:$0xff]
      %v273 = vld [vmem:[%s220 + $0x168] sm:$0xff]
      %v274 = vld [vmem:[%s220 + $0x170] sm:$0xff]
      %v275 = vld [vmem:[%s220 + $0x178] sm:$0xff]
      %v276 = vld [vmem:[%s220 + $0x180] sm:$0xff]
      %v277 = vld [vmem:[%s220 + $0x188] sm:$0xff]
      %v278 = vld [vmem:[%s220 + $0x190] sm:$0xff]
      %v279 = vld [vmem:[%s220 + $0x198] sm:$0xff]
      %v280 = vld [vmem:[%s220 + $0x1a0] sm:$0xff]
      %v281 = vld [vmem:[%s220 + $0x1a8] sm:$0xff]
      %v282 = vld [vmem:[%s220 + $0x1b0] sm:$0xff]
      %v283 = vld [vmem:[%s220 + $0x1b8] sm:$0xff]
      %v284 = vld [vmem:[%s220 + $0x1c0] sm:$0xff]
      %v285 = vld [vmem:[%s220 + $0x1c8] sm:$0xff]
      %v286 = vld [vmem:[%s220 + $0x1d0] sm:$0xff]
      %v287 = vld [vmem:[%s220 + $0x1d8] sm:$0xff]
      %v288 = vld [vmem:[%s220 + $0x1e0] sm:$0xff]
      %v289 = vld [vmem:[%s220 + $0x1e8] sm:$0xff]
      %v290 = vld [vmem:[%s220 + $0x1f0] sm:$0xff]
      %v291 = vld [vmem:[%s220 + $0x1f8] sm:$0xff]
      %v292 = vld [vmem:[%s1] sm:$0x1]
      %v293 = vmul.f32 %v292, 0.0009765625
      %v294 = vld [vmem:[%s2] sm:$0x1]
      %v295 = vmul.f32 %v294, 0.0009765625
      %v296 = vmul.f32 %v293, %v293
      %v297 = vsub.f32 %v295, %v296
      %v298 = vld [vmem:[%s3] sm:$0x1]
      %v299 = vadd.f32 %v297, 1e-05
      %v300 = vrsqrt.pop %v299
      %v301 = vmul.f32 %v300, %v299
      %v302 = vmul.f32 %v301, %v300
      %v303 = vmul.f32 0.5, %v302
      %v304 = vsub.f32 1.5, %v303
      %v305 = vmul.f32 %v300, %v304
      %vm306 = vweird.f32 %v299
      %vm307 = vweird.f32 %v300
      %vm308 = vmor %vm306, %vm307
      %v309 = vsel %vm308, %v300, %v305
      %v310 = vmul.f32 %v298, %v309
      %v312 = vperm.slane %v293, 0
      %v314 = vsub.f32 %v228, %v312
      %v315 = vsub.f32 %v229, %v312
      %v316 = vsub.f32 %v230, %v312
      %v317 = vsub.f32 %v231, %v312
      %v318 = vsub.f32 %v232, %v312
      %v319 = vsub.f32 %v233, %v312
      %v320 = vsub.f32 %v234, %v312
      %v321 = vsub.f32 %v235, %v312
      %v322 = vsub.f32 %v236, %v312
      %v323 = vsub.f32 %v237, %v312
      %v324 = vsub.f32 %v238, %v312
      %v325 = vsub.f32 %v239, %v312
      %v326 = vsub.f32 %v240, %v312
      %v327 = vsub.f32 %v241, %v312
      %v328 = vsub.f32 %v242, %v312
      %v329 = vsub.f32 %v243, %v312
      %v330 = vsub.f32 %v244, %v312
      %v331 = vsub.f32 %v245, %v312
      %v332 = vsub.f32 %v246, %v312
      %v333 = vsub.f32 %v247, %v312
      %v334 = vsub.f32 %v248, %v312
      %v335 = vsub.f32 %v249, %v312
      %v336 = vsub.f32 %v250, %v312
      %v337 = vsub.f32 %v251, %v312
      %v338 = vsub.f32 %v252, %v312
      %v339 = vsub.f32 %v253, %v312
      %v340 = vsub.f32 %v254, %v312
      %v341 = vsub.f32 %v255, %v312
      %v342 = vsub.f32 %v256, %v312
      %v343 = vsub.f32 %v257, %v312
      %v344 = vsub.f32 %v258, %v312
      %v345 = vsub.f32 %v259, %v312
      %v346 = vsub.f32 %v260, %v312
      %v347 = vsub.f32 %v261, %v312
      %v348 = vsub.f32 %v262, %v312
      %v349 = vsub.f32 %v263, %v312
      %v350 = vsub.f32 %v264, %v312
      %v351 = vsub.f32 %v265, %v312
      %v352 = vsub.f32 %v266, %v312
      %v353 = vsub.f32 %v267, %v312
      %v354 = vsub.f32 %v268, %v312
      %v355 = vsub.f32 %v269, %v312
      %v356 = vsub.f32 %v270, %v312
      %v357 = vsub.f32 %v271, %v312
      %v358 = vsub.f32 %v272, %v312
      %v359 = vsub.f32 %v273, %v312
      %v360 = vsub.f32 %v274, %v312
      %v361 = vsub.f32 %v275, %v312
      %v362 = vsub.f32 %v276, %v312
      %v363 = vsub.f32 %v277, %v312
      %v364 = vsub.f32 %v278, %v312
      %v365 = vsub.f32 %v279, %v312
      %v366 = vsub.f32 %v280, %v312
      %v367 = vsub.f32 %v281, %v312
      %v368 = vsub.f32 %v282, %v312
      %v369 = vsub.f32 %v283, %v312
      %v370 = vsub.f32 %v284, %v312
      %v371 = vsub.f32 %v285, %v312
      %v372 = vsub.f32 %v286, %v312
      %v373 = vsub.f32 %v287, %v312
      %v374 = vsub.f32 %v288, %v312
      %v375 = vsub.f32 %v289, %v312
      %v376 = vsub.f32 %v290, %v312
      %v377 = vsub.f32 %v291, %v312
      %v379 = vperm.slane %v310, 0
      %v381 = vmul.f32 %v314, %v379
      %v382 = vmul.f32 %v315, %v379
      %v383 = vmul.f32 %v316, %v379
      %v384 = vmul.f32 %v317, %v379
      %v385 = vmul.f32 %v318, %v379
      %v386 = vmul.f32 %v319, %v379
      %v387 = vmul.f32 %v320, %v379
      %v388 = vmul.f32 %v321, %v379
      %v389 = vmul.f32 %v322, %v379
      %v390 = vmul.f32 %v323, %v379
      %v391 = vmul.f32 %v324, %v379
      %v392 = vmul.f32 %v325, %v379
      %v393 = vmul.f32 %v326, %v379
      %v394 = vmul.f32 %v327, %v379
      %v395 = vmul.f32 %v328, %v379
      %v396 = vmul.f32 %v329, %v379
      %v397 = vmul.f32 %v330, %v379
      %v398 = vmul.f32 %v331, %v379
      %v399 = vmul.f32 %v332, %v379
      %v400 = vmul.f32 %v333, %v379
      %v401 = vmul.f32 %v334, %v379
      %v402 = vmul.f32 %v335, %v379
      %v403 = vmul.f32 %v336, %v379
      %v404 = vmul.f32 %v337, %v379
      %v405 = vmul.f32 %v338, %v379
      %v406 = vmul.f32 %v339, %v379
      %v407 = vmul.f32 %v340, %v379
      %v408 = vmul.f32 %v341, %v379
      %v409 = vmul.f32 %v342, %v379
      %v410 = vmul.f32 %v343, %v379
      %v411 = vmul.f32 %v344, %v379
      %v412 = vmul.f32 %v345, %v379
      %v413 = vmul.f32 %v346, %v379
      %v414 = vmul.f32 %v347, %v379
      %v415 = vmul.f32 %v348, %v379
      %v416 = vmul.f32 %v349, %v379
      %v417 = vmul.f32 %v350, %v379
      %v418 = vmul.f32 %v351, %v379
      %v419 = vmul.f32 %v352, %v379
      %v420 = vmul.f32 %v353, %v379
      %v421 = vmul.f32 %v354, %v379
      %v422 = vmul.f32 %v355, %v379
      %v423 = vmul.f32 %v356, %v379
      %v424 = vmul.f32 %v357, %v379
      %v425 = vmul.f32 %v358, %v379
      %v426 = vmul.f32 %v359, %v379
      %v427 = vmul.f32 %v360, %v379
      %v428 = vmul.f32 %v361, %v379
      %v429 = vmul.f32 %v362, %v379
      %v430 = vmul.f32 %v363, %v379
      %v431 = vmul.f32 %v364, %v379
      %v432 = vmul.f32 %v365, %v379
      %v433 = vmul.f32 %v366, %v379
      %v434 = vmul.f32 %v367, %v379
      %v435 = vmul.f32 %v368, %v379
      %v436 = vmul.f32 %v369, %v379
      %v437 = vmul.f32 %v370, %v379
      %v438 = vmul.f32 %v371, %v379
      %v439 = vmul.f32 %v372, %v379
      %v440 = vmul.f32 %v373, %v379
      %v441 = vmul.f32 %v374, %v379
      %v442 = vmul.f32 %v375, %v379
      %v443 = vmul.f32 %v376, %v379
      %v444 = vmul.f32 %v377, %v379
      %v445 = vld [vmem:[%s4] sm:$0x1]
      %v447 = vperm.slane %v445, 0
      %v449 = vadd.f32 %v381, %v447
      %v450 = vadd.f32 %v382, %v447
      %v451 = vadd.f32 %v383, %v447
      %v452 = vadd.f32 %v384, %v447
      %v453 = vadd.f32 %v385, %v447
      %v454 = vadd.f32 %v386, %v447
      %v455 = vadd.f32 %v387, %v447
      %v456 = vadd.f32 %v388, %v447
      %v457 = vadd.f32 %v389, %v447
      %v458 = vadd.f32 %v390, %v447
      %v459 = vadd.f32 %v391, %v447
      %v460 = vadd.f32 %v392, %v447
      %v461 = vadd.f32 %v393, %v447
      %v462 = vadd.f32 %v394, %v447
      %v463 = vadd.f32 %v395, %v447
      %v464 = vadd.f32 %v396, %v447
      %v465 = vadd.f32 %v397, %v447
      %v466 = vadd.f32 %v398, %v447
      %v467 = vadd.f32 %v399, %v447
      %v468 = vadd.f32 %v400, %v447
      %v469 = vadd.f32 %v401, %v447
      %v470 = vadd.f32 %v402, %v447
      %v471 = vadd.f32 %v403, %v447
      %v472 = vadd.f32 %v404, %v447
      %v473 = vadd.f32 %v405, %v447
      %v474 = vadd.f32 %v406, %v447
      %v475 = vadd.f32 %v407, %v447
      %v476 = vadd.f32 %v408, %v447
      %v477 = vadd.f32 %v409, %v447
      %v478 = vadd.f32 %v410, %v447
      %v479 = vadd.f32 %v411, %v447
      %v480 = vadd.f32 %v412, %v447
      %v481 = vadd.f32 %v413, %v447
      %v482 = vadd.f32 %v414, %v447
      %v483 = vadd.f32 %v415, %v447
      %v484 = vadd.f32 %v416, %v447
      %v485 = vadd.f32 %v417, %v447
      %v486 = vadd.f32 %v418, %v447
      %v487 = vadd.f32 %v419, %v447
      %v488 = vadd.f32 %v420, %v447
      %v489 = vadd.f32 %v421, %v447
      %v490 = vadd.f32 %v422, %v447
      %v491 = vadd.f32 %v423, %v447
      %v492 = vadd.f32 %v424, %v447
      %v493 = vadd.f32 %v425, %v447
      %v494 = vadd.f32 %v426, %v447
      %v495 = vadd.f32 %v427, %v447
      %v496 = vadd.f32 %v428, %v447
      %v497 = vadd.f32 %v429, %v447
      %v498 = vadd.f32 %v430, %v447
      %v499 = vadd.f32 %v431, %v447
      %v500 = vadd.f32 %v432, %v447
      %v501 = vadd.f32 %v433, %v447
      %v502 = vadd.f32 %v434, %v447
      %v503 = vadd.f32 %v435, %v447
      %v504 = vadd.f32 %v436, %v447
      %v505 = vadd.f32 %v437, %v447
      %v506 = vadd.f32 %v438, %v447
      %v507 = vadd.f32 %v439, %v447
      %v508 = vadd.f32 %v440, %v447
      %v509 = vadd.f32 %v441, %v447
      %v510 = vadd.f32 %v442, %v447
      %v511 = vadd.f32 %v443, %v447
      %v512 = vadd.f32 %v444, %v447
      %v513 = vmax.f32 %v449, 0.0
      %v514 = vmax.f32 %v450, 0.0
      %v515 = vmax.f32 %v451, 0.0
      %v516 = vmax.f32 %v452, 0.0
      %v517 = vmax.f32 %v453, 0.0
      %v518 = vmax.f32 %v454, 0.0
      %v519 = vmax.f32 %v455, 0.0
      %v520 = vmax.f32 %v456, 0.0
      %v521 = vmax.f32 %v457, 0.0
      %v522 = vmax.f32 %v458, 0.0
      %v523 = vmax.f32 %v459, 0.0
      %v524 = vmax.f32 %v460, 0.0
      %v525 = vmax.f32 %v461, 0.0
      %v526 = vmax.f32 %v462, 0.0
      %v527 = vmax.f32 %v463, 0.0
      %v528 = vmax.f32 %v464, 0.0
      %v529 = vmax.f32 %v465, 0.0
      %v530 = vmax.f32 %v466, 0.0
      %v531 = vmax.f32 %v467, 0.0
      %v532 = vmax.f32 %v468, 0.0
      %v533 = vmax.f32 %v469, 0.0
      %v534 = vmax.f32 %v470, 0.0
      %v535 = vmax.f32 %v471, 0.0
      %v536 = vmax.f32 %v472, 0.0
      %v537 = vmax.f32 %v473, 0.0
      %v538 = vmax.f32 %v474, 0.0
      %v539 = vmax.f32 %v475, 0.0
      %v540 = vmax.f32 %v476, 0.0
      %v541 = vmax.f32 %v477, 0.0
      %v542 = vmax.f32 %v478, 0.0
      %v543 = vmax.f32 %v479, 0.0
      %v544 = vmax.f32 %v480, 0.0
      %v545 = vmax.f32 %v481, 0.0
      %v546 = vmax.f32 %v482, 0.0
      %v547 = vmax.f32 %v483, 0.0
      %v548 = vmax.f32 %v484, 0.0
      %v549 = vmax.f32 %v485, 0.0
      %v550 = vmax.f32 %v486, 0.0
      %v551 = vmax.f32 %v487, 0.0
      %v552 = vmax.f32 %v488, 0.0
      %v553 = vmax.f32 %v489, 0.0
      %v554 = vmax.f32 %v490, 0.0
      %v555 = vmax.f32 %v491, 0.0
      %v556 = vmax.f32 %v492, 0.0
      %v557 = vmax.f32 %v493, 0.0
      %v558 = vmax.f32 %v494, 0.0
      %v559 = vmax.f32 %v495, 0.0
      %v560 = vmax.f32 %v496, 0.0
      %v561 = vmax.f32 %v497, 0.0
      %v562 = vmax.f32 %v498, 0.0
      %v563 = vmax.f32 %v499, 0.0
      %v564 = vmax.f32 %v500, 0.0
      %v565 = vmax.f32 %v501, 0.0
      %v566 = vmax.f32 %v502, 0.0
      %v567 = vmax.f32 %v503, 0.0
      %v568 = vmax.f32 %v504, 0.0
      %v569 = vmax.f32 %v505, 0.0
      %v570 = vmax.f32 %v506, 0.0
      %v571 = vmax.f32 %v507, 0.0
      %v572 = vmax.f32 %v508, 0.0
      %v573 = vmax.f32 %v509, 0.0
      %v574 = vmax.f32 %v510, 0.0
      %v575 = vmax.f32 %v511, 0.0
      %v576 = vmax.f32 %v512, 0.0
      %v577 = vpack.c.bf16 %v513, %v513
      %v578 = vpack.c.bf16 %v514, %v514
      %v579 = vpack.c.bf16 %v515, %v515
      %v580 = vpack.c.bf16 %v516, %v516
      %v581 = vpack.c.bf16 %v517, %v517
      %v582 = vpack.c.bf16 %v518, %v518
      %v583 = vpack.c.bf16 %v519, %v519
      %v584 = vpack.c.bf16 %v520, %v520
      %v585 = vpack.c.bf16 %v521, %v521
      %v586 = vpack.c.bf16 %v522, %v522
      %v587 = vpack.c.bf16 %v523, %v523
      %v588 = vpack.c.bf16 %v524, %v524
      %v589 = vpack.c.bf16 %v525, %v525
      %v590 = vpack.c.bf16 %v526, %v526
      %v591 = vpack.c.bf16 %v527, %v527
      %v592 = vpack.c.bf16 %v528, %v528
      %v593 = vpack.c.bf16 %v529, %v529
      %v594 = vpack.c.bf16 %v530, %v530
      %v595 = vpack.c.bf16 %v531, %v531
      %v596 = vpack.c.bf16 %v532, %v532
      %v597 = vpack.c.bf16 %v533, %v533
      %v598 = vpack.c.bf16 %v534, %v534
      %v599 = vpack.c.bf16 %v535, %v535
      %v600 = vpack.c.bf16 %v536, %v536
      %v601 = vpack.c.bf16 %v537, %v537
      %v602 = vpack.c.bf16 %v538, %v538
      %v603 = vpack.c.bf16 %v539, %v539
      %v604 = vpack.c.bf16 %v540, %v540
      %v605 = vpack.c.bf16 %v541, %v541
      %v606 = vpack.c.bf16 %v542, %v542
      %v607 = vpack.c.bf16 %v543, %v543
      %v608 = vpack.c.bf16 %v544, %v544
      %v609 = vpack.c.bf16 %v545, %v545
      %v610 = vpack.c.bf16 %v546, %v546
      %v611 = vpack.c.bf16 %v547, %v547
      %v612 = vpack.c.bf16 %v548, %v548
      %v613 = vpack.c.bf16 %v549, %v549
      %v614 = vpack.c.bf16 %v550, %v550
      %v615 = vpack.c.bf16 %v551, %v551
      %v616 = vpack.c.bf16 %v552, %v552
      %v617 = vpack.c.bf16 %v553, %v553
      %v618 = vpack.c.bf16 %v554, %v554
      %v619 = vpack.c.bf16 %v555, %v555
      %v620 = vpack.c.bf16 %v556, %v556
      %v621 = vpack.c.bf16 %v557, %v557
      %v622 = vpack.c.bf16 %v558, %v558
      %v623 = vpack.c.bf16 %v559, %v559
      %v624 = vpack.c.bf16 %v560, %v560
      %v625 = vpack.c.bf16 %v561, %v561
      %v626 = vpack.c.bf16 %v562, %v562
      %v627 = vpack.c.bf16 %v563, %v563
      %v628 = vpack.c.bf16 %v564, %v564
      %v629 = vpack.c.bf16 %v565, %v565
      %v630 = vpack.c.bf16 %v566, %v566
      %v631 = vpack.c.bf16 %v567, %v567
      %v632 = vpack.c.bf16 %v568, %v568
      %v633 = vpack.c.bf16 %v569, %v569
      %v634 = vpack.c.bf16 %v570, %v570
      %v635 = vpack.c.bf16 %v571, %v571
      %v636 = vpack.c.bf16 %v572, %v572
      %v637 = vpack.c.bf16 %v573, %v573
      %v638 = vpack.c.bf16 %v574, %v574
      %v639 = vpack.c.bf16 %v575, %v575
      %v640 = vpack.c.bf16 %v576, %v576
      %641 = vst [vmem:[%s226] sm:$0xf] %v577
      %642 = vst [vmem:[%s226 + $0x4] sm:$0xf] %v578
      %643 = vst [vmem:[%s226 + $0x8] sm:$0xf] %v579
      %644 = vst [vmem:[%s226 + $0xc] sm:$0xf] %v580
      %645 = vst [vmem:[%s226 + $0x10] sm:$0xf] %v581
      %646 = vst [vmem:[%s226 + $0x14] sm:$0xf] %v582
      %647 = vst [vmem:[%s226 + $0x18] sm:$0xf] %v583
      %648 = vst [vmem:[%s226 + $0x1c] sm:$0xf] %v584
      %649 = vst [vmem:[%s226 + $0x20] sm:$0xf] %v585
      %650 = vst [vmem:[%s226 + $0x24] sm:$0xf] %v586
      %651 = vst [vmem:[%s226 + $0x28] sm:$0xf] %v587
      %652 = vst [vmem:[%s226 + $0x2c] sm:$0xf] %v588
      %653 = vst [vmem:[%s226 + $0x30] sm:$0xf] %v589
      %654 = vst [vmem:[%s226 + $0x34] sm:$0xf] %v590
      %655 = vst [vmem:[%s226 + $0x38] sm:$0xf] %v591
      %656 = vst [vmem:[%s226 + $0x3c] sm:$0xf] %v592
      %657 = vst [vmem:[%s226 + $0x40] sm:$0xf] %v593
      %658 = vst [vmem:[%s226 + $0x44] sm:$0xf] %v594
      %659 = vst [vmem:[%s226 + $0x48] sm:$0xf] %v595
      %660 = vst [vmem:[%s226 + $0x4c] sm:$0xf] %v596
      %661 = vst [vmem:[%s226 + $0x50] sm:$0xf] %v597
      %662 = vst [vmem:[%s226 + $0x54] sm:$0xf] %v598
      %663 = vst [vmem:[%s226 + $0x58] sm:$0xf] %v599
      %664 = vst [vmem:[%s226 + $0x5c] sm:$0xf] %v600
      %665 = vst [vmem:[%s226 + $0x60] sm:$0xf] %v601
      %666 = vst [vmem:[%s226 + $0x64] sm:$0xf] %v602
      %667 = vst [vmem:[%s226 + $0x68] sm:$0xf] %v603
      %668 = vst [vmem:[%s226 + $0x6c] sm:$0xf] %v604
      %669 = vst [vmem:[%s226 + $0x70] sm:$0xf] %v605
      %670 = vst [vmem:[%s226 + $0x74] sm:$0xf] %v606
      %671 = vst [vmem:[%s226 + $0x78] sm:$0xf] %v607
      %672 = vst [vmem:[%s226 + $0x7c] sm:$0xf] %v608
      %673 = vst [vmem:[%s226 + $0x80] sm:$0xf] %v609
      %674 = vst [vmem:[%s226 + $0x84] sm:$0xf] %v610
      %675 = vst [vmem:[%s226 + $0x88] sm:$0xf] %v611
      %676 = vst [vmem:[%s226 + $0x8c] sm:$0xf] %v612
      %677 = vst [vmem:[%s226 + $0x90] sm:$0xf] %v613
      %678 = vst [vmem:[%s226 + $0x94] sm:$0xf] %v614
      %679 = vst [vmem:[%s226 + $0x98] sm:$0xf] %v615
      %680 = vst [vmem:[%s226 + $0x9c] sm:$0xf] %v616
      %681 = vst [vmem:[%s226 + $0xa0] sm:$0xf] %v617
      %682 = vst [vmem:[%s226 + $0xa4] sm:$0xf] %v618
      %683 = vst [vmem:[%s226 + $0xa8] sm:$0xf] %v619
      %684 = vst [vmem:[%s226 + $0xac] sm:$0xf] %v620
      %685 = vst [vmem:[%s226 + $0xb0] sm:$0xf] %v621
      %686 = vst [vmem:[%s226 + $0xb4] sm:$0xf] %v622
      %687 = vst [vmem:[%s226 + $0xb8] sm:$0xf] %v623
      %688 = vst [vmem:[%s226 + $0xbc] sm:$0xf] %v624
      %689 = vst [vmem:[%s226 + $0xc0] sm:$0xf] %v625
      %690 = vst [vmem:[%s226 + $0xc4] sm:$0xf] %v626
      %691 = vst [vmem:[%s226 + $0xc8] sm:$0xf] %v627
      %692 = vst [vmem:[%s226 + $0xcc] sm:$0xf] %v628
      %693 = vst [vmem:[%s226 + $0xd0] sm:$0xf] %v629
      %694 = vst [vmem:[%s226 + $0xd4] sm:$0xf] %v630
      %695 = vst [vmem:[%s226 + $0xd8] sm:$0xf] %v631
      %696 = vst [vmem:[%s226 + $0xdc] sm:$0xf] %v632
      %697 = vst [vmem:[%s226 + $0xe0] sm:$0xf] %v633
      %698 = vst [vmem:[%s226 + $0xe4] sm:$0xf] %v634
      %699 = vst [vmem:[%s226 + $0xe8] sm:$0xf] %v635
      %700 = vst [vmem:[%s226 + $0xec] sm:$0xf] %v636
      %701 = vst [vmem:[%s226 + $0xf0] sm:$0xf] %v637
      %702 = vst [vmem:[%s226 + $0xf4] sm:$0xf] %v638
      %703 = vst [vmem:[%s226 + $0xf8] sm:$0xf] %v639
      %704 = vst [vmem:[%s226 + $0xfc] sm:$0xf] %v640
      %s705 = smul.u32 64, %s16
      %p706 = scmp.lt.s32.totalorder %s705, 127
      %s707 = scalar_select %p706, %s705, 127
      %s708 = smul.addr %s707, 4
      %s709 = scalar_lea.vmem %s5, %s708
      // Predicated region
      $region41: #{resblock_forward.5} parent=39 // pred_check
        %p710 = pneg %p144
      $region42: #{resblock_forward.5} parent=39 // pred_check_branch
        %712 = sbr.rel (%p710) target = $region44
      $region43: #{resblock_forward.5} parent=39 // pred_region
        %s713 = smul.u32 64, %s16
      $region44: #{resblock_forward.5} parent=39 // pred_fallthru
        _
    $region40: #{resblock_forward.5} parent=5 // pred_fallthru
      _
    %p714 = scmp.le.s32.totalorder 2, %s11
    // Predicated region
    $region45: #{resblock_forward.5} parent=5 // pred_check
      %p715 = pneg %p714
    $region46: #{resblock_forward.5} parent=5 // pred_check_branch
      %717 = sbr.rel (%p715) target = $region48
    $region47: #{resblock_forward.5} parent=5 // pred_region
      %s718 = ssub.s32 %s11, 2
      // Predicated region
      $region49: #{resblock_forward.5} parent=47 // pred_check
        %p719 = pneg %p150
      $region50: #{resblock_forward.5} parent=47 // pred_check_branch
        %721 = sbr.rel (%p719) target = $region52
      $region51: #{resblock_forward.5} parent=47 // pred_region
        %s722 = smul.u32 64, %s17
        %p723 = scmp.lt.s32.totalorder %s722, 127
        %s724 = scalar_select %p723, %s722, 127
        %s725 = smul.addr %s724, 4
        %s726 = scalar_lea.vmem %s5, %s725
      $region52: #{resblock_forward.5} parent=47 // pred_fallthru
        _
    $region48: #{resblock_forward.5} parent=5 // pred_fallthru
      _
  $region6: #{resblock_forward.5} parent=0 // loop_footer
    %s15 = sadd.s32 1, %s11
  $region7: #{resblock_forward.5} parent=0 // loop_footer_branch
    %10 = sbr.rel target = $region3
  $region8: #{resblock_forward.5} parent=0 // loop_exit
    _

// kernel: resblock_forward.4
$region0: #{resblock_forward.4}
  #allocation0 [shape = 'u32[]', space=smem, size = 0x4, offset = 0x4, fixed_abs, tag = 'smem constant byte address 0x4 - core index']
  #allocation1 [shape = 'u32[72,128]{1,0:T(1,128)}', space=vmem, size = 0x9000, scoped, tag = 'internal scratch']
  %s0 = inlined_call_operand.vmem [shape: bf16[1024,128], index: 0, kind: input, shape index: {}]
  %s1 = inlined_call_operand.vmem [shape: bf16[128,128], index: 1, kind: input, shape index: {}]
  %s2 = inlined_call_operand.vmem [shape: f32[1024,128], index: 2, kind: output, shape index: {0}]
  %s3 = inlined_call_operand.vmem [shape: f32[1,128], index: 3, kind: output, shape index: {1}]
  %s4 = inlined_call_operand.vmem [shape: f32[1,128], index: 4, kind: output, shape index: {2}]
  %5 = xla_tuple %s2, %s3, %s4
  %s6 = sld [smem:[#allocation0]]
  $region61: #{resblock_forward.4} parent=0
    _
  %s8 = ssub.s32 1, %s6
  %s9 = scalar_select 0, %s8, %s6
  loop: start=0, step=1, limit=4
  $region2: #{resblock_forward.4} parent=0 // loop_pre_header
    _
  $region3: #{resblock_forward.4} parent=0 // loop_header
    %s11 = sphi 0, %s15
    %p12 = scmp.ge.s32.totalorder %s11, 4
    %s21 = sphi 0, %s23
    %s24 = sphi 0, %s21
    %s25 = sphi 0, %s24
    %s41 = sphi 0, %s25
    %s45 = sphi 0, %s45
    %s47 = sphi 0, %s45
    %s48 = sphi 0, %s47
    %s62 = sphi 0, %s48
    %s68 = sphi 0, %s70
    %s71 = sphi 0, %s68
    %s72 = sphi 0, %s71
    %s88 = sphi 0, %s72
    %s92 = sphi 0, %s92
    %s94 = sphi 0, %s92
    %s95 = sphi 0, %s94
    %s109 = sphi 0, %s95
    %s113 = sphi 0, %s113
    %s115 = sphi 0, %s113
    %s116 = sphi 0, %s115
    %s130 = sphi 0, %s116
  $region4: #{resblock_forward.4} parent=0 // loop_header_branch
    %14 = sbr.rel (%p12) target = $region8
  $region5: #{resblock_forward.4} parent=0 // loop_body
    %s16 = ssub.s32 %s11, 1
    %s17 = ssub.s32 %s11, 2
    %s18 = sadd.s32 %s11, 1
    %s19 = ssub.s32 %s11, %s18
    %p20 = scmp.eq.s32.totalorder %s19, 0
    %s22 = sadd.s32 %s21, 1
    %s23 = scalar_select %p20, %s21, %s22
    %p26 = pneg %p20
    %p27 = scmp.eq.s32.totalorder %s11, 1
    %p28 = por %p26, %p27
    %p29 = scmp.ne.s32.totalorder %s21, %s24
    %p30 = scmp.eq.s32.totalorder %s11, 0
    %p31 = por %p29, %p30
    %p32 = scmp.ne.s32.totalorder %s21, %s24
    %p33 = scmp.eq.s32.totalorder %s16, 1
    %p34 = por %p32, %p33
    %p35 = scmp.ne.s32.totalorder %s24, %s25
    %p36 = scmp.eq.s32.totalorder %s16, 0
    %p37 = por %p35, %p36
    %p38 = scmp.ne.s32.totalorder %s24, %s25
    %p39 = scmp.eq.s32.totalorder %s17, 1
    %p40 = por %p38, %p39
    %p42 = scmp.ne.s32.totalorder %s25, %s41
    %p43 = scmp.eq.s32.totalorder %s17, 0
    %p44 = por %p42, %p43
    %s46 = sadd.s32 %s45, 1
    %p49 = scmp.eq.s32.totalorder %s11, 1
    %p50 = scmp.ne.s32.totalorder %s45, %s47
    %p51 = scmp.eq.s32.totalorder %s11, 0
    %p52 = por %p50, %p51
    %p53 = scmp.ne.s32.totalorder %s45, %s47
    %p54 = scmp.eq.s32.totalorder %s16, 1
    %p55 = por %p53, %p54
    %p56 = scmp.ne.s32.totalorder %s47, %s48
    %p57 = scmp.eq.s32.totalorder %s16, 0
    %p58 = por %p56, %p57
    %p59 = scmp.ne.s32.totalorder %s47, %s48
    %p60 = scmp.eq.s32.totalorder %s17, 1
    %p61 = por %p59, %p60
    %p63 = scmp.ne.s32.totalorder %s48, %s62
    %p64 = scmp.eq.s32.totalorder %s17, 0
    %p65 = por %p63, %p64
    %s66 = ssub.s32 %s11, %s18
    %p67 = scmp.eq.s32.totalorder %s66, 0
    %s69 = sadd.s32 %s68, 1
    %s70 = scalar_select %p67, %s68, %s69
    %p73 = pneg %p67
    %p74 = scmp.eq.s32.totalorder %s11, 1
    %p75 = por %p73, %p74
    %p76 = scmp.ne.s32.totalorder %s68, %s71
    %p77 = scmp.eq.s32.totalorder %s11, 0
    %p78 = por %p76, %p77
    %p79 = scmp.ne.s32.totalorder %s68, %s71
    %p80 = scmp.eq.s32.totalorder %s16, 1
    %p81 = por %p79, %p80
    %p82 = scmp.ne.s32.totalorder %s71, %s72
    %p83 = scmp.eq.s32.totalorder %s16, 0
    %p84 = por %p82, %p83
    %p85 = scmp.ne.s32.totalorder %s71, %s72
    %p86 = scmp.eq.s32.totalorder %s17, 1
    %p87 = por %p85, %p86
    %p89 = scmp.ne.s32.totalorder %s72, %s88
    %p90 = scmp.eq.s32.totalorder %s17, 0
    %p91 = por %p89, %p90
    %s93 = sadd.s32 %s92, 1
    %p96 = scmp.eq.s32.totalorder %s11, 1
    %p97 = scmp.ne.s32.totalorder %s92, %s94
    %p98 = scmp.eq.s32.totalorder %s11, 0
    %p99 = por %p97, %p98
    %p100 = scmp.ne.s32.totalorder %s92, %s94
    %p101 = scmp.eq.s32.totalorder %s16, 1
    %p102 = por %p100, %p101
    %p103 = scmp.ne.s32.totalorder %s94, %s95
    %p104 = scmp.eq.s32.totalorder %s16, 0
    %p105 = por %p103, %p104
    %p106 = scmp.ne.s32.totalorder %s94, %s95
    %p107 = scmp.eq.s32.totalorder %s17, 1
    %p108 = por %p106, %p107
    %p110 = scmp.ne.s32.totalorder %s95, %s109
    %p111 = scmp.eq.s32.totalorder %s17, 0
    %p112 = por %p110, %p111
    %s114 = sadd.s32 %s113, 1
    %p117 = scmp.eq.s32.totalorder %s11, 1
    %p118 = scmp.ne.s32.totalorder %s113, %s115
    %p119 = scmp.eq.s32.totalorder %s11, 0
    %p120 = por %p118, %p119
    %p121 = scmp.ne.s32.totalorder %s113, %s115
    %p122 = scmp.eq.s32.totalorder %s16, 1
    %p123 = por %p121, %p122
    %p124 = scmp.ne.s32.totalorder %s115, %s116
    %p125 = scmp.eq.s32.totalorder %s16, 0
    %p126 = por %p124, %p125
    %p127 = scmp.ne.s32.totalorder %s115, %s116
    %p128 = scmp.eq.s32.totalorder %s17, 1
    %p129 = por %p127, %p128
    %p131 = scmp.ne.s32.totalorder %s116, %s130
    %p132 = scmp.eq.s32.totalorder %s17, 0
    %p133 = por %p131, %p132
    %p134 = scmp.le.s32.totalorder 1, %s11
    %p135 = scmp.lt.s32.totalorder %s11, 3
    %p136 = pnand %p134, %p135
    %p137 = pneg %p136
    // Predicated region
    $region9: #{resblock_forward.4} parent=5 // pred_check
      _
    $region10: #{resblock_forward.4} parent=5 // pred_check_branch
      %139 = sbr.rel (%p136) target = $region12
    $region11: #{resblock_forward.4} parent=5 // pred_region
      %s140 = ssub.s32 %s11, 1
      // Predicated region
      $region13: #{resblock_forward.4} parent=11 // pred_check
        %p141 = pneg %p58
      $region14: #{resblock_forward.4} parent=11 // pred_check_branch
        %143 = sbr.rel (%p141) target = $region16
      $region15: #{resblock_forward.4} parent=11 // pred_region
        _
      $region16: #{resblock_forward.4} parent=11 // pred_fallthru
        _
    $region12: #{resblock_forward.4} parent=5 // pred_fallthru
      _
    %p144 = scmp.lt.s32.totalorder %s11, 2
    // Predicated region
    $region17: #{resblock_forward.4} parent=5 // pred_check
      %p145 = pneg %p144
    $region18: #{resblock_forward.4} parent=5 // pred_check_branch
      %147 = sbr.rel (%p145) target = $region20
    $region19: #{resblock_forward.4} parent=5 // pred_region
      // Predicated region
      $region21: #{resblock_forward.4} parent=19 // pred_check
        %p148 = pneg %p31
      $region22: #{resblock_forward.4} parent=19 // pred_check_branch
        %150 = sbr.rel (%p148) target = $region24
      $region23: #{resblock_forward.4} parent=19 // pred_region
        %s151 = smul.u32 64, %s11
        %p152 = scmp.lt.s32.totalorder %s151, 127
        %s153 = scalar_select %p152, %s151, 127
        %s154 = smul.addr %s153, 4
        %s155 = scalar_lea.vmem %s0, %s154
        %s156 = smul.u32 64, %s11
      $region24: #{resblock_forward.4} parent=19 // pred_fallthru
        _
    $region20: #{resblock_forward.4} parent=5 // pred_fallthru
      _
    %p157 = scmp.le.s32.totalorder 1, %s11
    %p158 = scmp.lt.s32.totalorder %s11, 3
    %p159 = pnand %p157, %p158
    %p160 = pneg %p159
    // Predicated region
    $region25: #{resblock_forward.4} parent=5 // pred_check
      _
    $region26: #{resblock_forward.4} parent=5 // pred_check_branch
      %162 = sbr.rel (%p159) target = $region28
    $region27: #{resblock_forward.4} parent=5 // pred_region
      %s163 = ssub.s32 %s11, 1
      %s164 = smul.u32 64, %s16
      %p165 = scmp.lt.s32.totalorder %s164, 127
      %s166 = scalar_select %p165, %s164, 127
      %s167 = smul.addr %s166, 4
      %s168 = scalar_lea.vmem %s0, %s167
      %p169 = pneg %p37
      %p170 = pneg %p34
      %p171 = pneg %p58
      %p172 = pneg %p55
      %p173 = pneg %p84
      %p174 = pneg %p81
      %s175 = smul.u32 64, %s16
      %p176 = scmp.lt.s32.totalorder %s175, 127
      %s177 = scalar_select %p176, %s175, 127
      %s178 = smul.addr %s177, 8
      %s179 = scalar_lea.vmem %s2, %s178
      %p180 = pneg %p105
      %p181 = pneg %p102
      %p182 = pneg %p126
      %p183 = pneg %p123
      %s184 = smul.u32 64, %s16
      %p185 = scmp.lt.s32.totalorder %s184, 127
      %s186 = scalar_select %p185, %s184, 127
      %s187 = smul.addr %s186, 4
      %s188 = scalar_lea.vmem %s0, %s187
      %s189 = smul.u32 64, %s16
      %s190 = smul.u32 64, %s16
      %p191 = scmp.lt.s32.totalorder %s190, 127
      %s192 = scalar_select %p191, %s190, 127
      %s193 = smul.addr %s192, 8
      %s194 = scalar_lea.vmem %s2, %s193
      %s195 = smul.u32 64, %s16
      %v196 = vld [vmem:[%s188] sm:$0xf]
      %v197 = vld [vmem:[%s188 + $0x4] sm:$0xf]
      %v198 = vld [vmem:[%s188 + $0x8] sm:$0xf]
      %v199 = vld [vmem:[%s188 + $0xc] sm:$0xf]
      %v200 = vld [vmem:[%s188 + $0x10] sm:$0xf]
      %v201 = vld [vmem:[%s188 + $0x14] sm:$0xf]
      %v202 = vld [vmem:[%s188 + $0x18] sm:$0xf]
      %v203 = vld [vmem:[%s188 + $0x1c] sm:$0xf]
      %v204 = vld [vmem:[%s188 + $0x20] sm:$0xf]
      %v205 = vld [vmem:[%s188 + $0x24] sm:$0xf]
      %v206 = vld [vmem:[%s188 + $0x28] sm:$0xf]
      %v207 = vld [vmem:[%s188 + $0x2c] sm:$0xf]
      %v208 = vld [vmem:[%s188 + $0x30] sm:$0xf]
      %v209 = vld [vmem:[%s188 + $0x34] sm:$0xf]
      %v210 = vld [vmem:[%s188 + $0x38] sm:$0xf]
      %v211 = vld [vmem:[%s188 + $0x3c] sm:$0xf]
      %v212 = vld [vmem:[%s188 + $0x40] sm:$0xf]
      %v213 = vld [vmem:[%s188 + $0x44] sm:$0xf]
      %v214 = vld [vmem:[%s188 + $0x48] sm:$0xf]
      %v215 = vld [vmem:[%s188 + $0x4c] sm:$0xf]
      %v216 = vld [vmem:[%s188 + $0x50] sm:$0xf]
      %v217 = vld [vmem:[%s188 + $0x54] sm:$0xf]
      %v218 = vld [vmem:[%s188 + $0x58] sm:$0xf]
      %v219 = vld [vmem:[%s188 + $0x5c] sm:$0xf]
      %v220 = vld [vmem:[%s188 + $0x60] sm:$0xf]
      %v221 = vld [vmem:[%s188 + $0x64] sm:$0xf]
      %v222 = vld [vmem:[%s188 + $0x68] sm:$0xf]
      %v223 = vld [vmem:[%s188 + $0x6c] sm:$0xf]
      %v224 = vld [vmem:[%s188 + $0x70] sm:$0xf]
      %v225 = vld [vmem:[%s188 + $0x74] sm:$0xf]
      %v226 = vld [vmem:[%s188 + $0x78] sm:$0xf]
      %v227 = vld [vmem:[%s188 + $0x7c] sm:$0xf]
      %v228 = vld [vmem:[%s188 + $0x80] sm:$0xf]
      %v229 = vld [vmem:[%s188 + $0x84] sm:$0xf]
      %v230 = vld [vmem:[%s188 + $0x88] sm:$0xf]
      %v231 = vld [vmem:[%s188 + $0x8c] sm:$0xf]
      %v232 = vld [vmem:[%s188 + $0x90] sm:$0xf]
      %v233 = vld [vmem:[%s188 + $0x94] sm:$0xf]
      %v234 = vld [vmem:[%s188 + $0x98] sm:$0xf]
      %v235 = vld [vmem:[%s188 + $0x9c] sm:$0xf]
      %v236 = vld [vmem:[%s188 + $0xa0] sm:$0xf]
      %v237 = vld [vmem:[%s188 + $0xa4] sm:$0xf]
      %v238 = vld [vmem:[%s188 + $0xa8] sm:$0xf]
      %v239 = vld [vmem:[%s188 + $0xac] sm:$0xf]
      %v240 = vld [vmem:[%s188 + $0xb0] sm:$0xf]
      %v241 = vld [vmem:[%s188 + $0xb4] sm:$0xf]
      %v242 = vld [vmem:[%s188 + $0xb8] sm:$0xf]
      %v243 = vld [vmem:[%s188 + $0xbc] sm:$0xf]
      %v244 = vld [vmem:[%s188 + $0xc0] sm:$0xf]
      %v245 = vld [vmem:[%s188 + $0xc4] sm:$0xf]
      %v246 = vld [vmem:[%s188 + $0xc8] sm:$0xf]
      %v247 = vld [vmem:[%s188 + $0xcc] sm:$0xf]
      %v248 = vld [vmem:[%s188 + $0xd0] sm:$0xf]
      %v249 = vld [vmem:[%s188 + $0xd4] sm:$0xf]
      %v250 = vld [vmem:[%s188 + $0xd8] sm:$0xf]
      %v251 = vld [vmem:[%s188 + $0xdc] sm:$0xf]
      %v252 = vld [vmem:[%s188 + $0xe0] sm:$0xf]
      %v253 = vld [vmem:[%s188 + $0xe4] sm:$0xf]
      %v254 = vld [vmem:[%s188 + $0xe8] sm:$0xf]
      %v255 = vld [vmem:[%s188 + $0xec] sm:$0xf]
      %v256 = vld [vmem:[%s188 + $0xf0] sm:$0xf]
      %v257 = vld [vmem:[%s188 + $0xf4] sm:$0xf]
      %v258 = vld [vmem:[%s188 + $0xf8] sm:$0xf]
      %v259 = vld [vmem:[%s188 + $0xfc] sm:$0xf]
      %v260 = vld [vmem:[%s1] sm:$0xf]
      %v261 = vld [vmem:[%s1 + $0x4] sm:$0xf]
      %v262 = vld [vmem:[%s1 + $0x8] sm:$0xf]
      %v263 = vld [vmem:[%s1 + $0xc] sm:$0xf]
      %v264 = vld [vmem:[%s1 + $0x10] sm:$0xf]
      %v265 = vld [vmem:[%s1 + $0x14] sm:$0xf]
      %v266 = vld [vmem:[%s1 + $0x18] sm:$0xf]
      %v267 = vld [vmem:[%s1 + $0x1c] sm:$0xf]
      %v268 = vld [vmem:[%s1 + $0x20] sm:$0xf]
      %v269 = vld [vmem:[%s1 + $0x24] sm:$0xf]
      %v270 = vld [vmem:[%s1 + $0x28] sm:$0xf]
      %v271 = vld [vmem:[%s1 + $0x2c] sm:$0xf]
      %v272 = vld [vmem:[%s1 + $0x30] sm:$0xf]
      %v273 = vld [vmem:[%s1 + $0x34] sm:$0xf]
      %v274 = vld [vmem:[%s1 + $0x38] sm:$0xf]
      %v275 = vld [vmem:[%s1 + $0x3c] sm:$0xf]
      %v340 = vunpack.c.l.b16 %v196
      %v341 = vunpack.c.l.b16 %v197
      %v342 = vunpack.c.l.b16 %v198
      %v343 = vunpack.c.l.b16 %v199
      %v344 = vunpack.c.l.b16 %v200
      %v345 = vunpack.c.l.b16 %v201
      %v346 = vunpack.c.l.b16 %v202
      %v347 = vunpack.c.l.b16 %v203
      %v348 = vunpack.c.l.b16 %v204
      %v349 = vunpack.c.l.b16 %v205
      %v350 = vunpack.c.l.b16 %v206
      %v351 = vunpack.c.l.b16 %v207
      %v352 = vunpack.c.l.b16 %v208
      %v353 = vunpack.c.l.b16 %v209
      %v354 = vunpack.c.l.b16 %v210
      %v355 = vunpack.c.l.b16 %v211
      %v356 = vunpack.c.l.b16 %v212
      %v357 = vunpack.c.l.b16 %v213
      %v358 = vunpack.c.l.b16 %v214
      %v359 = vunpack.c.l.b16 %v215
      %v360 = vunpack.c.l.b16 %v216
      %v361 = vunpack.c.l.b16 %v217
      %v362 = vunpack.c.l.b16 %v218
      %v363 = vunpack.c.l.b16 %v219
      %v364 = vunpack.c.l.b16 %v220
      %v365 = vunpack.c.l.b16 %v221
      %v366 = vunpack.c.l.b16 %v222
      %v367 = vunpack.c.l.b16 %v223
      %v368 = vunpack.c.l.b16 %v224
      %v369 = vunpack.c.l.b16 %v225
      %v370 = vunpack.c.l.b16 %v226
      %v371 = vunpack.c.l.b16 %v227
      %v372 = vunpack.c.l.b16 %v228
      %v373 = vunpack.c.l.b16 %v229
      %v374 = vunpack.c.l.b16 %v230
      %v375 = vunpack.c.l.b16 %v231
      %v376 = vunpack.c.l.b16 %v232
      %v377 = vunpack.c.l.b16 %v233
      %v378 = vunpack.c.l.b16 %v234
      %v379 = vunpack.c.l.b16 %v235
      %v380 = vunpack.c.l.b16 %v236
      %v381 = vunpack.c.l.b16 %v237
      %v382 = vunpack.c.l.b16 %v238
      %v383 = vunpack.c.l.b16 %v239
      %v384 = vunpack.c.l.b16 %v240
      %v385 = vunpack.c.l.b16 %v241
      %v386 = vunpack.c.l.b16 %v242
      %v387 = vunpack.c.l.b16 %v243
      %v388 = vunpack.c.l.b16 %v244
      %v389 = vunpack.c.l.b16 %v245
      %v390 = vunpack.c.l.b16 %v246
      %v391 = vunpack.c.l.b16 %v247
      %v392 = vunpack.c.l.b16 %v248
      %v393 = vunpack.c.l.b16 %v249
      %v394 = vunpack.c.l.b16 %v250
      %v395 = vunpack.c.l.b16 %v251
      %v396 = vunpack.c.l.b16 %v252
      %v397 = vunpack.c.l.b16 %v253
      %v398 = vunpack.c.l.b16 %v254
      %v399 = vunpack.c.l.b16 %v255
      %v400 = vunpack.c.l.b16 %v256
      %v401 = vunpack.c.l.b16 %v257
      %v402 = vunpack.c.l.b16 %v258
      %v403 = vunpack.c.l.b16 %v259
      %v404 = vpack.c.b16 %v341, %v340
      %v405 = vpack.c.b16 %v343, %v342
      %v406 = vpack.c.b16 %v345, %v344
      %v407 = vpack.c.b16 %v347, %v346
      %v408 = vpack.c.b16 %v349, %v348
      %v409 = vpack.c.b16 %v351, %v350
      %v410 = vpack.c.b16 %v353, %v352
      %v411 = vpack.c.b16 %v355, %v354
      %v412 = vpack.c.b16 %v357, %v356
      %v413 = vpack.c.b16 %v359, %v358
      %v414 = vpack.c.b16 %v361, %v360
      %v415 = vpack.c.b16 %v363, %v362
      %v416 = vpack.c.b16 %v365, %v364
      %v417 = vpack.c.b16 %v367, %v366
      %v418 = vpack.c.b16 %v369, %v368
      %v419 = vpack.c.b16 %v371, %v370
      %v420 = vpack.c.b16 %v373, %v372
      %v421 = vpack.c.b16 %v375, %v374
      %v422 = vpack.c.b16 %v377, %v376
      %v423 = vpack.c.b16 %v379, %v378
      %v424 = vpack.c.b16 %v381, %v380
      %v425 = vpack.c.b16 %v383, %v382
      %v426 = vpack.c.b16 %v385, %v384
      %v427 = vpack.c.b16 %v387, %v386
      %v428 = vpack.c.b16 %v389, %v388
      %v429 = vpack.c.b16 %v391, %v390
      %v430 = vpack.c.b16 %v393, %v392
      %v431 = vpack.c.b16 %v395, %v394
      %v432 = vpack.c.b16 %v397, %v396
      %v433 = vpack.c.b16 %v399, %v398
      %v434 = vpack.c.b16 %v401, %v400
      %v435 = vpack.c.b16 %v403, %v402
      %v484 = vunpack.c.l.b16 %v260
      %v485 = vunpack.c.l.b16 %v261
      %v486 = vunpack.c.l.b16 %v262
      %v487 = vunpack.c.l.b16 %v263
      %v488 = vunpack.c.l.b16 %v264
      %v489 = vunpack.c.l.b16 %v265
      %v490 = vunpack.c.l.b16 %v266
      %v491 = vunpack.c.l.b16 %v267
      %v492 = vunpack.c.l.b16 %v268
      %v493 = vunpack.c.l.b16 %v269
      %v494 = vunpack.c.l.b16 %v270
      %v495 = vunpack.c.l.b16 %v271
      %v496 = vunpack.c.l.b16 %v272
      %v497 = vunpack.c.l.b16 %v273
      %v498 = vunpack.c.l.b16 %v274
      %v499 = vunpack.c.l.b16 %v275
      %v500 = vpack.c.b16 %v485, %v484
      %v501 = vpack.c.b16 %v487, %v486
      %v502 = vpack.c.b16 %v489, %v488
      %v503 = vpack.c.b16 %v491, %v490
      %v504 = vpack.c.b16 %v493, %v492
      %v505 = vpack.c.b16 %v495, %v494
      %v506 = vpack.c.b16 %v497, %v496
      %v507 = vpack.c.b16 %v499, %v498
      %516 = vmatpush.bf16.msra.mxu0 %v507
      %517 = vmatpush.bf16.msra.mxu0 %v506
      %518 = vmatpush.bf16.msra.mxu0 %v505
      %519 = vmatpush.bf16.msra.mxu0 %v504
      %520 = vmatpush.bf16.msra.mxu0 %v503
      %521 = vmatpush.bf16.msra.mxu0 %v502
      %522 = vmatpush.bf16.msra.mxu0 %v501
      %523 = vmatpush.bf16.msra.mxu0 %v500
      %524 = vmatmul.bf16.gmra.mxu0 %v404
      %v525 = vpop.f32.mrf.mxu0
      %v526 = vadd.f32 0.0, %v525
      %v527 = vpop.f32.mrf.mxu0
      %v528 = vadd.f32 0.0, %v527
      %529 = vmatmul.bf16.gmra.mxu0 %v405
      %v530 = vpop.f32.mrf.mxu0
      %v531 = vadd.f32 0.0, %v530
      %v532 = vpop.f32.mrf.mxu0
      %v533 = vadd.f32 0.0, %v532
      %534 = vmatmul.bf16.gmra.mxu0 %v406
      %v535 = vpop.f32.mrf.mxu0
      %v536 = vadd.f32 0.0, %v535
      %v537 = vpop.f32.mrf.mxu0
      %v538 = vadd.f32 0.0, %v537
      %539 = vmatmul.bf16.gmra.mxu0 %v407
      %v540 = vpop.f32.mrf.mxu0
      %v541 = vadd.f32 0.0, %v540
      %v542 = vpop.f32.mrf.mxu0
      %v543 = vadd.f32 0.0, %v542
      %544 = vmatmul.bf16.gmra.mxu0 %v408
      %v545 = vpop.f32.mrf.mxu0
      %v546 = vadd.f32 0.0, %v545
      %v547 = vpop.f32.mrf.mxu0
      %v548 = vadd.f32 0.0, %v547
      %549 = vmatmul.bf16.gmra.mxu0 %v409
      %v550 = vpop.f32.mrf.mxu0
      %v551 = vadd.f32 0.0, %v550
      %v552 = vpop.f32.mrf.mxu0
      %v553 = vadd.f32 0.0, %v552
      %554 = vmatmul.bf16.gmra.mxu0 %v410
      %v555 = vpop.f32.mrf.mxu0
      %v556 = vadd.f32 0.0, %v555
      %v557 = vpop.f32.mrf.mxu0
      %v558 = vadd.f32 0.0, %v557
      %559 = vmatmul.bf16.gmra.mxu0 %v411
      %v560 = vpop.f32.mrf.mxu0
      %v561 = vadd.f32 0.0, %v560
      %v562 = vpop.f32.mrf.mxu0
      %v563 = vadd.f32 0.0, %v562
      %564 = vmatmul.bf16.gmra.mxu0 %v412
      %v565 = vpop.f32.mrf.mxu0
      %v566 = vadd.f32 0.0, %v565
      %v567 = vpop.f32.mrf.mxu0
      %v568 = vadd.f32 0.0, %v567
      %569 = vmatmul.bf16.gmra.mxu0 %v413
      %v570 = vpop.f32.mrf.mxu0
      %v571 = vadd.f32 0.0, %v570
      %v572 = vpop.f32.mrf.mxu0
      %v573 = vadd.f32 0.0, %v572
      %574 = vmatmul.bf16.gmra.mxu0 %v414
      %v575 = vpop.f32.mrf.mxu0
      %v576 = vadd.f32 0.0, %v575
      %v577 = vpop.f32.mrf.mxu0
      %v578 = vadd.f32 0.0, %v577
      %579 = vmatmul.bf16.gmra.mxu0 %v415
      %v580 = vpop.f32.mrf.mxu0
      %v581 = vadd.f32 0.0, %v580
      %v582 = vpop.f32.mrf.mxu0
      %v583 = vadd.f32 0.0, %v582
      %584 = vmatmul.bf16.gmra.mxu0 %v416
      %v585 = vpop.f32.mrf.mxu0
      %v586 = vadd.f32 0.0, %v585
      %v587 = vpop.f32.mrf.mxu0
      %v588 = vadd.f32 0.0, %v587
      %589 = vmatmul.bf16.gmra.mxu0 %v417
      %v590 = vpop.f32.mrf.mxu0
      %v591 = vadd.f32 0.0, %v590
      %v592 = vpop.f32.mrf.mxu0
      %v593 = vadd.f32 0.0, %v592
      %594 = vmatmul.bf16.gmra.mxu0 %v418
      %v595 = vpop.f32.mrf.mxu0
      %v596 = vadd.f32 0.0, %v595
      %v597 = vpop.f32.mrf.mxu0
      %v598 = vadd.f32 0.0, %v597
      %599 = vmatmul.bf16.gmra.mxu0 %v419
      %v600 = vpop.f32.mrf.mxu0
      %v601 = vadd.f32 0.0, %v600
      %v602 = vpop.f32.mrf.mxu0
      %v603 = vadd.f32 0.0, %v602
      %604 = vmatmul.bf16.gmra.mxu0 %v420
      %v605 = vpop.f32.mrf.mxu0
      %v606 = vadd.f32 0.0, %v605
      %v607 = vpop.f32.mrf.mxu0
      %v608 = vadd.f32 0.0, %v607
      %609 = vmatmul.bf16.gmra.mxu0 %v421
      %v610 = vpop.f32.mrf.mxu0
      %v611 = vadd.f32 0.0, %v610
      %v612 = vpop.f32.mrf.mxu0
      %v613 = vadd.f32 0.0, %v612
      %614 = vmatmul.bf16.gmra.mxu0 %v422
      %v615 = vpop.f32.mrf.mxu0
      %v616 = vadd.f32 0.0, %v615
      %v617 = vpop.f32.mrf.mxu0
      %v618 = vadd.f32 0.0, %v617
      %619 = vmatmul.bf16.gmra.mxu0 %v423
      %v620 = vpop.f32.mrf.mxu0
      %v621 = vadd.f32 0.0, %v620
      %v622 = vpop.f32.mrf.mxu0
      %v623 = vadd.f32 0.0, %v622
      %624 = vmatmul.bf16.gmra.mxu0 %v424
      %v625 = vpop.f32.mrf.mxu0
      %v626 = vadd.f32 0.0, %v625
      %v627 = vpop.f32.mrf.mxu0
      %v628 = vadd.f32 0.0, %v627
      %629 = vmatmul.bf16.gmra.mxu0 %v425
      %v630 = vpop.f32.mrf.mxu0
      %v631 = vadd.f32 0.0, %v630
      %v632 = vpop.f32.mrf.mxu0
      %v633 = vadd.f32 0.0, %v632
      %634 = vmatmul.bf16.gmra.mxu0 %v426
      %v635 = vpop.f32.mrf.mxu0
      %v636 = vadd.f32 0.0, %v635
      %v637 = vpop.f32.mrf.mxu0
      %v638 = vadd.f32 0.0, %v637
      %639 = vmatmul.bf16.gmra.mxu0 %v427
      %v640 = vpop.f32.mrf.mxu0
      %v641 = vadd.f32 0.0, %v640
      %v642 = vpop.f32.mrf.mxu0
      %v643 = vadd.f32 0.0, %v642
      %644 = vmatmul.bf16.gmra.mxu0 %v428
      %v645 = vpop.f32.mrf.mxu0
      %v646 = vadd.f32 0.0, %v645
      %v647 = vpop.f32.mrf.mxu0
      %v648 = vadd.f32 0.0, %v647
      %649 = vmatmul.bf16.gmra.mxu0 %v429
      %v650 = vpop.f32.mrf.mxu0
      %v651 = vadd.f32 0.0, %v650
      %v652 = vpop.f32.mrf.mxu0
      %v653 = vadd.f32 0.0, %v652
      %654 = vmatmul.bf16.gmra.mxu0 %v430
      %v655 = vpop.f32.mrf.mxu0
      %v656 = vadd.f32 0.0, %v655
      %v657 = vpop.f32.mrf.mxu0
      %v658 = vadd.f32 0.0, %v657
      %659 = vmatmul.bf16.gmra.mxu0 %v431
      %v660 = vpop.f32.mrf.mxu0
      %v661 = vadd.f32 0.0, %v660
      %v662 = vpop.f32.mrf.mxu0
      %v663 = vadd.f32 0.0, %v662
      %664 = vmatmul.bf16.gmra.mxu0 %v432
      %v665 = vpop.f32.mrf.mxu0
      %v666 = vadd.f32 0.0, %v665
      %v667 = vpop.f32.mrf.mxu0
      %v668 = vadd.f32 0.0, %v667
      %669 = vmatmul.bf16.gmra.mxu0 %v433
      %v670 = vpop.f32.mrf.mxu0
      %v671 = vadd.f32 0.0, %v670
      %v672 = vpop.f32.mrf.mxu0
      %v673 = vadd.f32 0.0, %v672
      %674 = vmatmul.bf16.gmra.mxu0 %v434
      %v675 = vpop.f32.mrf.mxu0
      %v676 = vadd.f32 0.0, %v675
      %v677 = vpop.f32.mrf.mxu0
      %v678 = vadd.f32 0.0, %v677
      %679 = vmatmul.bf16.gmra.mxu0 %v435
      %v680 = vpop.f32.mrf.mxu0
      %v681 = vadd.f32 0.0, %v680
      %v682 = vpop.f32.mrf.mxu0
      %v683 = vadd.f32 0.0, %v682
      %684 = vdwg.mxu0
      %685 = vst [vmem:[%s194] sm:$0xff] %v526
      %686 = vst [vmem:[%s194 + $0x8] sm:$0xff] %v528
      %687 = vst [vmem:[%s194 + $0x10] sm:$0xff] %v531
      %688 = vst [vmem:[%s194 + $0x18] sm:$0xff] %v533
      %689 = vst [vmem:[%s194 + $0x20] sm:$0xff] %v536
      %690 = vst [vmem:[%s194 + $0x28] sm:$0xff] %v538
      %691 = vst [vmem:[%s194 + $0x30] sm:$0xff] %v541
      %692 = vst [vmem:[%s194 + $0x38] sm:$0xff] %v543
      %693 = vst [vmem:[%s194 + $0x40] sm:$0xff] %v546
      %694 = vst [vmem:[%s194 + $0x48] sm:$0xff] %v548
      %695 = vst [vmem:[%s194 + $0x50] sm:$0xff] %v551
      %696 = vst [vmem:[%s194 + $0x58] sm:$0xff] %v553
      %697 = vst [vmem:[%s194 + $0x60] sm:$0xff] %v556
      %698 = vst [vmem:[%s194 + $0x68] sm:$0xff] %v558
      %699 = vst [vmem:[%s194 + $0x70] sm:$0xff] %v561
      %700 = vst [vmem:[%s194 + $0x78] sm:$0xff] %v563
      %701 = vst [vmem:[%s194 + $0x80] sm:$0xff] %v566
      %702 = vst [vmem:[%s194 + $0x88] sm:$0xff] %v568
      %703 = vst [vmem:[%s194 + $0x90] sm:$0xff] %v571
      %704 = vst [vmem:[%s194 + $0x98] sm:$0xff] %v573
      %705 = vst [vmem:[%s194 + $0xa0] sm:$0xff] %v576
      %706 = vst [vmem:[%s194 + $0xa8] sm:$0xff] %v578
      %707 = vst [vmem:[%s194 + $0xb0] sm:$0xff] %v581
      %708 = vst [vmem:[%s194 + $0xb8] sm:$0xff] %v583
      %709 = vst [vmem:[%s194 + $0xc0] sm:$0xff] %v586
      %710 = vst [vmem:[%s194 + $0xc8] sm:$0xff] %v588
      %711 = vst [vmem:[%s194 + $0xd0] sm:$0xff] %v591
      %712 = vst [vmem:[%s194 + $0xd8] sm:$0xff] %v593
      %713 = vst [vmem:[%s194 + $0xe0] sm:$0xff] %v596
      %714 = vst [vmem:[%s194 + $0xe8] sm:$0xff] %v598
      %715 = vst [vmem:[%s194 + $0xf0] sm:$0xff] %v601
      %716 = vst [vmem:[%s194 + $0xf8] sm:$0xff] %v603
      %717 = vst [vmem:[%s194 + $0x100] sm:$0xff] %v606
      %718 = vst [vmem:[%s194 + $0x108] sm:$0xff] %v608
      %719 = vst [vmem:[%s194 + $0x110] sm:$0xff] %v611
      %720 = vst [vmem:[%s194 + $0x118] sm:$0xff] %v613
      %721 = vst [vmem:[%s194 + $0x120] sm:$0xff] %v616
      %722 = vst [vmem:[%s194 + $0x128] sm:$0xff] %v618
      %723 = vst [vmem:[%s194 + $0x130] sm:$0xff] %v621
      %724 = vst [vmem:[%s194 + $0x138] sm:$0xff] %v623
      %725 = vst [vmem:[%s194 + $0x140] sm:$0xff] %v626
      %726 = vst [vmem:[%s194 + $0x148] sm:$0xff] %v628
      %727 = vst [vmem:[%s194 + $0x150] sm:$0xff] %v631
      %728 = vst [vmem:[%s194 + $0x158] sm:$0xff] %v633
      %729 = vst [vmem:[%s194 + $0x160] sm:$0xff] %v636
      %730 = vst [vmem:[%s194 + $0x168] sm:$0xff] %v638
      %731 = vst [vmem:[%s194 + $0x170] sm:$0xff] %v641
      %732 = vst [vmem:[%s194 + $0x178] sm:$0xff] %v643
      %733 = vst [vmem:[%s194 + $0x180] sm:$0xff] %v646
      %734 = vst [vmem:[%s194 + $0x188] sm:$0xff] %v648
      %735 = vst [vmem:[%s194 + $0x190] sm:$0xff] %v651
      %736 = vst [vmem:[%s194 + $0x198] sm:$0xff] %v653
      %737 = vst [vmem:[%s194 + $0x1a0] sm:$0xff] %v656
      %738 = vst [vmem:[%s194 + $0x1a8] sm:$0xff] %v658
      %739 = vst [vmem:[%s194 + $0x1b0] sm:$0xff] %v661
      %740 = vst [vmem:[%s194 + $0x1b8] sm:$0xff] %v663
      %741 = vst [vmem:[%s194 + $0x1c0] sm:$0xff] %v666
      %742 = vst [vmem:[%s194 + $0x1c8] sm:$0xff] %v668
      %743 = vst [vmem:[%s194 + $0x1d0] sm:$0xff] %v671
      %744 = vst [vmem:[%s194 + $0x1d8] sm:$0xff] %v673
      %745 = vst [vmem:[%s194 + $0x1e0] sm:$0xff] %v676
      %746 = vst [vmem:[%s194 + $0x1e8] sm:$0xff] %v678
      %747 = vst [vmem:[%s194 + $0x1f0] sm:$0xff] %v681
      %748 = vst [vmem:[%s194 + $0x1f8] sm:$0xff] %v683
      %p749 = scmp.eq.s32.totalorder %s16, 0
      // Predicated region
      $region29: #{resblock_forward.4} parent=27 // pred_check
        %p750 = pneg %p749
      $region30: #{resblock_forward.4} parent=27 // pred_check_branch
        %752 = sbr.rel (%p750) target = $region32
      $region31: #{resblock_forward.4} parent=27 // pred_region
        %753 = vst [vmem:[%s3] sm:$0x1] 0.0
        %754 = vst [vmem:[%s4] sm:$0x1] 0.0
      $region32: #{resblock_forward.4} parent=27 // pred_fallthru
        _
      %v755 = vld [vmem:[%s3] sm:$0x1]
      %v756 = vadd.f32 %v526, %v528
      %v757 = vadd.f32 %v756, %v531
      %v758 = vadd.f32 %v757, %v533
      %v759 = vadd.f32 %v758, %v536
      %v760 = vadd.f32 %v759, %v538
      %v761 = vadd.f32 %v760, %v541
      %v762 = vadd.f32 %v761, %v543
      %v763 = vadd.f32 %v762, %v546
      %v764 = vadd.f32 %v763, %v548
      %v765 = vadd.f32 %v764, %v551
      %v766 = vadd.f32 %v765, %v553
      %v767 = vadd.f32 %v766, %v556
      %v768 = vadd.f32 %v767, %v558
      %v769 = vadd.f32 %v768, %v561
      %v770 = vadd.f32 %v769, %v563
      %v771 = vadd.f32 %v770, %v566
      %v772 = vadd.f32 %v771, %v568
      %v773 = vadd.f32 %v772, %v571
      %v774 = vadd.f32 %v773, %v573
      %v775 = vadd.f32 %v774, %v576
      %v776 = vadd.f32 %v775, %v578
      %v777 = vadd.f32 %v776, %v581
      %v778 = vadd.f32 %v777, %v583
      %v779 = vadd.f32 %v778, %v586
      %v780 = vadd.f32 %v779, %v588
      %v781 = vadd.f32 %v780, %v591
      %v782 = vadd.f32 %v781, %v593
      %v783 = vadd.f32 %v782, %v596
      %v784 = vadd.f32 %v783, %v598
      %v785 = vadd.f32 %v784, %v601
      %v786 = vadd.f32 %v785, %v603
      %v787 = vadd.f32 %v786, %v606
      %v788 = vadd.f32 %v787, %v608
      %v789 = vadd.f32 %v788, %v611
      %v790 = vadd.f32 %v789, %v613
      %v791 = vadd.f32 %v790, %v616
      %v792 = vadd.f32 %v791, %v618
      %v793 = vadd.f32 %v792, %v621
      %v794 = vadd.f32 %v793, %v623
      %v795 = vadd.f32 %v794, %v626
      %v796 = vadd.f32 %v795, %v628
      %v797 = vadd.f32 %v796, %v631
      %v798 = vadd.f32 %v797, %v633
      %v799 = vadd.f32 %v798, %v636
      %v800 = vadd.f32 %v799, %v638
      %v801 = vadd.f32 %v800, %v641
      %v802 = vadd.f32 %v801, %v643
      %v803 = vadd.f32 %v802, %v646
      %v804 = vadd.f32 %v803, %v648
      %v805 = vadd.f32 %v804, %v651
      %v806 = vadd.f32 %v805, %v653
      %v807 = vadd.f32 %v806, %v656
      %v808 = vadd.f32 %v807, %v658
      %v809 = vadd.f32 %v808, %v661
      %v810 = vadd.f32 %v809, %v663
      %v811 = vadd.f32 %v810, %v666
      %v812 = vadd.f32 %v811, %v668
      %v813 = vadd.f32 %v812, %v671
      %v814 = vadd.f32 %v813, %v673
      %v815 = vadd.f32 %v814, %v676
      %v816 = vadd.f32 %v815, %v678
      %v817 = vadd.f32 %v816, %v681
      %v818 = vadd.f32 %v817, %v683
      %v819 = vrot.slane %v818, 4
      %v820 = vadd.f32 %v818, %v819
      %v821 = vrot.slane %v820, 2
      %v822 = vadd.f32 %v820, %v821
      %v823 = vrot.slane %v822, 1
      %v824 = vadd.f32 %v822, %v823
      %v825 = vadd.f32 %v755, %v824
      %826 = vst [vmem:[%s3] sm:$0x1] %v825
      %v827 = vld [vmem:[%s4] sm:$0x1]
      %v828 = vmul.f32 %v526, %v526
      %v829 = vmul.f32 %v528, %v528
      %v830 = vmul.f32 %v531, %v531
      %v831 = vmul.f32 %v533, %v533
      %v832 = vmul.f32 %v536, %v536
      %v833 = vmul.f32 %v538, %v538
      %v834 = vmul.f32 %v541, %v541
      %v835 = vmul.f32 %v543, %v543
      %v836 = vmul.f32 %v546, %v546
      %v837 = vmul.f32 %v548, %v548
      %v838 = vmul.f32 %v551, %v551
      %v839 = vmul.f32 %v553, %v553
      %v840 = vmul.f32 %v556, %v556
      %v841 = vmul.f32 %v558, %v558
      %v842 = vmul.f32 %v561, %v561
      %v843 = vmul.f32 %v563, %v563
      %v844 = vmul.f32 %v566, %v566
      %v845 = vmul.f32 %v568, %v568
      %v846 = vmul.f32 %v571, %v571
      %v847 = vmul.f32 %v573, %v573
      %v848 = vmul.f32 %v576, %v576
      %v849 = vmul.f32 %v578, %v578
      %v850 = vmul.f32 %v581, %v581
      %v851 = vmul.f32 %v583, %v583
      %v852 = vmul.f32 %v586, %v586
      %v853 = vmul.f32 %v588, %v588
      %v854 = vmul.f32 %v591, %v591
      %v855 = vmul.f32 %v593, %v593
      %v856 = vmul.f32 %v596, %v596
      %v857 = vmul.f32 %v598, %v598
      %v858 = vmul.f32 %v601, %v601
      %v859 = vmul.f32 %v603, %v603
      %v860 = vmul.f32 %v606, %v606
      %v861 = vmul.f32 %v608, %v608
      %v862 = vmul.f32 %v611, %v611
      %v863 = vmul.f32 %v613, %v613
      %v864 = vmul.f32 %v616, %v616
      %v865 = vmul.f32 %v618, %v618
      %v866 = vmul.f32 %v621, %v621
      %v867 = vmul.f32 %v623, %v623
      %v868 = vmul.f32 %v626, %v626
      %v869 = vmul.f32 %v628, %v628
      %v870 = vmul.f32 %v631, %v631
      %v871 = vmul.f32 %v633, %v633
      %v872 = vmul.f32 %v636, %v636
      %v873 = vmul.f32 %v638, %v638
      %v874 = vmul.f32 %v641, %v641
      %v875 = vmul.f32 %v643, %v643
      %v876 = vmul.f32 %v646, %v646
      %v877 = vmul.f32 %v648, %v648
      %v878 = vmul.f32 %v651, %v651
      %v879 = vmul.f32 %v653, %v653
      %v880 = vmul.f32 %v656, %v656
      %v881 = vmul.f32 %v658, %v658
      %v882 = vmul.f32 %v661, %v661
      %v883 = vmul.f32 %v663, %v663
      %v884 = vmul.f32 %v666, %v666
      %v885 = vmul.f32 %v668, %v668
      %v886 = vmul.f32 %v671, %v671
      %v887 = vmul.f32 %v673, %v673
      %v888 = vmul.f32 %v676, %v676
      %v889 = vmul.f32 %v678, %v678
      %v890 = vmul.f32 %v681, %v681
      %v891 = vmul.f32 %v683, %v683
      %v892 = vadd.f32 %v828, %v829
      %v893 = vadd.f32 %v892, %v830
      %v894 = vadd.f32 %v893, %v831
      %v895 = vadd.f32 %v894, %v832
      %v896 = vadd.f32 %v895, %v833
      %v897 = vadd.f32 %v896, %v834
      %v898 = vadd.f32 %v897, %v835
      %v899 = vadd.f32 %v898, %v836
      %v900 = vadd.f32 %v899, %v837
      %v901 = vadd.f32 %v900, %v838
      %v902 = vadd.f32 %v901, %v839
      %v903 = vadd.f32 %v902, %v840
      %v904 = vadd.f32 %v903, %v841
      %v905 = vadd.f32 %v904, %v842
      %v906 = vadd.f32 %v905, %v843
      %v907 = vadd.f32 %v906, %v844
      %v908 = vadd.f32 %v907, %v845
      %v909 = vadd.f32 %v908, %v846
      %v910 = vadd.f32 %v909, %v847
      %v911 = vadd.f32 %v910, %v848
      %v912 = vadd.f32 %v911, %v849
      %v913 = vadd.f32 %v912, %v850
      %v914 = vadd.f32 %v913, %v851
      %v915 = vadd.f32 %v914, %v852
      %v916 = vadd.f32 %v915, %v853
      %v917 = vadd.f32 %v916, %v854
      %v918 = vadd.f32 %v917, %v855
      %v919 = vadd.f32 %v918, %v856
      %v920 = vadd.f32 %v919, %v857
      %v921 = vadd.f32 %v920, %v858
      %v922 = vadd.f32 %v921, %v859
      %v923 = vadd.f32 %v922, %v860
      %v924 = vadd.f32 %v923, %v861
      %v925 = vadd.f32 %v924, %v862
      %v926 = vadd.f32 %v925, %v863
      %v927 = vadd.f32 %v926, %v864
      %v928 = vadd.f32 %v927, %v865
      %v929 = vadd.f32 %v928, %v866
      %v930 = vadd.f32 %v929, %v867
      %v931 = vadd.f32 %v930, %v868
      %v932 = vadd.f32 %v931, %v869
      %v933 = vadd.f32 %v932, %v870
      %v934 = vadd.f32 %v933, %v871
      %v935 = vadd.f32 %v934, %v872
      %v936 = vadd.f32 %v935, %v873
      %v937 = vadd.f32 %v936, %v874
      %v938 = vadd.f32 %v937, %v875
      %v939 = vadd.f32 %v938, %v876
      %v940 = vadd.f32 %v939, %v877
      %v941 = vadd.f32 %v940, %v878
      %v942 = vadd.f32 %v941, %v879
      %v943 = vadd.f32 %v942, %v880
      %v944 = vadd.f32 %v943, %v881
      %v945 = vadd.f32 %v944, %v882
      %v946 = vadd.f32 %v945, %v883
      %v947 = vadd.f32 %v946, %v884
      %v948 = vadd.f32 %v947, %v885
      %v949 = vadd.f32 %v948, %v886
      %v950 = vadd.f32 %v949, %v887
      %v951 = vadd.f32 %v950, %v888
      %v952 = vadd.f32 %v951, %v889
      %v953 = vadd.f32 %v952, %v890
      %v954 = vadd.f32 %v953, %v891
      %v955 = vrot.slane %v954, 4
      %v956 = vadd.f32 %v954, %v955
      %v957 = vrot.slane %v956, 2
      %v958 = vadd.f32 %v956, %v957
      %v959 = vrot.slane %v958, 1
      %v960 = vadd.f32 %v958, %v959
      %v961 = vadd.f32 %v827, %v960
      %962 = vst [vmem:[%s4] sm:$0x1] %v961
      %s963 = smul.u32 64, %s16
      %p964 = scmp.lt.s32.totalorder %s963, 127
      %s965 = scalar_select %p964, %s963, 127
      %s966 = smul.addr %s965, 8
      %s967 = scalar_lea.vmem %s2, %s966
      // Predicated region
      $region33: #{resblock_forward.4} parent=27 // pred_check
        %p968 = pneg %p81
      $region34: #{resblock_forward.4} parent=27 // pred_check_branch
        %970 = sbr.rel (%p968) target = $region36
      $region35: #{resblock_forward.4} parent=27 // pred_region
        %s971 = smul.u32 64, %s16
      $region36: #{resblock_forward.4} parent=27 // pred_fallthru
        _
      // Predicated region
      $region37: #{resblock_forward.4} parent=27 // pred_check
        %p972 = pneg %p102
      $region38: #{resblock_forward.4} parent=27 // pred_check_branch
        %974 = sbr.rel (%p972) target = $region40
      $region39: #{resblock_forward.4} parent=27 // pred_region
        _
      $region40: #{resblock_forward.4} parent=27 // pred_fallthru
        _
      // Predicated region
      $region41: #{resblock_forward.4} parent=27 // pred_check
        %p975 = pneg %p123
      $region42: #{resblock_forward.4} parent=27 // pred_check_branch
        %977 = sbr.rel (%p975) target = $region44
      $region43: #{resblock_forward.4} parent=27 // pred_region
        _
      $region44: #{resblock_forward.4} parent=27 // pred_fallthru
        _
      // Predicated region
      $region45: #{resblock_forward.4} parent=27 // pred_check
        %p978 = pneg %p102
      $region46: #{resblock_forward.4} parent=27 // pred_check_branch
        %980 = sbr.rel (%p978) target = $region48
      $region47: #{resblock_forward.4} parent=27 // pred_region
        _
      $region48: #{resblock_forward.4} parent=27 // pred_fallthru
        _
      // Predicated region
      $region49: #{resblock_forward.4} parent=27 // pred_check
        %p981 = pneg %p123
      $region50: #{resblock_forward.4} parent=27 // pred_check_branch
        %983 = sbr.rel (%p981) target = $region52
      $region51: #{resblock_forward.4} parent=27 // pred_region
        _
      $region52: #{resblock_forward.4} parent=27 // pred_fallthru
        _
    $region28: #{resblock_forward.4} parent=5 // pred_fallthru
      _
    %p984 = scmp.le.s32.totalorder 2, %s11
    // Predicated region
    $region53: #{resblock_forward.4} parent=5 // pred_check
      %p985 = pneg %p984
    $region54: #{resblock_forward.4} parent=5 // pred_check_branch
      %987 = sbr.rel (%p985) target = $region56
    $region55: #{resblock_forward.4} parent=5 // pred_region
      %s988 = ssub.s32 %s11, 2
      // Predicated region
      $region57: #{resblock_forward.4} parent=55 // pred_check
        %p989 = pneg %p87
      $region58: #{resblock_forward.4} parent=55 // pred_check_branch
        %991 = sbr.rel (%p989) target = $region60
      $region59: #{resblock_forward.4} parent=55 // pred_region
        %s992 = smul.u32 64, %s17
        %p993 = scmp.lt.s32.totalorder %s992, 127
        %s994 = scalar_select %p993, %s992, 127
        %s995 = smul.addr %s994, 8
        %s996 = scalar_lea.vmem %s2, %s995
      $region60: #{resblock_forward.4} parent=55 // pred_fallthru
        _
    $region56: #{resblock_forward.4} parent=5 // pred_fallthru
      _
  $region6: #{resblock_forward.4} parent=0 // loop_footer
    %s15 = sadd.s32 1, %s11
  $region7: #{resblock_forward.4} parent=0 // loop_footer_branch
    %10 = sbr.rel target = $region3
  $region8: #{resblock_forward.4} parent=0 // loop_exit
    _

// kernel: resblock_forward.6
$region0: #{resblock_forward.6}
  #allocation0 [shape = 'u32[]', space=smem, size = 0x4, offset = 0x4, fixed_abs, tag = 'smem constant byte address 0x4 - core index']
  #allocation1 [shape = 'u32[72,128]{1,0:T(1,128)}', space=vmem, size = 0x9000, scoped, tag = 'internal scratch']
  %s0 = inlined_call_operand.vmem [shape: bf16[1024,256], index: 0, kind: input, shape index: {}]
  %s1 = inlined_call_operand.vmem [shape: bf16[256,128], index: 1, kind: input, shape index: {}]
  %s2 = inlined_call_operand.vmem [shape: f32[1024,128], index: 2, kind: output, shape index: {0}]
  %s3 = inlined_call_operand.vmem [shape: f32[1,128], index: 3, kind: output, shape index: {1}]
  %s4 = inlined_call_operand.vmem [shape: f32[1,128], index: 4, kind: output, shape index: {2}]
  %5 = xla_tuple %s2, %s3, %s4
  %s6 = sld [smem:[#allocation0]]
  $region61: #{resblock_forward.6} parent=0
    _
  %s8 = ssub.s32 1, %s6
  %s9 = scalar_select 0, %s8, %s6
  loop: start=0, step=1, limit=4
  $region2: #{resblock_forward.6} parent=0 // loop_pre_header
    _
  $region3: #{resblock_forward.6} parent=0 // loop_header
    %s11 = sphi 0, %s15
    %p12 = scmp.ge.s32.totalorder %s11, 4
    %s21 = sphi 0, %s23
    %s24 = sphi 0, %s21
    %s25 = sphi 0, %s24
    %s41 = sphi 0, %s25
    %s45 = sphi 0, %s45
    %s47 = sphi 0, %s45
    %s48 = sphi 0, %s47
    %s62 = sphi 0, %s48
    %s68 = sphi 0, %s70
    %s71 = sphi 0, %s68
    %s72 = sphi 0, %s71
    %s88 = sphi 0, %s72
    %s92 = sphi 0, %s92
    %s94 = sphi 0, %s92
    %s95 = sphi 0, %s94
    %s109 = sphi 0, %s95
    %s113 = sphi 0, %s113
    %s115 = sphi 0, %s113
    %s116 = sphi 0, %s115
    %s130 = sphi 0, %s116
  $region4: #{resblock_forward.6} parent=0 // loop_header_branch
    %14 = sbr.rel (%p12) target = $region8
  $region5: #{resblock_forward.6} parent=0 // loop_body
    %s16 = ssub.s32 %s11, 1
    %s17 = ssub.s32 %s11, 2
    %s18 = sadd.s32 %s11, 1
    %s19 = ssub.s32 %s11, %s18
    %p20 = scmp.eq.s32.totalorder %s19, 0
    %s22 = sadd.s32 %s21, 1
    %s23 = scalar_select %p20, %s21, %s22
    %p26 = pneg %p20
    %p27 = scmp.eq.s32.totalorder %s11, 1
    %p28 = por %p26, %p27
    %p29 = scmp.ne.s32.totalorder %s21, %s24
    %p30 = scmp.eq.s32.totalorder %s11, 0
    %p31 = por %p29, %p30
    %p32 = scmp.ne.s32.totalorder %s21, %s24
    %p33 = scmp.eq.s32.totalorder %s16, 1
    %p34 = por %p32, %p33
    %p35 = scmp.ne.s32.totalorder %s24, %s25
    %p36 = scmp.eq.s32.totalorder %s16, 0
    %p37 = por %p35, %p36
    %p38 = scmp.ne.s32.totalorder %s24, %s25
    %p39 = scmp.eq.s32.totalorder %s17, 1
    %p40 = por %p38, %p39
    %p42 = scmp.ne.s32.totalorder %s25, %s41
    %p43 = scmp.eq.s32.totalorder %s17, 0
    %p44 = por %p42, %p43
    %s46 = sadd.s32 %s45, 1
    %p49 = scmp.eq.s32.totalorder %s11, 1
    %p50 = scmp.ne.s32.totalorder %s45, %s47
    %p51 = scmp.eq.s32.totalorder %s11, 0
    %p52 = por %p50, %p51
    %p53 = scmp.ne.s32.totalorder %s45, %s47
    %p54 = scmp.eq.s32.totalorder %s16, 1
    %p55 = por %p53, %p54
    %p56 = scmp.ne.s32.totalorder %s47, %s48
    %p57 = scmp.eq.s32.totalorder %s16, 0
    %p58 = por %p56, %p57
    %p59 = scmp.ne.s32.totalorder %s47, %s48
    %p60 = scmp.eq.s32.totalorder %s17, 1
    %p61 = por %p59, %p60
    %p63 = scmp.ne.s32.totalorder %s48, %s62
    %p64 = scmp.eq.s32.totalorder %s17, 0
    %p65 = por %p63, %p64
    %s66 = ssub.s32 %s11, %s18
    %p67 = scmp.eq.s32.totalorder %s66, 0
    %s69 = sadd.s32 %s68, 1
    %s70 = scalar_select %p67, %s68, %s69
    %p73 = pneg %p67
    %p74 = scmp.eq.s32.totalorder %s11, 1
    %p75 = por %p73, %p74
    %p76 = scmp.ne.s32.totalorder %s68, %s71
    %p77 = scmp.eq.s32.totalorder %s11, 0
    %p78 = por %p76, %p77
    %p79 = scmp.ne.s32.totalorder %s68, %s71
    %p80 = scmp.eq.s32.totalorder %s16, 1
    %p81 = por %p79, %p80
    %p82 = scmp.ne.s32.totalorder %s71, %s72
    %p83 = scmp.eq.s32.totalorder %s16, 0
    %p84 = por %p82, %p83
    %p85 = scmp.ne.s32.totalorder %s71, %s72
    %p86 = scmp.eq.s32.totalorder %s17, 1
    %p87 = por %p85, %p86
    %p89 = scmp.ne.s32.totalorder %s72, %s88
    %p90 = scmp.eq.s32.totalorder %s17, 0
    %p91 = por %p89, %p90
    %s93 = sadd.s32 %s92, 1
    %p96 = scmp.eq.s32.totalorder %s11, 1
    %p97 = scmp.ne.s32.totalorder %s92, %s94
    %p98 = scmp.eq.s32.totalorder %s11, 0
    %p99 = por %p97, %p98
    %p100 = scmp.ne.s32.totalorder %s92, %s94
    %p101 = scmp.eq.s32.totalorder %s16, 1
    %p102 = por %p100, %p101
    %p103 = scmp.ne.s32.totalorder %s94, %s95
    %p104 = scmp.eq.s32.totalorder %s16, 0
    %p105 = por %p103, %p104
    %p106 = scmp.ne.s32.totalorder %s94, %s95
    %p107 = scmp.eq.s32.totalorder %s17, 1
    %p108 = por %p106, %p107
    %p110 = scmp.ne.s32.totalorder %s95, %s109
    %p111 = scmp.eq.s32.totalorder %s17, 0
    %p112 = por %p110, %p111
    %s114 = sadd.s32 %s113, 1
    %p117 = scmp.eq.s32.totalorder %s11, 1
    %p118 = scmp.ne.s32.totalorder %s113, %s115
    %p119 = scmp.eq.s32.totalorder %s11, 0
    %p120 = por %p118, %p119
    %p121 = scmp.ne.s32.totalorder %s113, %s115
    %p122 = scmp.eq.s32.totalorder %s16, 1
    %p123 = por %p121, %p122
    %p124 = scmp.ne.s32.totalorder %s115, %s116
    %p125 = scmp.eq.s32.totalorder %s16, 0
    %p126 = por %p124, %p125
    %p127 = scmp.ne.s32.totalorder %s115, %s116
    %p128 = scmp.eq.s32.totalorder %s17, 1
    %p129 = por %p127, %p128
    %p131 = scmp.ne.s32.totalorder %s116, %s130
    %p132 = scmp.eq.s32.totalorder %s17, 0
    %p133 = por %p131, %p132
    %p134 = scmp.le.s32.totalorder 1, %s11
    %p135 = scmp.lt.s32.totalorder %s11, 3
    %p136 = pnand %p134, %p135
    %p137 = pneg %p136
    // Predicated region
    $region9: #{resblock_forward.6} parent=5 // pred_check
      _
    $region10: #{resblock_forward.6} parent=5 // pred_check_branch
      %139 = sbr.rel (%p136) target = $region12
    $region11: #{resblock_forward.6} parent=5 // pred_region
      %s140 = ssub.s32 %s11, 1
      // Predicated region
      $region13: #{resblock_forward.6} parent=11 // pred_check
        %p141 = pneg %p58
      $region14: #{resblock_forward.6} parent=11 // pred_check_branch
        %143 = sbr.rel (%p141) target = $region16
      $region15: #{resblock_forward.6} parent=11 // pred_region
        _
      $region16: #{resblock_forward.6} parent=11 // pred_fallthru
        _
    $region12: #{resblock_forward.6} parent=5 // pred_fallthru
      _
    %p144 = scmp.lt.s32.totalorder %s11, 2
    // Predicated region
    $region17: #{resblock_forward.6} parent=5 // pred_check
      %p145 = pneg %p144
    $region18: #{resblock_forward.6} parent=5 // pred_check_branch
      %147 = sbr.rel (%p145) target = $region20
    $region19: #{resblock_forward.6} parent=5 // pred_region
      // Predicated region
      $region21: #{resblock_forward.6} parent=19 // pred_check
        %p148 = pneg %p31
      $region22: #{resblock_forward.6} parent=19 // pred_check_branch
        %150 = sbr.rel (%p148) target = $region24
      $region23: #{resblock_forward.6} parent=19 // pred_region
        %s151 = smul.u32 64, %s11
        %p152 = scmp.lt.s32.totalorder %s151, 127
        %s153 = scalar_select %p152, %s151, 127
        %s154 = smul.addr %s153, 2
        %s155 = smul.addr %s154, 4
        %s156 = scalar_lea.vmem %s0, %s155
        %s157 = smul.u32 64, %s11
      $region24: #{resblock_forward.6} parent=19 // pred_fallthru
        _
    $region20: #{resblock_forward.6} parent=5 // pred_fallthru
      _
    %p158 = scmp.le.s32.totalorder 1, %s11
    %p159 = scmp.lt.s32.totalorder %s11, 3
    %p160 = pnand %p158, %p159
    %p161 = pneg %p160
    // Predicated region
    $region25: #{resblock_forward.6} parent=5 // pred_check
      _
    $region26: #{resblock_forward.6} parent=5 // pred_check_branch
      %163 = sbr.rel (%p160) target = $region28
    $region27: #{resblock_forward.6} parent=5 // pred_region
      %s164 = ssub.s32 %s11, 1
      %s165 = smul.u32 64, %s16
      %p166 = scmp.lt.s32.totalorder %s165, 127
      %s167 = scalar_select %p166, %s165, 127
      %s168 = smul.addr %s167, 2
      %s169 = smul.addr %s168, 4
      %s170 = scalar_lea.vmem %s0, %s169
      %p171 = pneg %p37
      %p172 = pneg %p34
      %p173 = pneg %p58
      %p174 = pneg %p55
      %p175 = pneg %p84
      %p176 = pneg %p81
      %s177 = smul.u32 64, %s16
      %p178 = scmp.lt.s32.totalorder %s177, 127
      %s179 = scalar_select %p178, %s177, 127
      %s180 = smul.addr %s179, 8
      %s181 = scalar_lea.vmem %s2, %s180
      %p182 = pneg %p105
      %p183 = pneg %p102
      %p184 = pneg %p126
      %p185 = pneg %p123
      %s186 = smul.u32 64, %s16
      %p187 = scmp.lt.s32.totalorder %s186, 127
      %s188 = scalar_select %p187, %s186, 127
      %s189 = smul.addr %s188, 2
      %s190 = smul.addr %s189, 4
      %s191 = scalar_lea.vmem %s0, %s190
      %s192 = smul.u32 64, %s16
      %s193 = smul.u32 64, %s16
      %p194 = scmp.lt.s32.totalorder %s193, 127
      %s195 = scalar_select %p194, %s193, 127
      %s196 = smul.addr %s195, 8
      %s197 = scalar_lea.vmem %s2, %s196
      %s198 = smul.u32 64, %s16
      %v199 = vld [vmem:[%s191] sm:$0xff]
      %v200 = vld [vmem:[%s191 + $0x8] sm:$0xff]
      %v201 = vld [vmem:[%s191 + $0x10] sm:$0xff]
      %v202 = vld [vmem:[%s191 + $0x18] sm:$0xff]
      %v203 = vld [vmem:[%s191 + $0x20] sm:$0xff]
      %v204 = vld [vmem:[%s191 + $0x28] sm:$0xff]
      %v205 = vld [vmem:[%s191 + $0x30] sm:$0xff]
      %v206 = vld [vmem:[%s191 + $0x38] sm:$0xff]
      %v207 = vld [vmem:[%s191 + $0x40] sm:$0xff]
      %v208 = vld [vmem:[%s191 + $0x48] sm:$0xff]
      %v209 = vld [vmem:[%s191 + $0x50] sm:$0xff]
      %v210 = vld [vmem:[%s191 + $0x58] sm:$0xff]
      %v211 = vld [vmem:[%s191 + $0x60] sm:$0xff]
      %v212 = vld [vmem:[%s191 + $0x68] sm:$0xff]
      %v213 = vld [vmem:[%s191 + $0x70] sm:$0xff]
      %v214 = vld [vmem:[%s191 + $0x78] sm:$0xff]
      %v215 = vld [vmem:[%s191 + $0x80] sm:$0xff]
      %v216 = vld [vmem:[%s191 + $0x88] sm:$0xff]
      %v217 = vld [vmem:[%s191 + $0x90] sm:$0xff]
      %v218 = vld [vmem:[%s191 + $0x98] sm:$0xff]
      %v219 = vld [vmem:[%s191 + $0xa0] sm:$0xff]
      %v220 = vld [vmem:[%s191 + $0xa8] sm:$0xff]
      %v221 = vld [vmem:[%s191 + $0xb0] sm:$0xff]
      %v222 = vld [vmem:[%s191 + $0xb8] sm:$0xff]
      %v223 = vld [vmem:[%s191 + $0xc0] sm:$0xff]
      %v224 = vld [vmem:[%s191 + $0xc8] sm:$0xff]
      %v225 = vld [vmem:[%s191 + $0xd0] sm:$0xff]
      %v226 = vld [vmem:[%s191 + $0xd8] sm:$0xff]
      %v227 = vld [vmem:[%s191 + $0xe0] sm:$0xff]
      %v228 = vld [vmem:[%s191 + $0xe8] sm:$0xff]
      %v229 = vld [vmem:[%s191 + $0xf0] sm:$0xff]
      %v230 = vld [vmem:[%s191 + $0xf8] sm:$0xff]
      %v231 = vld [vmem:[%s191 + $0x100] sm:$0xff]
      %v232 = vld [vmem:[%s191 + $0x108] sm:$0xff]
      %v233 = vld [vmem:[%s191 + $0x110] sm:$0xff]
      %v234 = vld [vmem:[%s191 + $0x118] sm:$0xff]
      %v235 = vld [vmem:[%s191 + $0x120] sm:$0xff]
      %v236 = vld [vmem:[%s191 + $0x128] sm:$0xff]
      %v237 = vld [vmem:[%s191 + $0x130] sm:$0xff]
      %v238 = vld [vmem:[%s191 + $0x138] sm:$0xff]
      %v239 = vld [vmem:[%s191 + $0x140] sm:$0xff]
      %v240 = vld [vmem:[%s191 + $0x148] sm:$0xff]
      %v241 = vld [vmem:[%s191 + $0x150] sm:$0xff]
      %v242 = vld [vmem:[%s191 + $0x158] sm:$0xff]
      %v243 = vld [vmem:[%s191 + $0x160] sm:$0xff]
      %v244 = vld [vmem:[%s191 + $0x168] sm:$0xff]
      %v245 = vld [vmem:[%s191 + $0x170] sm:$0xff]
      %v246 = vld [vmem:[%s191 + $0x178] sm:$0xff]
      %v247 = vld [vmem:[%s191 + $0x180] sm:$0xff]
      %v248 = vld [vmem:[%s191 + $0x188] sm:$0xff]
      %v249 = vld [vmem:[%s191 + $0x190] sm:$0xff]
      %v250 = vld [vmem:[%s191 + $0x198] sm:$0xff]
      %v251 = vld [vmem:[%s191 + $0x1a0] sm:$0xff]
      %v252 = vld [vmem:[%s191 + $0x1a8] sm:$0xff]
      %v253 = vld [vmem:[%s191 + $0x1b0] sm:$0xff]
      %v254 = vld [vmem:[%s191 + $0x1b8] sm:$0xff]
      %v255 = vld [vmem:[%s191 + $0x1c0] sm:$0xff]
      %v256 = vld [vmem:[%s191 + $0x1c8] sm:$0xff]
      %v257 = vld [vmem:[%s191 + $0x1d0] sm:$0xff]
      %v258 = vld [vmem:[%s191 + $0x1d8] sm:$0xff]
      %v259 = vld [vmem:[%s191 + $0x1e0] sm:$0xff]
      %v260 = vld [vmem:[%s191 + $0x1e8] sm:$0xff]
      %v261 = vld [vmem:[%s191 + $0x1f0] sm:$0xff]
      %v262 = vld [vmem:[%s191 + $0x1f8] sm:$0xff]
      %v263 = vld [vmem:[%s1] sm:$0xf]
      %v264 = vld [vmem:[%s1 + $0x4] sm:$0xf]
      %v265 = vld [vmem:[%s1 + $0x8] sm:$0xf]
      %v266 = vld [vmem:[%s1 + $0xc] sm:$0xf]
      %v267 = vld [vmem:[%s1 + $0x10] sm:$0xf]
      %v268 = vld [vmem:[%s1 + $0x14] sm:$0xf]
      %v269 = vld [vmem:[%s1 + $0x18] sm:$0xf]
      %v270 = vld [vmem:[%s1 + $0x1c] sm:$0xf]
      %v271 = vld [vmem:[%s1 + $0x20] sm:$0xf]
      %v272 = vld [vmem:[%s1 + $0x24] sm:$0xf]
      %v273 = vld [vmem:[%s1 + $0x28] sm:$0xf]
      %v274 = vld [vmem:[%s1 + $0x2c] sm:$0xf]
      %v275 = vld [vmem:[%s1 + $0x30] sm:$0xf]
      %v276 = vld [vmem:[%s1 + $0x34] sm:$0xf]
      %v277 = vld [vmem:[%s1 + $0x38] sm:$0xf]
      %v278 = vld [vmem:[%s1 + $0x3c] sm:$0xf]
      %v279 = vld [vmem:[%s1 + $0x40] sm:$0xf]
      %v280 = vld [vmem:[%s1 + $0x44] sm:$0xf]
      %v281 = vld [vmem:[%s1 + $0x48] sm:$0xf]
      %v282 = vld [vmem:[%s1 + $0x4c] sm:$0xf]
      %v283 = vld [vmem:[%s1 + $0x50] sm:$0xf]
      %v284 = vld [vmem:[%s1 + $0x54] sm:$0xf]
      %v285 = vld [vmem:[%s1 + $0x58] sm:$0xf]
      %v286 = vld [vmem:[%s1 + $0x5c] sm:$0xf]
      %v287 = vld [vmem:[%s1 + $0x60] sm:$0xf]
      %v288 = vld [vmem:[%s1 + $0x64] sm:$0xf]
      %v289 = vld [vmem:[%s1 + $0x68] sm:$0xf]
      %v290 = vld [vmem:[%s1 + $0x6c] sm:$0xf]
      %v291 = vld [vmem:[%s1 + $0x70] sm:$0xf]
      %v292 = vld [vmem:[%s1 + $0x74] sm:$0xf]
      %v293 = vld [vmem:[%s1 + $0x78] sm:$0xf]
      %v294 = vld [vmem:[%s1 + $0x7c] sm:$0xf]
      %v359 = vunpack.c.l.b16 %v199
      %v360 = vunpack.c.h.b16 %v199
      %v361 = vunpack.c.l.b16 %v200
      %v362 = vunpack.c.h.b16 %v200
      %v363 = vunpack.c.l.b16 %v201
      %v364 = vunpack.c.h.b16 %v201
      %v365 = vunpack.c.l.b16 %v202
      %v366 = vunpack.c.h.b16 %v202
      %v367 = vunpack.c.l.b16 %v203
      %v368 = vunpack.c.h.b16 %v203
      %v369 = vunpack.c.l.b16 %v204
      %v370 = vunpack.c.h.b16 %v204
      %v371 = vunpack.c.l.b16 %v205
      %v372 = vunpack.c.h.b16 %v205
      %v373 = vunpack.c.l.b16 %v206
      %v374 = vunpack.c.h.b16 %v206
      %v375 = vunpack.c.l.b16 %v207
      %v376 = vunpack.c.h.b16 %v207
      %v377 = vunpack.c.l.b16 %v208
      %v378 = vunpack.c.h.b16 %v208
      %v379 = vunpack.c.l.b16 %v209
      %v380 = vunpack.c.h.b16 %v209
      %v381 = vunpack.c.l.b16 %v210
      %v382 = vunpack.c.h.b16 %v210
      %v383 = vunpack.c.l.b16 %v211
      %v384 = vunpack.c.h.b16 %v211
      %v385 = vunpack.c.l.b16 %v212
      %v386 = vunpack.c.h.b16 %v212
      %v387 = vunpack.c.l.b16 %v213
      %v388 = vunpack.c.h.b16 %v213
      %v389 = vunpack.c.l.b16 %v214
      %v390 = vunpack.c.h.b16 %v214
      %v391 = vunpack.c.l.b16 %v215
      %v392 = vunpack.c.h.b16 %v215
      %v393 = vunpack.c.l.b16 %v216
      %v394 = vunpack.c.h.b16 %v216
      %v395 = vunpack.c.l.b16 %v217
      %v396 = vunpack.c.h.b16 %v217
      %v397 = vunpack.c.l.b16 %v218
      %v398 = vunpack.c.h.b16 %v218
      %v399 = vunpack.c.l.b16 %v219
      %v400 = vunpack.c.h.b16 %v219
      %v401 = vunpack.c.l.b16 %v220
      %v402 = vunpack.c.h.b16 %v220
      %v403 = vunpack.c.l.b16 %v221
      %v404 = vunpack.c.h.b16 %v221
      %v405 = vunpack.c.l.b16 %v222
      %v406 = vunpack.c.h.b16 %v222
      %v407 = vunpack.c.l.b16 %v223
      %v408 = vunpack.c.h.b16 %v223
      %v409 = vunpack.c.l.b16 %v224
      %v410 = vunpack.c.h.b16 %v224
      %v411 = vunpack.c.l.b16 %v225
      %v412 = vunpack.c.h.b16 %v225
      %v413 = vunpack.c.l.b16 %v226
      %v414 = vunpack.c.h.b16 %v226
      %v415 = vunpack.c.l.b16 %v227
      %v416 = vunpack.c.h.b16 %v227
      %v417 = vunpack.c.l.b16 %v228
      %v418 = vunpack.c.h.b16 %v228
      %v419 = vunpack.c.l.b16 %v229
      %v420 = vunpack.c.h.b16 %v229
      %v421 = vunpack.c.l.b16 %v230
      %v422 = vunpack.c.h.b16 %v230
      %v423 = vunpack.c.l.b16 %v231
      %v424 = vunpack.c.h.b16 %v231
      %v425 = vunpack.c.l.b16 %v232
      %v426 = vunpack.c.h.b16 %v232
      %v427 = vunpack.c.l.b16 %v233
      %v428 = vunpack.c.h.b16 %v233
      %v429 = vunpack.c.l.b16 %v234
      %v430 = vunpack.c.h.b16 %v234
      %v431 = vunpack.c.l.b16 %v235
      %v432 = vunpack.c.h.b16 %v235
      %v433 = vunpack.c.l.b16 %v236
      %v434 = vunpack.c.h.b16 %v236
      %v435 = vunpack.c.l.b16 %v237
      %v436 = vunpack.c.h.b16 %v237
      %v437 = vunpack.c.l.b16 %v238
      %v438 = vunpack.c.h.b16 %v238
      %v439 = vunpack.c.l.b16 %v239
      %v440 = vunpack.c.h.b16 %v239
      %v441 = vunpack.c.l.b16 %v240
      %v442 = vunpack.c.h.b16 %v240
      %v443 = vunpack.c.l.b16 %v241
      %v444 = vunpack.c.h.b16 %v241
      %v445 = vunpack.c.l.b16 %v242
      %v446 = vunpack.c.h.b16 %v242
      %v447 = vunpack.c.l.b16 %v243
      %v448 = vunpack.c.h.b16 %v243
      %v449 = vunpack.c.l.b16 %v244
      %v450 = vunpack.c.h.b16 %v244
      %v451 = vunpack.c.l.b16 %v245
      %v452 = vunpack.c.h.b16 %v245
      %v453 = vunpack.c.l.b16 %v246
      %v454 = vunpack.c.h.b16 %v246
      %v455 = vunpack.c.l.b16 %v247
      %v456 = vunpack.c.h.b16 %v247
      %v457 = vunpack.c.l.b16 %v248
      %v458 = vunpack.c.h.b16 %v248
      %v459 = vunpack.c.l.b16 %v249
      %v460 = vunpack.c.h.b16 %v249
      %v461 = vunpack.c.l.b16 %v250
      %v462 = vunpack.c.h.b16 %v250
      %v463 = vunpack.c.l.b16 %v251
      %v464 = vunpack.c.h.b16 %v251
      %v465 = vunpack.c.l.b16 %v252
      %v466 = vunpack.c.h.b16 %v252
      %v467 = vunpack.c.l.b16 %v253
      %v468 = vunpack.c.h.b16 %v253
      %v469 = vunpack.c.l.b16 %v254
      %v470 = vunpack.c.h.b16 %v254
      %v471 = vunpack.c.l.b16 %v255
      %v472 = vunpack.c.h.b16 %v255
      %v473 = vunpack.c.l.b16 %v256
      %v474 = vunpack.c.h.b16 %v256
      %v475 = vunpack.c.l.b16 %v257
      %v476 = vunpack.c.h.b16 %v257
      %v477 = vunpack.c.l.b16 %v258
      %v478 = vunpack.c.h.b16 %v258
      %v479 = vunpack.c.l.b16 %v259
      %v480 = vunpack.c.h.b16 %v259
      %v481 = vunpack.c.l.b16 %v260
      %v482 = vunpack.c.h.b16 %v260
      %v483 = vunpack.c.l.b16 %v261
      %v484 = vunpack.c.h.b16 %v261
      %v485 = vunpack.c.l.b16 %v262
      %v486 = vunpack.c.h.b16 %v262
      %v487 = vpack.c.b16 %v361, %v359
      %v488 = vpack.c.b16 %v362, %v360
      %v489 = vpack.c.b16 %v365, %v363
      %v490 = vpack.c.b16 %v366, %v364
      %v491 = vpack.c.b16 %v369, %v367
      %v492 = vpack.c.b16 %v370, %v368
      %v493 = vpack.c.b16 %v373, %v371
      %v494 = vpack.c.b16 %v374, %v372
      %v495 = vpack.c.b16 %v377, %v375
      %v496 = vpack.c.b16 %v378, %v376
      %v497 = vpack.c.b16 %v381, %v379
      %v498 = vpack.c.b16 %v382, %v380
      %v499 = vpack.c.b16 %v385, %v383
      %v500 = vpack.c.b16 %v386, %v384
      %v501 = vpack.c.b16 %v389, %v387
      %v502 = vpack.c.b16 %v390, %v388
      %v503 = vpack.c.b16 %v393, %v391
      %v504 = vpack.c.b16 %v394, %v392
      %v505 = vpack.c.b16 %v397, %v395
      %v506 = vpack.c.b16 %v398, %v396
      %v507 = vpack.c.b16 %v401, %v399
      %v508 = vpack.c.b16 %v402, %v400
      %v509 = vpack.c.b16 %v405, %v403
      %v510 = vpack.c.b16 %v406, %v404
      %v511 = vpack.c.b16 %v409, %v407
      %v512 = vpack.c.b16 %v410, %v408
      %v513 = vpack.c.b16 %v413, %v411
      %v514 = vpack.c.b16 %v414, %v412
      %v515 = vpack.c.b16 %v417, %v415
      %v516 = vpack.c.b16 %v418, %v416
      %v517 = vpack.c.b16 %v421, %v419
      %v518 = vpack.c.b16 %v422, %v420
      %v519 = vpack.c.b16 %v425, %v423
      %v520 = vpack.c.b16 %v426, %v424
      %v521 = vpack.c.b16 %v429, %v427
      %v522 = vpack.c.b16 %v430, %v428
      %v523 = vpack.c.b16 %v433, %v431
      %v524 = vpack.c.b16 %v434, %v432
      %v525 = vpack.c.b16 %v437, %v435
      %v526 = vpack.c.b16 %v438, %v436
      %v527 = vpack.c.b16 %v441, %v439
      %v528 = vpack.c.b16 %v442, %v440
      %v529 = vpack.c.b16 %v445, %v443
      %v530 = vpack.c.b16 %v446, %v444
      %v531 = vpack.c.b16 %v449, %v447
      %v532 = vpack.c.b16 %v450, %v448
      %v533 = vpack.c.b16 %v453, %v451
      %v534 = vpack.c.b16 %v454, %v452
      %v535 = vpack.c.b16 %v457, %v455
      %v536 = vpack.c.b16 %v458, %v456
      %v537 = vpack.c.b16 %v461, %v459
      %v538 = vpack.c.b16 %v462, %v460
      %v539 = vpack.c.b16 %v465, %v463
      %v540 = vpack.c.b16 %v466, %v464
      %v541 = vpack.c.b16 %v469, %v467
      %v542 = vpack.c.b16 %v470, %v468
      %v543 = vpack.c.b16 %v473, %v471
      %v544 = vpack.c.b16 %v474, %v472
      %v545 = vpack.c.b16 %v477, %v475
      %v546 = vpack.c.b16 %v478, %v476
      %v547 = vpack.c.b16 %v481, %v479
      %v548 = vpack.c.b16 %v482, %v480
      %v549 = vpack.c.b16 %v485, %v483
      %v550 = vpack.c.b16 %v486, %v484
      %v647 = vunpack.c.l.b16 %v263
      %v648 = vunpack.c.l.b16 %v264
      %v649 = vunpack.c.l.b16 %v265
      %v650 = vunpack.c.l.b16 %v266
      %v651 = vunpack.c.l.b16 %v267
      %v652 = vunpack.c.l.b16 %v268
      %v653 = vunpack.c.l.b16 %v269
      %v654 = vunpack.c.l.b16 %v270
      %v655 = vunpack.c.l.b16 %v271
      %v656 = vunpack.c.l.b16 %v272
      %v657 = vunpack.c.l.b16 %v273
      %v658 = vunpack.c.l.b16 %v274
      %v659 = vunpack.c.l.b16 %v275
      %v660 = vunpack.c.l.b16 %v276
      %v661 = vunpack.c.l.b16 %v277
      %v662 = vunpack.c.l.b16 %v278
      %v663 = vunpack.c.l.b16 %v279
      %v664 = vunpack.c.l.b16 %v280
      %v665 = vunpack.c.l.b16 %v281
      %v666 = vunpack.c.l.b16 %v282
      %v667 = vunpack.c.l.b16 %v283
      %v668 = vunpack.c.l.b16 %v284
      %v669 = vunpack.c.l.b16 %v285
      %v670 = vunpack.c.l.b16 %v286
      %v671 = vunpack.c.l.b16 %v287
      %v672 = vunpack.c.l.b16 %v288
      %v673 = vunpack.c.l.b16 %v289
      %v674 = vunpack.c.l.b16 %v290
      %v675 = vunpack.c.l.b16 %v291
      %v676 = vunpack.c.l.b16 %v292
      %v677 = vunpack.c.l.b16 %v293
      %v678 = vunpack.c.l.b16 %v294
      %v679 = vpack.c.b16 %v648, %v647
      %v680 = vpack.c.b16 %v650, %v649
      %v681 = vpack.c.b16 %v652, %v651
      %v682 = vpack.c.b16 %v654, %v653
      %v683 = vpack.c.b16 %v656, %v655
      %v684 = vpack.c.b16 %v658, %v657
      %v685 = vpack.c.b16 %v660, %v659
      %v686 = vpack.c.b16 %v662, %v661
      %v687 = vpack.c.b16 %v664, %v663
      %v688 = vpack.c.b16 %v666, %v665
      %v689 = vpack.c.b16 %v668, %v667
      %v690 = vpack.c.b16 %v670, %v669
      %v691 = vpack.c.b16 %v672, %v671
      %v692 = vpack.c.b16 %v674, %v673
      %v693 = vpack.c.b16 %v676, %v675
      %v694 = vpack.c.b16 %v678, %v677
      %711 = vmatpush.bf16.msra.mxu0 %v686
      %712 = vmatpush.bf16.msra.mxu0 %v685
      %713 = vmatpush.bf16.msra.mxu0 %v684
      %714 = vmatpush.bf16.msra.mxu0 %v683
      %715 = vmatpush.bf16.msra.mxu0 %v682
      %716 = vmatpush.bf16.msra.mxu0 %v681
      %717 = vmatpush.bf16.msra.mxu0 %v680
      %718 = vmatpush.bf16.msra.mxu0 %v679
      %719 = vmatmul.bf16.gmra.mxu0 %v487
      %v720 = vpop.f32.mrf.mxu0
      %v721 = vadd.f32 0.0, %v720
      %v722 = vpop.f32.mrf.mxu0
      %v723 = vadd.f32 0.0, %v722
      %724 = vmatmul.bf16.gmra.mxu0 %v489
      %v725 = vpop.f32.mrf.mxu0
      %v726 = vadd.f32 0.0, %v725
      %v727 = vpop.f32.mrf.mxu0
      %v728 = vadd.f32 0.0, %v727
      %729 = vmatmul.bf16.gmra.mxu0 %v491
      %v730 = vpop.f32.mrf.mxu0
      %v731 = vadd.f32 0.0, %v730
      %v732 = vpop.f32.mrf.mxu0
      %v733 = vadd.f32 0.0, %v732
      %734 = vmatmul.bf16.gmra.mxu0 %v493
      %v735 = vpop.f32.mrf.mxu0
      %v736 = vadd.f32 0.0, %v735
      %v737 = vpop.f32.mrf.mxu0
      %v738 = vadd.f32 0.0, %v737
      %739 = vmatmul.bf16.gmra.mxu0 %v495
      %v740 = vpop.f32.mrf.mxu0
      %v741 = vadd.f32 0.0, %v740
      %v742 = vpop.f32.mrf.mxu0
      %v743 = vadd.f32 0.0, %v742
      %744 = vmatmul.bf16.gmra.mxu0 %v497
      %v745 = vpop.f32.mrf.mxu0
      %v746 = vadd.f32 0.0, %v745
      %v747 = vpop.f32.mrf.mxu0
      %v748 = vadd.f32 0.0, %v747
      %749 = vmatmul.bf16.gmra.mxu0 %v499
      %v750 = vpop.f32.mrf.mxu0
      %v751 = vadd.f32 0.0, %v750
      %v752 = vpop.f32.mrf.mxu0
      %v753 = vadd.f32 0.0, %v752
      %754 = vmatmul.bf16.gmra.mxu0 %v501
      %v755 = vpop.f32.mrf.mxu0
      %v756 = vadd.f32 0.0, %v755
      %v757 = vpop.f32.mrf.mxu0
      %v758 = vadd.f32 0.0, %v757
      %759 = vmatmul.bf16.gmra.mxu0 %v503
      %v760 = vpop.f32.mrf.mxu0
      %v761 = vadd.f32 0.0, %v760
      %v762 = vpop.f32.mrf.mxu0
      %v763 = vadd.f32 0.0, %v762
      %764 = vmatmul.bf16.gmra.mxu0 %v505
      %v765 = vpop.f32.mrf.mxu0
      %v766 = vadd.f32 0.0, %v765
      %v767 = vpop.f32.mrf.mxu0
      %v768 = vadd.f32 0.0, %v767
      %769 = vmatmul.bf16.gmra.mxu0 %v507
      %v770 = vpop.f32.mrf.mxu0
      %v771 = vadd.f32 0.0, %v770
      %v772 = vpop.f32.mrf.mxu0
      %v773 = vadd.f32 0.0, %v772
      %774 = vmatmul.bf16.gmra.mxu0 %v509
      %v775 = vpop.f32.mrf.mxu0
      %v776 = vadd.f32 0.0, %v775
      %v777 = vpop.f32.mrf.mxu0
      %v778 = vadd.f32 0.0, %v777
      %779 = vmatmul.bf16.gmra.mxu0 %v511
      %v780 = vpop.f32.mrf.mxu0
      %v781 = vadd.f32 0.0, %v780
      %v782 = vpop.f32.mrf.mxu0
      %v783 = vadd.f32 0.0, %v782
      %784 = vmatmul.bf16.gmra.mxu0 %v513
      %v785 = vpop.f32.mrf.mxu0
      %v786 = vadd.f32 0.0, %v785
      %v787 = vpop.f32.mrf.mxu0
      %v788 = vadd.f32 0.0, %v787
      %789 = vmatmul.bf16.gmra.mxu0 %v515
      %v790 = vpop.f32.mrf.mxu0
      %v791 = vadd.f32 0.0, %v790
      %v792 = vpop.f32.mrf.mxu0
      %v793 = vadd.f32 0.0, %v792
      %794 = vmatmul.bf16.gmra.mxu0 %v517
      %v795 = vpop.f32.mrf.mxu0
      %v796 = vadd.f32 0.0, %v795
      %v797 = vpop.f32.mrf.mxu0
      %v798 = vadd.f32 0.0, %v797
      %799 = vmatmul.bf16.gmra.mxu0 %v519
      %v800 = vpop.f32.mrf.mxu0
      %v801 = vadd.f32 0.0, %v800
      %v802 = vpop.f32.mrf.mxu0
      %v803 = vadd.f32 0.0, %v802
      %804 = vmatmul.bf16.gmra.mxu0 %v521
      %v805 = vpop.f32.mrf.mxu0
      %v806 = vadd.f32 0.0, %v805
      %v807 = vpop.f32.mrf.mxu0
      %v808 = vadd.f32 0.0, %v807
      %809 = vmatmul.bf16.gmra.mxu0 %v523
      %v810 = vpop.f32.mrf.mxu0
      %v811 = vadd.f32 0.0, %v810
      %v812 = vpop.f32.mrf.mxu0
      %v813 = vadd.f32 0.0, %v812
      %814 = vmatmul.bf16.gmra.mxu0 %v525
      %v815 = vpop.f32.mrf.mxu0
      %v816 = vadd.f32 0.0, %v815
      %v817 = vpop.f32.mrf.mxu0
      %v818 = vadd.f32 0.0, %v817
      %819 = vmatmul.bf16.gmra.mxu0 %v527
      %v820 = vpop.f32.mrf.mxu0
      %v821 = vadd.f32 0.0, %v820
      %v822 = vpop.f32.mrf.mxu0
      %v823 = vadd.f32 0.0, %v822
      %824 = vmatmul.bf16.gmra.mxu0 %v529
      %v825 = vpop.f32.mrf.mxu0
      %v826 = vadd.f32 0.0, %v825
      %v827 = vpop.f32.mrf.mxu0
      %v828 = vadd.f32 0.0, %v827
      %829 = vmatmul.bf16.gmra.mxu0 %v531
      %v830 = vpop.f32.mrf.mxu0
      %v831 = vadd.f32 0.0, %v830
      %v832 = vpop.f32.mrf.mxu0
      %v833 = vadd.f32 0.0, %v832
      %834 = vmatmul.bf16.gmra.mxu0 %v533
      %v835 = vpop.f32.mrf.mxu0
      %v836 = vadd.f32 0.0, %v835
      %v837 = vpop.f32.mrf.mxu0
      %v838 = vadd.f32 0.0, %v837
      %839 = vmatmul.bf16.gmra.mxu0 %v535
      %v840 = vpop.f32.mrf.mxu0
      %v841 = vadd.f32 0.0, %v840
      %v842 = vpop.f32.mrf.mxu0
      %v843 = vadd.f32 0.0, %v842
      %844 = vmatmul.bf16.gmra.mxu0 %v537
      %v845 = vpop.f32.mrf.mxu0
      %v846 = vadd.f32 0.0, %v845
      %v847 = vpop.f32.mrf.mxu0
      %v848 = vadd.f32 0.0, %v847
      %849 = vmatmul.bf16.gmra.mxu0 %v539
      %v850 = vpop.f32.mrf.mxu0
      %v851 = vadd.f32 0.0, %v850
      %v852 = vpop.f32.mrf.mxu0
      %v853 = vadd.f32 0.0, %v852
      %854 = vmatmul.bf16.gmra.mxu0 %v541
      %v855 = vpop.f32.mrf.mxu0
      %v856 = vadd.f32 0.0, %v855
      %v857 = vpop.f32.mrf.mxu0
      %v858 = vadd.f32 0.0, %v857
      %859 = vmatmul.bf16.gmra.mxu0 %v543
      %v860 = vpop.f32.mrf.mxu0
      %v861 = vadd.f32 0.0, %v860
      %v862 = vpop.f32.mrf.mxu0
      %v863 = vadd.f32 0.0, %v862
      %864 = vmatmul.bf16.gmra.mxu0 %v545
      %v865 = vpop.f32.mrf.mxu0
      %v866 = vadd.f32 0.0, %v865
      %v867 = vpop.f32.mrf.mxu0
      %v868 = vadd.f32 0.0, %v867
      %869 = vmatmul.bf16.gmra.mxu0 %v547
      %v870 = vpop.f32.mrf.mxu0
      %v871 = vadd.f32 0.0, %v870
      %v872 = vpop.f32.mrf.mxu0
      %v873 = vadd.f32 0.0, %v872
      %874 = vmatmul.bf16.gmra.mxu0 %v549
      %v875 = vpop.f32.mrf.mxu0
      %v876 = vadd.f32 0.0, %v875
      %v877 = vpop.f32.mrf.mxu0
      %v878 = vadd.f32 0.0, %v877
      %879 = vdwg.mxu0
      %880 = vmatpush.bf16.msra.mxu0 %v694
      %881 = vmatpush.bf16.msra.mxu0 %v693
      %882 = vmatpush.bf16.msra.mxu0 %v692
      %883 = vmatpush.bf16.msra.mxu0 %v691
      %884 = vmatpush.bf16.msra.mxu0 %v690
      %885 = vmatpush.bf16.msra.mxu0 %v689
      %886 = vmatpush.bf16.msra.mxu0 %v688
      %887 = vmatpush.bf16.msra.mxu0 %v687
      %888 = vmatmul.bf16.gmra.mxu0 %v488
      %v889 = vpop.f32.mrf.mxu0
      %v890 = vadd.f32 %v721, %v889
      %v891 = vpop.f32.mrf.mxu0
      %v892 = vadd.f32 %v723, %v891
      %893 = vmatmul.bf16.gmra.mxu0 %v490
      %v894 = vpop.f32.mrf.mxu0
      %v895 = vadd.f32 %v726, %v894
      %v896 = vpop.f32.mrf.mxu0
      %v897 = vadd.f32 %v728, %v896
      %898 = vmatmul.bf16.gmra.mxu0 %v492
      %v899 = vpop.f32.mrf.mxu0
      %v900 = vadd.f32 %v731, %v899
      %v901 = vpop.f32.mrf.mxu0
      %v902 = vadd.f32 %v733, %v901
      %903 = vmatmul.bf16.gmra.mxu0 %v494
      %v904 = vpop.f32.mrf.mxu0
      %v905 = vadd.f32 %v736, %v904
      %v906 = vpop.f32.mrf.mxu0
      %v907 = vadd.f32 %v738, %v906
      %908 = vmatmul.bf16.gmra.mxu0 %v496
      %v909 = vpop.f32.mrf.mxu0
      %v910 = vadd.f32 %v741, %v909
      %v911 = vpop.f32.mrf.mxu0
      %v912 = vadd.f32 %v743, %v911
      %913 = vmatmul.bf16.gmra.mxu0 %v498
      %v914 = vpop.f32.mrf.mxu0
      %v915 = vadd.f32 %v746, %v914
      %v916 = vpop.f32.mrf.mxu0
      %v917 = vadd.f32 %v748, %v916
      %918 = vmatmul.bf16.gmra.mxu0 %v500
      %v919 = vpop.f32.mrf.mxu0
      %v920 = vadd.f32 %v751, %v919
      %v921 = vpop.f32.mrf.mxu0
      %v922 = vadd.f32 %v753, %v921
      %923 = vmatmul.bf16.gmra.mxu0 %v502
      %v924 = vpop.f32.mrf.mxu0
      %v925 = vadd.f32 %v756, %v924
      %v926 = vpop.f32.mrf.mxu0
      %v927 = vadd.f32 %v758, %v926
      %928 = vmatmul.bf16.gmra.mxu0 %v504
      %v929 = vpop.f32.mrf.mxu0
      %v930 = vadd.f32 %v761, %v929
      %v931 = vpop.f32.mrf.mxu0
      %v932 = vadd.f32 %v763, %v931
      %933 = vmatmul.bf16.gmra.mxu0 %v506
      %v934 = vpop.f32.mrf.mxu0
      %v935 = vadd.f32 %v766, %v934
      %v936 = vpop.f32.mrf.mxu0
      %v937 = vadd.f32 %v768, %v936
      %938 = vmatmul.bf16.gmra.mxu0 %v508
      %v939 = vpop.f32.mrf.mxu0
      %v940 = vadd.f32 %v771, %v939
      %v941 = vpop.f32.mrf.mxu0
      %v942 = vadd.f32 %v773, %v941
      %943 = vmatmul.bf16.gmra.mxu0 %v510
      %v944 = vpop.f32.mrf.mxu0
      %v945 = vadd.f32 %v776, %v944
      %v946 = vpop.f32.mrf.mxu0
      %v947 = vadd.f32 %v778, %v946
      %948 = vmatmul.bf16.gmra.mxu0 %v512
      %v949 = vpop.f32.mrf.mxu0
      %v950 = vadd.f32 %v781, %v949
      %v951 = vpop.f32.mrf.mxu0
      %v952 = vadd.f32 %v783, %v951
      %953 = vmatmul.bf16.gmra.mxu0 %v514
      %v954 = vpop.f32.mrf.mxu0
      %v955 = vadd.f32 %v786, %v954
      %v956 = vpop.f32.mrf.mxu0
      %v957 = vadd.f32 %v788, %v956
      %958 = vmatmul.bf16.gmra.mxu0 %v516
      %v959 = vpop.f32.mrf.mxu0
      %v960 = vadd.f32 %v791, %v959
      %v961 = vpop.f32.mrf.mxu0
      %v962 = vadd.f32 %v793, %v961
      %963 = vmatmul.bf16.gmra.mxu0 %v518
      %v964 = vpop.f32.mrf.mxu0
      %v965 = vadd.f32 %v796, %v964
      %v966 = vpop.f32.mrf.mxu0
      %v967 = vadd.f32 %v798, %v966
      %968 = vmatmul.bf16.gmra.mxu0 %v520
      %v969 = vpop.f32.mrf.mxu0
      %v970 = vadd.f32 %v801, %v969
      %v971 = vpop.f32.mrf.mxu0
      %v972 = vadd.f32 %v803, %v971
      %973 = vmatmul.bf16.gmra.mxu0 %v522
      %v974 = vpop.f32.mrf.mxu0
      %v975 = vadd.f32 %v806, %v974
      %v976 = vpop.f32.mrf.mxu0
      %v977 = vadd.f32 %v808, %v976
      %978 = vmatmul.bf16.gmra.mxu0 %v524
      %v979 = vpop.f32.mrf.mxu0
      %v980 = vadd.f32 %v811, %v979
      %v981 = vpop.f32.mrf.mxu0
      %v982 = vadd.f32 %v813, %v981
      %983 = vmatmul.bf16.gmra.mxu0 %v526
      %v984 = vpop.f32.mrf.mxu0
      %v985 = vadd.f32 %v816, %v984
      %v986 = vpop.f32.mrf.mxu0
      %v987 = vadd.f32 %v818, %v986
      %988 = vmatmul.bf16.gmra.mxu0 %v528
      %v989 = vpop.f32.mrf.mxu0
      %v990 = vadd.f32 %v821, %v989
      %v991 = vpop.f32.mrf.mxu0
      %v992 = vadd.f32 %v823, %v991
      %993 = vmatmul.bf16.gmra.mxu0 %v530
      %v994 = vpop.f32.mrf.mxu0
      %v995 = vadd.f32 %v826, %v994
      %v996 = vpop.f32.mrf.mxu0
      %v997 = vadd.f32 %v828, %v996
      %998 = vmatmul.bf16.gmra.mxu0 %v532
      %v999 = vpop.f32.mrf.mxu0
      %v1000 = vadd.f32 %v831, %v999
      %v1001 = vpop.f32.mrf.mxu0
      %v1002 = vadd.f32 %v833, %v1001
      %1003 = vmatmul.bf16.gmra.mxu0 %v534
      %v1004 = vpop.f32.mrf.mxu0
      %v1005 = vadd.f32 %v836, %v1004
      %v1006 = vpop.f32.mrf.mxu0
      %v1007 = vadd.f32 %v838, %v1006
      %1008 = vmatmul.bf16.gmra.mxu0 %v536
      %v1009 = vpop.f32.mrf.mxu0
      %v1010 = vadd.f32 %v841, %v1009
      %v1011 = vpop.f32.mrf.mxu0
      %v1012 = vadd.f32 %v843, %v1011
      %1013 = vmatmul.bf16.gmra.mxu0 %v538
      %v1014 = vpop.f32.mrf.mxu0
      %v1015 = vadd.f32 %v846, %v1014
      %v1016 = vpop.f32.mrf.mxu0
      %v1017 = vadd.f32 %v848, %v1016
      %1018 = vmatmul.bf16.gmra.mxu0 %v540
      %v1019 = vpop.f32.mrf.mxu0
      %v1020 = vadd.f32 %v851, %v1019
      %v1021 = vpop.f32.mrf.mxu0
      %v1022 = vadd.f32 %v853, %v1021
      %1023 = vmatmul.bf16.gmra.mxu0 %v542
      %v1024 = vpop.f32.mrf.mxu0
      %v1025 = vadd.f32 %v856, %v1024
      %v1026 = vpop.f32.mrf.mxu0
      %v1027 = vadd.f32 %v858, %v1026
      %1028 = vmatmul.bf16.gmra.mxu0 %v544
      %v1029 = vpop.f32.mrf.mxu0
      %v1030 = vadd.f32 %v861, %v1029
      %v1031 = vpop.f32.mrf.mxu0
      %v1032 = vadd.f32 %v863, %v1031
      %1033 = vmatmul.bf16.gmra.mxu0 %v546
      %v1034 = vpop.f32.mrf.mxu0
      %v1035 = vadd.f32 %v866, %v1034
      %v1036 = vpop.f32.mrf.mxu0
      %v1037 = vadd.f32 %v868, %v1036
      %1038 = vmatmul.bf16.gmra.mxu0 %v548
      %v1039 = vpop.f32.mrf.mxu0
      %v1040 = vadd.f32 %v871, %v1039
      %v1041 = vpop.f32.mrf.mxu0
      %v1042 = vadd.f32 %v873, %v1041
      %1043 = vmatmul.bf16.gmra.mxu0 %v550
      %v1044 = vpop.f32.mrf.mxu0
      %v1045 = vadd.f32 %v876, %v1044
      %v1046 = vpop.f32.mrf.mxu0
      %v1047 = vadd.f32 %v878, %v1046
      %1048 = vdwg.mxu0
      %1049 = vst [vmem:[%s197] sm:$0xff] %v890
      %1050 = vst [vmem:[%s197 + $0x8] sm:$0xff] %v892
      %1051 = vst [vmem:[%s197 + $0x10] sm:$0xff] %v895
      %1052 = vst [vmem:[%s197 + $0x18] sm:$0xff] %v897
      %1053 = vst [vmem:[%s197 + $0x20] sm:$0xff] %v900
      %1054 = vst [vmem:[%s197 + $0x28] sm:$0xff] %v902
      %1055 = vst [vmem:[%s197 + $0x30] sm:$0xff] %v905
      %1056 = vst [vmem:[%s197 + $0x38] sm:$0xff] %v907
      %1057 = vst [vmem:[%s197 + $0x40] sm:$0xff] %v910
      %1058 = vst [vmem:[%s197 + $0x48] sm:$0xff] %v912
      %1059 = vst [vmem:[%s197 + $0x50] sm:$0xff] %v915
      %1060 = vst [vmem:[%s197 + $0x58] sm:$0xff] %v917
      %1061 = vst [vmem:[%s197 + $0x60] sm:$0xff] %v920
      %1062 = vst [vmem:[%s197 + $0x68] sm:$0xff] %v922
      %1063 = vst [vmem:[%s197 + $0x70] sm:$0xff] %v925
      %1064 = vst [vmem:[%s197 + $0x78] sm:$0xff] %v927
      %1065 = vst [vmem:[%s197 + $0x80] sm:$0xff] %v930
      %1066 = vst [vmem:[%s197 + $0x88] sm:$0xff] %v932
      %1067 = vst [vmem:[%s197 + $0x90] sm:$0xff] %v935
      %1068 = vst [vmem:[%s197 + $0x98] sm:$0xff] %v937
      %1069 = vst [vmem:[%s197 + $0xa0] sm:$0xff] %v940
      %1070 = vst [vmem:[%s197 + $0xa8] sm:$0xff] %v942
      %1071 = vst [vmem:[%s197 + $0xb0] sm:$0xff] %v945
      %1072 = vst [vmem:[%s197 + $0xb8] sm:$0xff] %v947
      %1073 = vst [vmem:[%s197 + $0xc0] sm:$0xff] %v950
      %1074 = vst [vmem:[%s197 + $0xc8] sm:$0xff] %v952
      %1075 = vst [vmem:[%s197 + $0xd0] sm:$0xff] %v955
      %1076 = vst [vmem:[%s197 + $0xd8] sm:$0xff] %v957
      %1077 = vst [vmem:[%s197 + $0xe0] sm:$0xff] %v960
      %1078 = vst [vmem:[%s197 + $0xe8] sm:$0xff] %v962
      %1079 = vst [vmem:[%s197 + $0xf0] sm:$0xff] %v965
      %1080 = vst [vmem:[%s197 + $0xf8] sm:$0xff] %v967
      %1081 = vst [vmem:[%s197 + $0x100] sm:$0xff] %v970
      %1082 = vst [vmem:[%s197 + $0x108] sm:$0xff] %v972
      %1083 = vst [vmem:[%s197 + $0x110] sm:$0xff] %v975
      %1084 = vst [vmem:[%s197 + $0x118] sm:$0xff] %v977
      %1085 = vst [vmem:[%s197 + $0x120] sm:$0xff] %v980
      %1086 = vst [vmem:[%s197 + $0x128] sm:$0xff] %v982
      %1087 = vst [vmem:[%s197 + $0x130] sm:$0xff] %v985
      %1088 = vst [vmem:[%s197 + $0x138] sm:$0xff] %v987
      %1089 = vst [vmem:[%s197 + $0x140] sm:$0xff] %v990
      %1090 = vst [vmem:[%s197 + $0x148] sm:$0xff] %v992
      %1091 = vst [vmem:[%s197 + $0x150] sm:$0xff] %v995
      %1092 = vst [vmem:[%s197 + $0x158] sm:$0xff] %v997
      %1093 = vst [vmem:[%s197 + $0x160] sm:$0xff] %v1000
      %1094 = vst [vmem:[%s197 + $0x168] sm:$0xff] %v1002
      %1095 = vst [vmem:[%s197 + $0x170] sm:$0xff] %v1005
      %1096 = vst [vmem:[%s197 + $0x178] sm:$0xff] %v1007
      %1097 = vst [vmem:[%s197 + $0x180] sm:$0xff] %v1010
      %1098 = vst [vmem:[%s197 + $0x188] sm:$0xff] %v1012
      %1099 = vst [vmem:[%s197 + $0x190] sm:$0xff] %v1015
      %1100 = vst [vmem:[%s197 + $0x198] sm:$0xff] %v1017
      %1101 = vst [vmem:[%s197 + $0x1a0] sm:$0xff] %v1020
      %1102 = vst [vmem:[%s197 + $0x1a8] sm:$0xff] %v1022
      %1103 = vst [vmem:[%s197 + $0x1b0] sm:$0xff] %v1025
      %1104 = vst [vmem:[%s197 + $0x1b8] sm:$0xff] %v1027
      %1105 = vst [vmem:[%s197 + $0x1c0] sm:$0xff] %v1030
      %1106 = vst [vmem:[%s197 + $0x1c8] sm:$0xff] %v1032
      %1107 = vst [vmem:[%s197 + $0x1d0] sm:$0xff] %v1035
      %1108 = vst [vmem:[%s197 + $0x1d8] sm:$0xff] %v1037
      %1109 = vst [vmem:[%s197 + $0x1e0] sm:$0xff] %v1040
      %1110 = vst [vmem:[%s197 + $0x1e8] sm:$0xff] %v1042
      %1111 = vst [vmem:[%s197 + $0x1f0] sm:$0xff] %v1045
      %1112 = vst [vmem:[%s197 + $0x1f8] sm:$0xff] %v1047
      %p1113 = scmp.eq.s32.totalorder %s16, 0
      // Predicated region
      $region29: #{resblock_forward.6} parent=27 // pred_check
        %p1114 = pneg %p1113
      $region30: #{resblock_forward.6} parent=27 // pred_check_branch
        %1116 = sbr.rel (%p1114) target = $region32
      $region31: #{resblock_forward.6} parent=27 // pred_region
        %1117 = vst [vmem:[%s3] sm:$0x1] 0.0
        %1118 = vst [vmem:[%s4] sm:$0x1] 0.0
      $region32: #{resblock_forward.6} parent=27 // pred_fallthru
        _
      %v1119 = vld [vmem:[%s3] sm:$0x1]
      %v1120 = vadd.f32 %v890, %v892
      %v1121 = vadd.f32 %v1120, %v895
      %v1122 = vadd.f32 %v1121, %v897
      %v1123 = vadd.f32 %v1122, %v900
      %v1124 = vadd.f32 %v1123, %v902
      %v1125 = vadd.f32 %v1124, %v905
      %v1126 = vadd.f32 %v1125, %v907
      %v1127 = vadd.f32 %v1126, %v910
      %v1128 = vadd.f32 %v1127, %v912
      %v1129 = vadd.f32 %v1128, %v915
      %v1130 = vadd.f32 %v1129, %v917
      %v1131 = vadd.f32 %v1130, %v920
      %v1132 = vadd.f32 %v1131, %v922
      %v1133 = vadd.f32 %v1132, %v925
      %v1134 = vadd.f32 %v1133, %v927
      %v1135 = vadd.f32 %v1134, %v930
      %v1136 = vadd.f32 %v1135, %v932
      %v1137 = vadd.f32 %v1136, %v935
      %v1138 = vadd.f32 %v1137, %v937
      %v1139 = vadd.f32 %v1138, %v940
      %v1140 = vadd.f32 %v1139, %v942
      %v1141 = vadd.f32 %v1140, %v945
      %v1142 = vadd.f32 %v1141, %v947
      %v1143 = vadd.f32 %v1142, %v950
      %v1144 = vadd.f32 %v1143, %v952
      %v1145 = vadd.f32 %v1144, %v955
      %v1146 = vadd.f32 %v1145, %v957
      %v1147 = vadd.f32 %v1146, %v960
      %v1148 = vadd.f32 %v1147, %v962
      %v1149 = vadd.f32 %v1148, %v965
      %v1150 = vadd.f32 %v1149, %v967
      %v1151 = vadd.f32 %v1150, %v970
      %v1152 = vadd.f32 %v1151, %v972
      %v1153 = vadd.f32 %v1152, %v975
      %v1154 = vadd.f32 %v1153, %v977
      %v1155 = vadd.f32 %v1154, %v980
      %v1156 = vadd.f32 %v1155, %v982
      %v1157 = vadd.f32 %v1156, %v985
      %v1158 = vadd.f32 %v1157, %v987
      %v1159 = vadd.f32 %v1158, %v990
      %v1160 = vadd.f32 %v1159, %v992
      %v1161 = vadd.f32 %v1160, %v995
      %v1162 = vadd.f32 %v1161, %v997
      %v1163 = vadd.f32 %v1162, %v1000
      %v1164 = vadd.f32 %v1163, %v1002
      %v1165 = vadd.f32 %v1164, %v1005
      %v1166 = vadd.f32 %v1165, %v1007
      %v1167 = vadd.f32 %v1166, %v1010
      %v1168 = vadd.f32 %v1167, %v1012
      %v1169 = vadd.f32 %v1168, %v1015
      %v1170 = vadd.f32 %v1169, %v1017
      %v1171 = vadd.f32 %v1170, %v1020
      %v1172 = vadd.f32 %v1171, %v1022
      %v1173 = vadd.f32 %v1172, %v1025
      %v1174 = vadd.f32 %v1173, %v1027
      %v1175 = vadd.f32 %v1174, %v1030
      %v1176 = vadd.f32 %v1175, %v1032
      %v1177 = vadd.f32 %v1176, %v1035
      %v1178 = vadd.f32 %v1177, %v1037
      %v1179 = vadd.f32 %v1178, %v1040
      %v1180 = vadd.f32 %v1179, %v1042
      %v1181 = vadd.f32 %v1180, %v1045
      %v1182 = vadd.f32 %v1181, %v1047
      %v1183 = vrot.slane %v1182, 4
      %v1184 = vadd.f32 %v1182, %v1183
      %v1185 = vrot.slane %v1184, 2
      %v1186 = vadd.f32 %v1184, %v1185
      %v1187 = vrot.slane %v1186, 1
      %v1188 = vadd.f32 %v1186, %v1187
      %v1189 = vadd.f32 %v1119, %v1188
      %1190 = vst [vmem:[%s3] sm:$0x1] %v1189
      %v1191 = vld [vmem:[%s4] sm:$0x1]
      %v1192 = vmul.f32 %v890, %v890
      %v1193 = vmul.f32 %v892, %v892
      %v1194 = vmul.f32 %v895, %v895
      %v1195 = vmul.f32 %v897, %v897
      %v1196 = vmul.f32 %v900, %v900
      %v1197 = vmul.f32 %v902, %v902
      %v1198 = vmul.f32 %v905, %v905
      %v1199 = vmul.f32 %v907, %v907
      %v1200 = vmul.f32 %v910, %v910
      %v1201 = vmul.f32 %v912, %v912
      %v1202 = vmul.f32 %v915, %v915
      %v1203 = vmul.f32 %v917, %v917
      %v1204 = vmul.f32 %v920, %v920
      %v1205 = vmul.f32 %v922, %v922
      %v1206 = vmul.f32 %v925, %v925
      %v1207 = vmul.f32 %v927, %v927
      %v1208 = vmul.f32 %v930, %v930
      %v1209 = vmul.f32 %v932, %v932
      %v1210 = vmul.f32 %v935, %v935
      %v1211 = vmul.f32 %v937, %v937
      %v1212 = vmul.f32 %v940, %v940
      %v1213 = vmul.f32 %v942, %v942
      %v1214 = vmul.f32 %v945, %v945
      %v1215 = vmul.f32 %v947, %v947
      %v1216 = vmul.f32 %v950, %v950
      %v1217 = vmul.f32 %v952, %v952
      %v1218 = vmul.f32 %v955, %v955
      %v1219 = vmul.f32 %v957, %v957
      %v1220 = vmul.f32 %v960, %v960
      %v1221 = vmul.f32 %v962, %v962
      %v1222 = vmul.f32 %v965, %v965
      %v1223 = vmul.f32 %v967, %v967
      %v1224 = vmul.f32 %v970, %v970
      %v1225 = vmul.f32 %v972, %v972
      %v1226 = vmul.f32 %v975, %v975
      %v1227 = vmul.f32 %v977, %v977
      %v1228 = vmul.f32 %v980, %v980
      %v1229 = vmul.f32 %v982, %v982
      %v1230 = vmul.f32 %v985, %v985
      %v1231 = vmul.f32 %v987, %v987
      %v1232 = vmul.f32 %v990, %v990
      %v1233 = vmul.f32 %v992, %v992
      %v1234 = vmul.f32 %v995, %v995
      %v1235 = vmul.f32 %v997, %v997
      %v1236 = vmul.f32 %v1000, %v1000
      %v1237 = vmul.f32 %v1002, %v1002
      %v1238 = vmul.f32 %v1005, %v1005
      %v1239 = vmul.f32 %v1007, %v1007
      %v1240 = vmul.f32 %v1010, %v1010
      %v1241 = vmul.f32 %v1012, %v1012
      %v1242 = vmul.f32 %v1015, %v1015
      %v1243 = vmul.f32 %v1017, %v1017
      %v1244 = vmul.f32 %v1020, %v1020
      %v1245 = vmul.f32 %v1022, %v1022
      %v1246 = vmul.f32 %v1025, %v1025
      %v1247 = vmul.f32 %v1027, %v1027
      %v1248 = vmul.f32 %v1030, %v1030
      %v1249 = vmul.f32 %v1032, %v1032
      %v1250 = vmul.f32 %v1035, %v1035
      %v1251 = vmul.f32 %v1037, %v1037
      %v1252 = vmul.f32 %v1040, %v1040
      %v1253 = vmul.f32 %v1042, %v1042
      %v1254 = vmul.f32 %v1045, %v1045
      %v1255 = vmul.f32 %v1047, %v1047
      %v1256 = vadd.f32 %v1192, %v1193
      %v1257 = vadd.f32 %v1256, %v1194
      %v1258 = vadd.f32 %v1257, %v1195
      %v1259 = vadd.f32 %v1258, %v1196
      %v1260 = vadd.f32 %v1259, %v1197
      %v1261 = vadd.f32 %v1260, %v1198
      %v1262 = vadd.f32 %v1261, %v1199
      %v1263 = vadd.f32 %v1262, %v1200
      %v1264 = vadd.f32 %v1263, %v1201
      %v1265 = vadd.f32 %v1264, %v1202
      %v1266 = vadd.f32 %v1265, %v1203
      %v1267 = vadd.f32 %v1266, %v1204
      %v1268 = vadd.f32 %v1267, %v1205
      %v1269 = vadd.f32 %v1268, %v1206
      %v1270 = vadd.f32 %v1269, %v1207
      %v1271 = vadd.f32 %v1270, %v1208
      %v1272 = vadd.f32 %v1271, %v1209
      %v1273 = vadd.f32 %v1272, %v1210
      %v1274 = vadd.f32 %v1273, %v1211
      %v1275 = vadd.f32 %v1274, %v1212
      %v1276 = vadd.f32 %v1275, %v1213
      %v1277 = vadd.f32 %v1276, %v1214
      %v1278 = vadd.f32 %v1277, %v1215
      %v1279 = vadd.f32 %v1278, %v1216
      %v1280 = vadd.f32 %v1279, %v1217
      %v1281 = vadd.f32 %v1280, %v1218
      %v1282 = vadd.f32 %v1281, %v1219
      %v1283 = vadd.f32 %v1282, %v1220
      %v1284 = vadd.f32 %v1283, %v1221
      %v1285 = vadd.f32 %v1284, %v1222
      %v1286 = vadd.f32 %v1285, %v1223
      %v1287 = vadd.f32 %v1286, %v1224
      %v1288 = vadd.f32 %v1287, %v1225
      %v1289 = vadd.f32 %v1288, %v1226
      %v1290 = vadd.f32 %v1289, %v1227
      %v1291 = vadd.f32 %v1290, %v1228
      %v1292 = vadd.f32 %v1291, %v1229
      %v1293 = vadd.f32 %v1292, %v1230
      %v1294 = vadd.f32 %v1293, %v1231
      %v1295 = vadd.f32 %v1294, %v1232
      %v1296 = vadd.f32 %v1295, %v1233
      %v1297 = vadd.f32 %v1296, %v1234
      %v1298 = vadd.f32 %v1297, %v1235
      %v1299 = vadd.f32 %v1298, %v1236
      %v1300 = vadd.f32 %v1299, %v1237
      %v1301 = vadd.f32 %v1300, %v1238
      %v1302 = vadd.f32 %v1301, %v1239
      %v1303 = vadd.f32 %v1302, %v1240
      %v1304 = vadd.f32 %v1303, %v1241
      %v1305 = vadd.f32 %v1304, %v1242
      %v1306 = vadd.f32 %v1305, %v1243
      %v1307 = vadd.f32 %v1306, %v1244
      %v1308 = vadd.f32 %v1307, %v1245
      %v1309 = vadd.f32 %v1308, %v1246
      %v1310 = vadd.f32 %v1309, %v1247
      %v1311 = vadd.f32 %v1310, %v1248
      %v1312 = vadd.f32 %v1311, %v1249
      %v1313 = vadd.f32 %v1312, %v1250
      %v1314 = vadd.f32 %v1313, %v1251
      %v1315 = vadd.f32 %v1314, %v1252
      %v1316 = vadd.f32 %v1315, %v1253
      %v1317 = vadd.f32 %v1316, %v1254
      %v1318 = vadd.f32 %v1317, %v1255
      %v1319 = vrot.slane %v1318, 4
      %v1320 = vadd.f32 %v1318, %v1319
      %v1321 = vrot.slane %v1320, 2
      %v1322 = vadd.f32 %v1320, %v1321
      %v1323 = vrot.slane %v1322, 1
      %v1324 = vadd.f32 %v1322, %v1323
      %v1325 = vadd.f32 %v1191, %v1324
      %1326 = vst [vmem:[%s4] sm:$0x1] %v1325
      %s1327 = smul.u32 64, %s16
      %p1328 = scmp.lt.s32.totalorder %s1327, 127
      %s1329 = scalar_select %p1328, %s1327, 127
      %s1330 = smul.addr %s1329, 8
      %s1331 = scalar_lea.vmem %s2, %s1330
      // Predicated region
      $region33: #{resblock_forward.6} parent=27 // pred_check
        %p1332 = pneg %p81
      $region34: #{resblock_forward.6} parent=27 // pred_check_branch
        %1334 = sbr.rel (%p1332) target = $region36
      $region35: #{resblock_forward.6} parent=27 // pred_region
        %s1335 = smul.u32 64, %s16
      $region36: #{resblock_forward.6} parent=27 // pred_fallthru
        _
      // Predicated region
      $region37: #{resblock_forward.6} parent=27 // pred_check
        %p1336 = pneg %p102
      $region38: #{resblock_forward.6} parent=27 // pred_check_branch
        %1338 = sbr.rel (%p1336) target = $region40
      $region39: #{resblock_forward.6} parent=27 // pred_region
        _
      $region40: #{resblock_forward.6} parent=27 // pred_fallthru
        _
      // Predicated region
      $region41: #{resblock_forward.6} parent=27 // pred_check
        %p1339 = pneg %p123
      $region42: #{resblock_forward.6} parent=27 // pred_check_branch
        %1341 = sbr.rel (%p1339) target = $region44
      $region43: #{resblock_forward.6} parent=27 // pred_region
        _
      $region44: #{resblock_forward.6} parent=27 // pred_fallthru
        _
      // Predicated region
      $region45: #{resblock_forward.6} parent=27 // pred_check
        %p1342 = pneg %p102
      $region46: #{resblock_forward.6} parent=27 // pred_check_branch
        %1344 = sbr.rel (%p1342) target = $region48
      $region47: #{resblock_forward.6} parent=27 // pred_region
        _
      $region48: #{resblock_forward.6} parent=27 // pred_fallthru
        _
      // Predicated region
      $region49: #{resblock_forward.6} parent=27 // pred_check
        %p1345 = pneg %p123
      $region50: #{resblock_forward.6} parent=27 // pred_check_branch
        %1347 = sbr.rel (%p1345) target = $region52
      $region51: #{resblock_forward.6} parent=27 // pred_region
        _
      $region52: #{resblock_forward.6} parent=27 // pred_fallthru
        _
    $region28: #{resblock_forward.6} parent=5 // pred_fallthru
      _
    %p1348 = scmp.le.s32.totalorder 2, %s11
    // Predicated region
    $region53: #{resblock_forward.6} parent=5 // pred_check
      %p1349 = pneg %p1348
    $region54: #{resblock_forward.6} parent=5 // pred_check_branch
      %1351 = sbr.rel (%p1349) target = $region56
    $region55: #{resblock_forward.6} parent=5 // pred_region
      %s1352 = ssub.s32 %s11, 2
      // Predicated region
      $region57: #{resblock_forward.6} parent=55 // pred_check
        %p1353 = pneg %p87
      $region58: #{resblock_forward.6} parent=55 // pred_check_branch
        %1355 = sbr.rel (%p1353) target = $region60
      $region59: #{resblock_forward.6} parent=55 // pred_region
        %s1356 = smul.u32 64, %s17
        %p1357 = scmp.lt.s32.totalorder %s1356, 127
        %s1358 = scalar_select %p1357, %s1356, 127
        %s1359 = smul.addr %s1358, 8
        %s1360 = scalar_lea.vmem %s2, %s1359
      $region60: #{resblock_forward.6} parent=55 // pred_fallthru
        _
    $region56: #{resblock_forward.6} parent=5 // pred_fallthru
      _
  $region6: #{resblock_forward.6} parent=0 // loop_footer
    %s15 = sadd.s32 1, %s11
  $region7: #{resblock_forward.6} parent=0 // loop_footer_branch
    %10 = sbr.rel target = $region3
  $region8: #{resblock_forward.6} parent=0 // loop_exit
    _

// kernel: resblock_forward.7
$region0: #{resblock_forward.7}
  #allocation0 [shape = 'u32[]', space=smem, size = 0x4, offset = 0x4, fixed_abs, tag = 'smem constant byte address 0x4 - core index']
  #allocation1 [shape = 'u32[72,128]{1,0:T(1,128)}', space=vmem, size = 0x9000, scoped, tag = 'internal scratch']
  %s0 = inlined_call_operand.vmem [shape: f32[1024,128], index: 0, kind: input, shape index: {}]
  %s1 = inlined_call_operand.vmem [shape: f32[1,128], index: 1, kind: input, shape index: {}]
  %s2 = inlined_call_operand.vmem [shape: f32[1,128], index: 2, kind: input, shape index: {}]
  %s3 = inlined_call_operand.vmem [shape: f32[1,128], index: 3, kind: input, shape index: {}]
  %s4 = inlined_call_operand.vmem [shape: f32[1,128], index: 4, kind: input, shape index: {}]
  %s5 = inlined_call_operand.vmem [shape: bf16[1024,128], index: 5, kind: input, shape index: {}]
  %s6 = inlined_call_operand.vmem [shape: bf16[128,128], index: 6, kind: input, shape index: {}]
  %s7 = inlined_call_operand.vmem [shape: f32[1,128], index: 7, kind: input, shape index: {}]
  %s8 = inlined_call_operand.vmem [shape: f32[1024,128], index: 8, kind: output, shape index: {}]
  %s9 = sld [smem:[#allocation0]]
  $region65: #{resblock_forward.7} parent=0
    _
  %s11 = ssub.s32 1, %s9
  %s12 = scalar_select 0, %s11, %s9
  loop: start=0, step=1, limit=4
  $region2: #{resblock_forward.7} parent=0 // loop_pre_header
    _
  $region3: #{resblock_forward.7} parent=0 // loop_header
    %s14 = sphi 0, %s18
    %p15 = scmp.ge.s32.totalorder %s14, 4
    %s24 = sphi 0, %s26
    %s27 = sphi 0, %s24
    %s28 = sphi 0, %s27
    %s44 = sphi 0, %s28
    %s48 = sphi 0, %s48
    %s50 = sphi 0, %s48
    %s51 = sphi 0, %s50
    %s65 = sphi 0, %s51
    %s69 = sphi 0, %s69
    %s71 = sphi 0, %s69
    %s72 = sphi 0, %s71
    %s86 = sphi 0, %s72
    %s90 = sphi 0, %s90
    %s92 = sphi 0, %s90
    %s93 = sphi 0, %s92
    %s107 = sphi 0, %s93
    %s111 = sphi 0, %s111
    %s113 = sphi 0, %s111
    %s114 = sphi 0, %s113
    %s128 = sphi 0, %s114
    %s134 = sphi 0, %s136
    %s137 = sphi 0, %s134
    %s138 = sphi 0, %s137
    %s154 = sphi 0, %s138
    %s158 = sphi 0, %s158
    %s160 = sphi 0, %s158
    %s161 = sphi 0, %s160
    %s175 = sphi 0, %s161
    %s179 = sphi 0, %s179
    %s181 = sphi 0, %s179
    %s182 = sphi 0, %s181
    %s196 = sphi 0, %s182
    %s202 = sphi 0, %s204
    %s205 = sphi 0, %s202
    %s206 = sphi 0, %s205
    %s222 = sphi 0, %s206
  $region4: #{resblock_forward.7} parent=0 // loop_header_branch
    %17 = sbr.rel (%p15) target = $region8
  $region5: #{resblock_forward.7} parent=0 // loop_body
    %s19 = ssub.s32 %s14, 1
    %s20 = ssub.s32 %s14, 2
    %s21 = sadd.s32 %s14, 1
    %s22 = ssub.s32 %s14, %s21
    %p23 = scmp.eq.s32.totalorder %s22, 0
    %s25 = sadd.s32 %s24, 1
    %s26 = scalar_select %p23, %s24, %s25
    %p29 = pneg %p23
    %p30 = scmp.eq.s32.totalorder %s14, 1
    %p31 = por %p29, %p30
    %p32 = scmp.ne.s32.totalorder %s24, %s27
    %p33 = scmp.eq.s32.totalorder %s14, 0
    %p34 = por %p32, %p33
    %p35 = scmp.ne.s32.totalorder %s24, %s27
    %p36 = scmp.eq.s32.totalorder %s19, 1
    %p37 = por %p35, %p36
    %p38 = scmp.ne.s32.totalorder %s27, %s28
    %p39 = scmp.eq.s32.totalorder %s19, 0
    %p40 = por %p38, %p39
    %p41 = scmp.ne.s32.totalorder %s27, %s28
    %p42 = scmp.eq.s32.totalorder %s20, 1
    %p43 = por %p41, %p42
    %p45 = scmp.ne.s32.totalorder %s28, %s44
    %p46 = scmp.eq.s32.totalorder %s20, 0
    %p47 = por %p45, %p46
    %s49 = sadd.s32 %s48, 1
    %p52 = scmp.eq.s32.totalorder %s14, 1
    %p53 = scmp.ne.s32.totalorder %s48, %s50
    %p54 = scmp.eq.s32.totalorder %s14, 0
    %p55 = por %p53, %p54
    %p56 = scmp.ne.s32.totalorder %s48, %s50
    %p57 = scmp.eq.s32.totalorder %s19, 1
    %p58 = por %p56, %p57
    %p59 = scmp.ne.s32.totalorder %s50, %s51
    %p60 = scmp.eq.s32.totalorder %s19, 0
    %p61 = por %p59, %p60
    %p62 = scmp.ne.s32.totalorder %s50, %s51
    %p63 = scmp.eq.s32.totalorder %s20, 1
    %p64 = por %p62, %p63
    %p66 = scmp.ne.s32.totalorder %s51, %s65
    %p67 = scmp.eq.s32.totalorder %s20, 0
    %p68 = por %p66, %p67
    %s70 = sadd.s32 %s69, 1
    %p73 = scmp.eq.s32.totalorder %s14, 1
    %p74 = scmp.ne.s32.totalorder %s69, %s71
    %p75 = scmp.eq.s32.totalorder %s14, 0
    %p76 = por %p74, %p75
    %p77 = scmp.ne.s32.totalorder %s69, %s71
    %p78 = scmp.eq.s32.totalorder %s19, 1
    %p79 = por %p77, %p78
    %p80 = scmp.ne.s32.totalorder %s71, %s72
    %p81 = scmp.eq.s32.totalorder %s19, 0
    %p82 = por %p80, %p81
    %p83 = scmp.ne.s32.totalorder %s71, %s72
    %p84 = scmp.eq.s32.totalorder %s20, 1
    %p85 = por %p83, %p84
    %p87 = scmp.ne.s32.totalorder %s72, %s86
    %p88 = scmp.eq.s32.totalorder %s20, 0
    %p89 = por %p87, %p88
    %s91 = sadd.s32 %s90, 1
    %p94 = scmp.eq.s32.totalorder %s14, 1
    %p95 = scmp.ne.s32.totalorder %s90, %s92
    %p96 = scmp.eq.s32.totalorder %s14, 0
    %p97 = por %p95, %p96
    %p98 = scmp.ne.s32.totalorder %s90, %s92
    %p99 = scmp.eq.s32.totalorder %s19, 1
    %p100 = por %p98, %p99
    %p101 = scmp.ne.s32.totalorder %s92, %s93
    %p102 = scmp.eq.s32.totalorder %s19, 0
    %p103 = por %p101, %p102
    %p104 = scmp.ne.s32.totalorder %s92, %s93
    %p105 = scmp.eq.s32.totalorder %s20, 1
    %p106 = por %p104, %p105
    %p108 = scmp.ne.s32.totalorder %s93, %s107
    %p109 = scmp.eq.s32.totalorder %s20, 0
    %p110 = por %p108, %p109
    %s112 = sadd.s32 %s111, 1
    %p115 = scmp.eq.s32.totalorder %s14, 1
    %p116 = scmp.ne.s32.totalorder %s111, %s113
    %p117 = scmp.eq.s32.totalorder %s14, 0
    %p118 = por %p116, %p117
    %p119 = scmp.ne.s32.totalorder %s111, %s113
    %p120 = scmp.eq.s32.totalorder %s19, 1
    %p121 = por %p119, %p120
    %p122 = scmp.ne.s32.totalorder %s113, %s114
    %p123 = scmp.eq.s32.totalorder %s19, 0
    %p124 = por %p122, %p123
    %p125 = scmp.ne.s32.totalorder %s113, %s114
    %p126 = scmp.eq.s32.totalorder %s20, 1
    %p127 = por %p125, %p126
    %p129 = scmp.ne.s32.totalorder %s114, %s128
    %p130 = scmp.eq.s32.totalorder %s20, 0
    %p131 = por %p129, %p130
    %s132 = ssub.s32 %s14, %s21
    %p133 = scmp.eq.s32.totalorder %s132, 0
    %s135 = sadd.s32 %s134, 1
    %s136 = scalar_select %p133, %s134, %s135
    %p139 = pneg %p133
    %p140 = scmp.eq.s32.totalorder %s14, 1
    %p141 = por %p139, %p140
    %p142 = scmp.ne.s32.totalorder %s134, %s137
    %p143 = scmp.eq.s32.totalorder %s14, 0
    %p144 = por %p142, %p143
    %p145 = scmp.ne.s32.totalorder %s134, %s137
    %p146 = scmp.eq.s32.totalorder %s19, 1
    %p147 = por %p145, %p146
    %p148 = scmp.ne.s32.totalorder %s137, %s138
    %p149 = scmp.eq.s32.totalorder %s19, 0
    %p150 = por %p148, %p149
    %p151 = scmp.ne.s32.totalorder %s137, %s138
    %p152 = scmp.eq.s32.totalorder %s20, 1
    %p153 = por %p151, %p152
    %p155 = scmp.ne.s32.totalorder %s138, %s154
    %p156 = scmp.eq.s32.totalorder %s20, 0
    %p157 = por %p155, %p156
    %s159 = sadd.s32 %s158, 1
    %p162 = scmp.eq.s32.totalorder %s14, 1
    %p163 = scmp.ne.s32.totalorder %s158, %s160
    %p164 = scmp.eq.s32.totalorder %s14, 0
    %p165 = por %p163, %p164
    %p166 = scmp.ne.s32.totalorder %s158, %s160
    %p167 = scmp.eq.s32.totalorder %s19, 1
    %p168 = por %p166, %p167
    %p169 = scmp.ne.s32.totalorder %s160, %s161
    %p170 = scmp.eq.s32.totalorder %s19, 0
    %p171 = por %p169, %p170
    %p172 = scmp.ne.s32.totalorder %s160, %s161
    %p173 = scmp.eq.s32.totalorder %s20, 1
    %p174 = por %p172, %p173
    %p176 = scmp.ne.s32.totalorder %s161, %s175
    %p177 = scmp.eq.s32.totalorder %s20, 0
    %p178 = por %p176, %p177
    %s180 = sadd.s32 %s179, 1
    %p183 = scmp.eq.s32.totalorder %s14, 1
    %p184 = scmp.ne.s32.totalorder %s179, %s181
    %p185 = scmp.eq.s32.totalorder %s14, 0
    %p186 = por %p184, %p185
    %p187 = scmp.ne.s32.totalorder %s179, %s181
    %p188 = scmp.eq.s32.totalorder %s19, 1
    %p189 = por %p187, %p188
    %p190 = scmp.ne.s32.totalorder %s181, %s182
    %p191 = scmp.eq.s32.totalorder %s19, 0
    %p192 = por %p190, %p191
    %p193 = scmp.ne.s32.totalorder %s181, %s182
    %p194 = scmp.eq.s32.totalorder %s20, 1
    %p195 = por %p193, %p194
    %p197 = scmp.ne.s32.totalorder %s182, %s196
    %p198 = scmp.eq.s32.totalorder %s20, 0
    %p199 = por %p197, %p198
    %s200 = ssub.s32 %s14, %s21
    %p201 = scmp.eq.s32.totalorder %s200, 0
    %s203 = sadd.s32 %s202, 1
    %s204 = scalar_select %p201, %s202, %s203
    %p207 = pneg %p201
    %p208 = scmp.eq.s32.totalorder %s14, 1
    %p209 = por %p207, %p208
    %p210 = scmp.ne.s32.totalorder %s202, %s205
    %p211 = scmp.eq.s32.totalorder %s14, 0
    %p212 = por %p210, %p211
    %p213 = scmp.ne.s32.totalorder %s202, %s205
    %p214 = scmp.eq.s32.totalorder %s19, 1
    %p215 = por %p213, %p214
    %p216 = scmp.ne.s32.totalorder %s205, %s206
    %p217 = scmp.eq.s32.totalorder %s19, 0
    %p218 = por %p216, %p217
    %p219 = scmp.ne.s32.totalorder %s205, %s206
    %p220 = scmp.eq.s32.totalorder %s20, 1
    %p221 = por %p219, %p220
    %p223 = scmp.ne.s32.totalorder %s206, %s222
    %p224 = scmp.eq.s32.totalorder %s20, 0
    %p225 = por %p223, %p224
    %p226 = scmp.le.s32.totalorder 1, %s14
    %p227 = scmp.lt.s32.totalorder %s14, 3
    %p228 = pnand %p226, %p227
    %p229 = pneg %p228
    // Predicated region
    $region9: #{resblock_forward.7} parent=5 // pred_check
      _
    $region10: #{resblock_forward.7} parent=5 // pred_check_branch
      %231 = sbr.rel (%p228) target = $region12
    $region11: #{resblock_forward.7} parent=5 // pred_region
      %s232 = ssub.s32 %s14, 1
      // Predicated region
      $region13: #{resblock_forward.7} parent=11 // pred_check
        %p233 = pneg %p61
      $region14: #{resblock_forward.7} parent=11 // pred_check_branch
        %235 = sbr.rel (%p233) target = $region16
      $region15: #{resblock_forward.7} parent=11 // pred_region
        _
      $region16: #{resblock_forward.7} parent=11 // pred_fallthru
        _
      // Predicated region
      $region17: #{resblock_forward.7} parent=11 // pred_check
        %p236 = pneg %p82
      $region18: #{resblock_forward.7} parent=11 // pred_check_branch
        %238 = sbr.rel (%p236) target = $region20
      $region19: #{resblock_forward.7} parent=11 // pred_region
        _
      $region20: #{resblock_forward.7} parent=11 // pred_fallthru
        _
      // Predicated region
      $region21: #{resblock_forward.7} parent=11 // pred_check
        %p239 = pneg %p103
      $region22: #{resblock_forward.7} parent=11 // pred_check_branch
        %241 = sbr.rel (%p239) target = $region24
      $region23: #{resblock_forward.7} parent=11 // pred_region
        _
      $region24: #{resblock_forward.7} parent=11 // pred_fallthru
        _
      // Predicated region
      $region25: #{resblock_forward.7} parent=11 // pred_check
        %p242 = pneg %p124
      $region26: #{resblock_forward.7} parent=11 // pred_check_branch
        %244 = sbr.rel (%p242) target = $region28
      $region27: #{resblock_forward.7} parent=11 // pred_region
        _
      $region28: #{resblock_forward.7} parent=11 // pred_fallthru
        _
      // Predicated region
      $region29: #{resblock_forward.7} parent=11 // pred_check
        %p245 = pneg %p171
      $region30: #{resblock_forward.7} parent=11 // pred_check_branch
        %247 = sbr.rel (%p245) target = $region32
      $region31: #{resblock_forward.7} parent=11 // pred_region
        _
      $region32: #{resblock_forward.7} parent=11 // pred_fallthru
        _
      // Predicated region
      $region33: #{resblock_forward.7} parent=11 // pred_check
        %p248 = pneg %p192
      $region34: #{resblock_forward.7} parent=11 // pred_check_branch
        %250 = sbr.rel (%p248) target = $region36
      $region35: #{resblock_forward.7} parent=11 // pred_region
        _
      $region36: #{resblock_forward.7} parent=11 // pred_fallthru
        _
    $region12: #{resblock_forward.7} parent=5 // pred_fallthru
      _
    %p251 = scmp.lt.s32.totalorder %s14, 2
    // Predicated region
    $region37: #{resblock_forward.7} parent=5 // pred_check
      %p252 = pneg %p251
    $region38: #{resblock_forward.7} parent=5 // pred_check_branch
      %254 = sbr.rel (%p252) target = $region40
    $region39: #{resblock_forward.7} parent=5 // pred_region
      // Predicated region
      $region41: #{resblock_forward.7} parent=39 // pred_check
        %p255 = pneg %p34
      $region42: #{resblock_forward.7} parent=39 // pred_check_branch
        %257 = sbr.rel (%p255) target = $region44
      $region43: #{resblock_forward.7} parent=39 // pred_region
        %s258 = smul.u32 64, %s14
        %p259 = scmp.lt.s32.totalorder %s258, 127
        %s260 = scalar_select %p259, %s258, 127
        %s261 = smul.addr %s260, 8
        %s262 = scalar_lea.vmem %s0, %s261
        %s263 = smul.u32 64, %s14
      $region44: #{resblock_forward.7} parent=39 // pred_fallthru
        _
      // Predicated region
      $region45: #{resblock_forward.7} parent=39 // pred_check
        %p264 = pneg %p144
      $region46: #{resblock_forward.7} parent=39 // pred_check_branch
        %266 = sbr.rel (%p264) target = $region48
      $region47: #{resblock_forward.7} parent=39 // pred_region
        %s267 = smul.u32 64, %s14
        %p268 = scmp.lt.s32.totalorder %s267, 127
        %s269 = scalar_select %p268, %s267, 127
        %s270 = smul.addr %s269, 4
        %s271 = scalar_lea.vmem %s5, %s270
        %s272 = smul.u32 64, %s14
      $region48: #{resblock_forward.7} parent=39 // pred_fallthru
        _
    $region40: #{resblock_forward.7} parent=5 // pred_fallthru
      _
    %p273 = scmp.le.s32.totalorder 1, %s14
    %p274 = scmp.lt.s32.totalorder %s14, 3
    %p275 = pnand %p273, %p274
    %p276 = pneg %p275
    // Predicated region
    $region49: #{resblock_forward.7} parent=5 // pred_check
      _
    $region50: #{resblock_forward.7} parent=5 // pred_check_branch
      %278 = sbr.rel (%p275) target = $region52
    $region51: #{resblock_forward.7} parent=5 // pred_region
      %s279 = ssub.s32 %s14, 1
      %s280 = smul.u32 64, %s19
      %p281 = scmp.lt.s32.totalorder %s280, 127
      %s282 = scalar_select %p281, %s280, 127
      %s283 = smul.addr %s282, 8
      %s284 = scalar_lea.vmem %s0, %s283
      %p285 = pneg %p40
      %p286 = pneg %p37
      %p287 = pneg %p61
      %p288 = pneg %p58
      %p289 = pneg %p82
      %p290 = pneg %p79
      %p291 = pneg %p103
      %p292 = pneg %p100
      %p293 = pneg %p124
      %p294 = pneg %p121
      %s295 = smul.u32 64, %s19
      %p296 = scmp.lt.s32.totalorder %s295, 127
      %s297 = scalar_select %p296, %s295, 127
      %s298 = smul.addr %s297, 4
      %s299 = scalar_lea.vmem %s5, %s298
      %p300 = pneg %p150
      %p301 = pneg %p147
      %p302 = pneg %p171
      %p303 = pneg %p168
      %p304 = pneg %p192
      %p305 = pneg %p189
      %p306 = pneg %p218
      %p307 = pneg %p215
      %s308 = smul.u32 64, %s19
      %p309 = scmp.lt.s32.totalorder %s308, 127
      %s310 = scalar_select %p309, %s308, 127
      %s311 = smul.addr %s310, 8
      %s312 = scalar_lea.vmem %s8, %s311
      %s313 = smul.u32 64, %s19
      %p314 = scmp.lt.s32.totalorder %s313, 127
      %s315 = scalar_select %p314, %s313, 127
      %s316 = smul.addr %s315, 8
      %s317 = scalar_lea.vmem %s0, %s316
      %s318 = smul.u32 64, %s19
      %s319 = smul.u32 64, %s19
      %p320 = scmp.lt.s32.totalorder %s319, 127
      %s321 = scalar_select %p320, %s319, 127
      %s322 = smul.addr %s321, 4
      %s323 = scalar_lea.vmem %s5, %s322
      %s324 = smul.u32 64, %s19
      %s325 = smul.u32 64, %s19
      %p326 = scmp.lt.s32.totalorder %s325, 127
      %s327 = scalar_select %p326, %s325, 127
      %s328 = smul.addr %s327, 8
      %s329 = scalar_lea.vmem %s8, %s328
      %s330 = smul.u32 64, %s19
      %v331 = vld [vmem:[%s317] sm:$0xff]
      %v332 = vld [vmem:[%s317 + $0x8] sm:$0xff]
      %v333 = vld [vmem:[%s317 + $0x10] sm:$0xff]
      %v334 = vld [vmem:[%s317 + $0x18] sm:$0xff]
      %v335 = vld [vmem:[%s317 + $0x20] sm:$0xff]
      %v336 = vld [vmem:[%s317 + $0x28] sm:$0xff]
      %v337 = vld [vmem:[%s317 + $0x30] sm:$0xff]
      %v338 = vld [vmem:[%s317 + $0x38] sm:$0xff]
      %v339 = vld [vmem:[%s317 + $0x40] sm:$0xff]
      %v340 = vld [vmem:[%s317 + $0x48] sm:$0xff]
      %v341 = vld [vmem:[%s317 + $0x50] sm:$0xff]
      %v342 = vld [vmem:[%s317 + $0x58] sm:$0xff]
      %v343 = vld [vmem:[%s317 + $0x60] sm:$0xff]
      %v344 = vld [vmem:[%s317 + $0x68] sm:$0xff]
      %v345 = vld [vmem:[%s317 + $0x70] sm:$0xff]
      %v346 = vld [vmem:[%s317 + $0x78] sm:$0xff]
      %v347 = vld [vmem:[%s317 + $0x80] sm:$0xff]
      %v348 = vld [vmem:[%s317 + $0x88] sm:$0xff]
      %v349 = vld [vmem:[%s317 + $0x90] sm:$0xff]
      %v350 = vld [vmem:[%s317 + $0x98] sm:$0xff]
      %v351 = vld [vmem:[%s317 + $0xa0] sm:$0xff]
      %v352 = vld [vmem:[%s317 + $0xa8] sm:$0xff]
      %v353 = vld [vmem:[%s317 + $0xb0] sm:$0xff]
      %v354 = vld [vmem:[%s317 + $0xb8] sm:$0xff]
      %v355 = vld [vmem:[%s317 + $0xc0] sm:$0xff]
      %v356 = vld [vmem:[%s317 + $0xc8] sm:$0xff]
      %v357 = vld [vmem:[%s317 + $0xd0] sm:$0xff]
      %v358 = vld [vmem:[%s317 + $0xd8] sm:$0xff]
      %v359 = vld [vmem:[%s317 + $0xe0] sm:$0xff]
      %v360 = vld [vmem:[%s317 + $0xe8] sm:$0xff]
      %v361 = vld [vmem:[%s317 + $0xf0] sm:$0xff]
      %v362 = vld [vmem:[%s317 + $0xf8] sm:$0xff]
      %v363 = vld [vmem:[%s317 + $0x100] sm:$0xff]
      %v364 = vld [vmem:[%s317 + $0x108] sm:$0xff]
      %v365 = vld [vmem:[%s317 + $0x110] sm:$0xff]
      %v366 = vld [vmem:[%s317 + $0x118] sm:$0xff]
      %v367 = vld [vmem:[%s317 + $0x120] sm:$0xff]
      %v368 = vld [vmem:[%s317 + $0x128] sm:$0xff]
      %v369 = vld [vmem:[%s317 + $0x130] sm:$0xff]
      %v370 = vld [vmem:[%s317 + $0x138] sm:$0xff]
      %v371 = vld [vmem:[%s317 + $0x140] sm:$0xff]
      %v372 = vld [vmem:[%s317 + $0x148] sm:$0xff]
      %v373 = vld [vmem:[%s317 + $0x150] sm:$0xff]
      %v374 = vld [vmem:[%s317 + $0x158] sm:$0xff]
      %v375 = vld [vmem:[%s317 + $0x160] sm:$0xff]
      %v376 = vld [vmem:[%s317 + $0x168] sm:$0xff]
      %v377 = vld [vmem:[%s317 + $0x170] sm:$0xff]
      %v378 = vld [vmem:[%s317 + $0x178] sm:$0xff]
      %v379 = vld [vmem:[%s317 + $0x180] sm:$0xff]
      %v380 = vld [vmem:[%s317 + $0x188] sm:$0xff]
      %v381 = vld [vmem:[%s317 + $0x190] sm:$0xff]
      %v382 = vld [vmem:[%s317 + $0x198] sm:$0xff]
      %v383 = vld [vmem:[%s317 + $0x1a0] sm:$0xff]
      %v384 = vld [vmem:[%s317 + $0x1a8] sm:$0xff]
      %v385 = vld [vmem:[%s317 + $0x1b0] sm:$0xff]
      %v386 = vld [vmem:[%s317 + $0x1b8] sm:$0xff]
      %v387 = vld [vmem:[%s317 + $0x1c0] sm:$0xff]
      %v388 = vld [vmem:[%s317 + $0x1c8] sm:$0xff]
      %v389 = vld [vmem:[%s317 + $0x1d0] sm:$0xff]
      %v390 = vld [vmem:[%s317 + $0x1d8] sm:$0xff]
      %v391 = vld [vmem:[%s317 + $0x1e0] sm:$0xff]
      %v392 = vld [vmem:[%s317 + $0x1e8] sm:$0xff]
      %v393 = vld [vmem:[%s317 + $0x1f0] sm:$0xff]
      %v394 = vld [vmem:[%s317 + $0x1f8] sm:$0xff]
      %v395 = vld [vmem:[%s1] sm:$0x1]
      %v396 = vmul.f32 %v395, 0.0009765625
      %v397 = vld [vmem:[%s2] sm:$0x1]
      %v398 = vmul.f32 %v397, 0.0009765625
      %v399 = vmul.f32 %v396, %v396
      %v400 = vsub.f32 %v398, %v399
      %v401 = vld [vmem:[%s3] sm:$0x1]
      %v402 = vadd.f32 %v400, 1e-05
      %v403 = vrsqrt.pop %v402
      %v404 = vmul.f32 %v403, %v402
      %v405 = vmul.f32 %v404, %v403
      %v406 = vmul.f32 0.5, %v405
      %v407 = vsub.f32 1.5, %v406
      %v408 = vmul.f32 %v403, %v407
      %vm409 = vweird.f32 %v402
      %vm410 = vweird.f32 %v403
      %vm411 = vmor %vm409, %vm410
      %v412 = vsel %vm411, %v403, %v408
      %v413 = vmul.f32 %v401, %v412
      %v415 = vperm.slane %v396, 0
      %v417 = vsub.f32 %v331, %v415
      %v418 = vsub.f32 %v332, %v415
      %v419 = vsub.f32 %v333, %v415
      %v420 = vsub.f32 %v334, %v415
      %v421 = vsub.f32 %v335, %v415
      %v422 = vsub.f32 %v336, %v415
      %v423 = vsub.f32 %v337, %v415
      %v424 = vsub.f32 %v338, %v415
      %v425 = vsub.f32 %v339, %v415
      %v426 = vsub.f32 %v340, %v415
      %v427 = vsub.f32 %v341, %v415
      %v428 = vsub.f32 %v342, %v415
      %v429 = vsub.f32 %v343, %v415
      %v430 = vsub.f32 %v344, %v415
      %v431 = vsub.f32 %v345, %v415
      %v432 = vsub.f32 %v346, %v415
      %v433 = vsub.f32 %v347, %v415
      %v434 = vsub.f32 %v348, %v415
      %v435 = vsub.f32 %v349, %v415
      %v436 = vsub.f32 %v350, %v415
      %v437 = vsub.f32 %v351, %v415
      %v438 = vsub.f32 %v352, %v415
      %v439 = vsub.f32 %v353, %v415
      %v440 = vsub.f32 %v354, %v415
      %v441 = vsub.f32 %v355, %v415
      %v442 = vsub.f32 %v356, %v415
      %v443 = vsub.f32 %v357, %v415
      %v444 = vsub.f32 %v358, %v415
      %v445 = vsub.f32 %v359, %v415
      %v446 = vsub.f32 %v360, %v415
      %v447 = vsub.f32 %v361, %v415
      %v448 = vsub.f32 %v362, %v415
      %v449 = vsub.f32 %v363, %v415
      %v450 = vsub.f32 %v364, %v415
      %v451 = vsub.f32 %v365, %v415
      %v452 = vsub.f32 %v366, %v415
      %v453 = vsub.f32 %v367, %v415
      %v454 = vsub.f32 %v368, %v415
      %v455 = vsub.f32 %v369, %v415
      %v456 = vsub.f32 %v370, %v415
      %v457 = vsub.f32 %v371, %v415
      %v458 = vsub.f32 %v372, %v415
      %v459 = vsub.f32 %v373, %v415
      %v460 = vsub.f32 %v374, %v415
      %v461 = vsub.f32 %v375, %v415
      %v462 = vsub.f32 %v376, %v415
      %v463 = vsub.f32 %v377, %v415
      %v464 = vsub.f32 %v378, %v415
      %v465 = vsub.f32 %v379, %v415
      %v466 = vsub.f32 %v380, %v415
      %v467 = vsub.f32 %v381, %v415
      %v468 = vsub.f32 %v382, %v415
      %v469 = vsub.f32 %v383, %v415
      %v470 = vsub.f32 %v384, %v415
      %v471 = vsub.f32 %v385, %v415
      %v472 = vsub.f32 %v386, %v415
      %v473 = vsub.f32 %v387, %v415
      %v474 = vsub.f32 %v388, %v415
      %v475 = vsub.f32 %v389, %v415
      %v476 = vsub.f32 %v390, %v415
      %v477 = vsub.f32 %v391, %v415
      %v478 = vsub.f32 %v392, %v415
      %v479 = vsub.f32 %v393, %v415
      %v480 = vsub.f32 %v394, %v415
      %v482 = vperm.slane %v413, 0
      %v484 = vmul.f32 %v417, %v482
      %v485 = vmul.f32 %v418, %v482
      %v486 = vmul.f32 %v419, %v482
      %v487 = vmul.f32 %v420, %v482
      %v488 = vmul.f32 %v421, %v482
      %v489 = vmul.f32 %v422, %v482
      %v490 = vmul.f32 %v423, %v482
      %v491 = vmul.f32 %v424, %v482
      %v492 = vmul.f32 %v425, %v482
      %v493 = vmul.f32 %v426, %v482
      %v494 = vmul.f32 %v427, %v482
      %v495 = vmul.f32 %v428, %v482
      %v496 = vmul.f32 %v429, %v482
      %v497 = vmul.f32 %v430, %v482
      %v498 = vmul.f32 %v431, %v482
      %v499 = vmul.f32 %v432, %v482
      %v500 = vmul.f32 %v433, %v482
      %v501 = vmul.f32 %v434, %v482
      %v502 = vmul.f32 %v435, %v482
      %v503 = vmul.f32 %v436, %v482
      %v504 = vmul.f32 %v437, %v482
      %v505 = vmul.f32 %v438, %v482
      %v506 = vmul.f32 %v439, %v482
      %v507 = vmul.f32 %v440, %v482
      %v508 = vmul.f32 %v441, %v482
      %v509 = vmul.f32 %v442, %v482
      %v510 = vmul.f32 %v443, %v482
      %v511 = vmul.f32 %v444, %v482
      %v512 = vmul.f32 %v445, %v482
      %v513 = vmul.f32 %v446, %v482
      %v514 = vmul.f32 %v447, %v482
      %v515 = vmul.f32 %v448, %v482
      %v516 = vmul.f32 %v449, %v482
      %v517 = vmul.f32 %v450, %v482
      %v518 = vmul.f32 %v451, %v482
      %v519 = vmul.f32 %v452, %v482
      %v520 = vmul.f32 %v453, %v482
      %v521 = vmul.f32 %v454, %v482
      %v522 = vmul.f32 %v455, %v482
      %v523 = vmul.f32 %v456, %v482
      %v524 = vmul.f32 %v457, %v482
      %v525 = vmul.f32 %v458, %v482
      %v526 = vmul.f32 %v459, %v482
      %v527 = vmul.f32 %v460, %v482
      %v528 = vmul.f32 %v461, %v482
      %v529 = vmul.f32 %v462, %v482
      %v530 = vmul.f32 %v463, %v482
      %v531 = vmul.f32 %v464, %v482
      %v532 = vmul.f32 %v465, %v482
      %v533 = vmul.f32 %v466, %v482
      %v534 = vmul.f32 %v467, %v482
      %v535 = vmul.f32 %v468, %v482
      %v536 = vmul.f32 %v469, %v482
      %v537 = vmul.f32 %v470, %v482
      %v538 = vmul.f32 %v471, %v482
      %v539 = vmul.f32 %v472, %v482
      %v540 = vmul.f32 %v473, %v482
      %v541 = vmul.f32 %v474, %v482
      %v542 = vmul.f32 %v475, %v482
      %v543 = vmul.f32 %v476, %v482
      %v544 = vmul.f32 %v477, %v482
      %v545 = vmul.f32 %v478, %v482
      %v546 = vmul.f32 %v479, %v482
      %v547 = vmul.f32 %v480, %v482
      %v548 = vld [vmem:[%s4] sm:$0x1]
      %v550 = vperm.slane %v548, 0
      %v552 = vadd.f32 %v484, %v550
      %v553 = vadd.f32 %v485, %v550
      %v554 = vadd.f32 %v486, %v550
      %v555 = vadd.f32 %v487, %v550
      %v556 = vadd.f32 %v488, %v550
      %v557 = vadd.f32 %v489, %v550
      %v558 = vadd.f32 %v490, %v550
      %v559 = vadd.f32 %v491, %v550
      %v560 = vadd.f32 %v492, %v550
      %v561 = vadd.f32 %v493, %v550
      %v562 = vadd.f32 %v494, %v550
      %v563 = vadd.f32 %v495, %v550
      %v564 = vadd.f32 %v496, %v550
      %v565 = vadd.f32 %v497, %v550
      %v566 = vadd.f32 %v498, %v550
      %v567 = vadd.f32 %v499, %v550
      %v568 = vadd.f32 %v500, %v550
      %v569 = vadd.f32 %v501, %v550
      %v570 = vadd.f32 %v502, %v550
      %v571 = vadd.f32 %v503, %v550
      %v572 = vadd.f32 %v504, %v550
      %v573 = vadd.f32 %v505, %v550
      %v574 = vadd.f32 %v506, %v550
      %v575 = vadd.f32 %v507, %v550
      %v576 = vadd.f32 %v508, %v550
      %v577 = vadd.f32 %v509, %v550
      %v578 = vadd.f32 %v510, %v550
      %v579 = vadd.f32 %v511, %v550
      %v580 = vadd.f32 %v512, %v550
      %v581 = vadd.f32 %v513, %v550
      %v582 = vadd.f32 %v514, %v550
      %v583 = vadd.f32 %v515, %v550
      %v584 = vadd.f32 %v516, %v550
      %v585 = vadd.f32 %v517, %v550
      %v586 = vadd.f32 %v518, %v550
      %v587 = vadd.f32 %v519, %v550
      %v588 = vadd.f32 %v520, %v550
      %v589 = vadd.f32 %v521, %v550
      %v590 = vadd.f32 %v522, %v550
      %v591 = vadd.f32 %v523, %v550
      %v592 = vadd.f32 %v524, %v550
      %v593 = vadd.f32 %v525, %v550
      %v594 = vadd.f32 %v526, %v550
      %v595 = vadd.f32 %v527, %v550
      %v596 = vadd.f32 %v528, %v550
      %v597 = vadd.f32 %v529, %v550
      %v598 = vadd.f32 %v530, %v550
      %v599 = vadd.f32 %v531, %v550
      %v600 = vadd.f32 %v532, %v550
      %v601 = vadd.f32 %v533, %v550
      %v602 = vadd.f32 %v534, %v550
      %v603 = vadd.f32 %v535, %v550
      %v604 = vadd.f32 %v536, %v550
      %v605 = vadd.f32 %v537, %v550
      %v606 = vadd.f32 %v538, %v550
      %v607 = vadd.f32 %v539, %v550
      %v608 = vadd.f32 %v540, %v550
      %v609 = vadd.f32 %v541, %v550
      %v610 = vadd.f32 %v542, %v550
      %v611 = vadd.f32 %v543, %v550
      %v612 = vadd.f32 %v544, %v550
      %v613 = vadd.f32 %v545, %v550
      %v614 = vadd.f32 %v546, %v550
      %v615 = vadd.f32 %v547, %v550
      %v616 = vld [vmem:[%s323] sm:$0xf]
      %v617 = vld [vmem:[%s323 + $0x4] sm:$0xf]
      %v618 = vld [vmem:[%s323 + $0x8] sm:$0xf]
      %v619 = vld [vmem:[%s323 + $0xc] sm:$0xf]
      %v620 = vld [vmem:[%s323 + $0x10] sm:$0xf]
      %v621 = vld [vmem:[%s323 + $0x14] sm:$0xf]
      %v622 = vld [vmem:[%s323 + $0x18] sm:$0xf]
      %v623 = vld [vmem:[%s323 + $0x1c] sm:$0xf]
      %v624 = vld [vmem:[%s323 + $0x20] sm:$0xf]
      %v625 = vld [vmem:[%s323 + $0x24] sm:$0xf]
      %v626 = vld [vmem:[%s323 + $0x28] sm:$0xf]
      %v627 = vld [vmem:[%s323 + $0x2c] sm:$0xf]
      %v628 = vld [vmem:[%s323 + $0x30] sm:$0xf]
      %v629 = vld [vmem:[%s323 + $0x34] sm:$0xf]
      %v630 = vld [vmem:[%s323 + $0x38] sm:$0xf]
      %v631 = vld [vmem:[%s323 + $0x3c] sm:$0xf]
      %v632 = vld [vmem:[%s323 + $0x40] sm:$0xf]
      %v633 = vld [vmem:[%s323 + $0x44] sm:$0xf]
      %v634 = vld [vmem:[%s323 + $0x48] sm:$0xf]
      %v635 = vld [vmem:[%s323 + $0x4c] sm:$0xf]
      %v636 = vld [vmem:[%s323 + $0x50] sm:$0xf]
      %v637 = vld [vmem:[%s323 + $0x54] sm:$0xf]
      %v638 = vld [vmem:[%s323 + $0x58] sm:$0xf]
      %v639 = vld [vmem:[%s323 + $0x5c] sm:$0xf]
      %v640 = vld [vmem:[%s323 + $0x60] sm:$0xf]
      %v641 = vld [vmem:[%s323 + $0x64] sm:$0xf]
      %v642 = vld [vmem:[%s323 + $0x68] sm:$0xf]
      %v643 = vld [vmem:[%s323 + $0x6c] sm:$0xf]
      %v644 = vld [vmem:[%s323 + $0x70] sm:$0xf]
      %v645 = vld [vmem:[%s323 + $0x74] sm:$0xf]
      %v646 = vld [vmem:[%s323 + $0x78] sm:$0xf]
      %v647 = vld [vmem:[%s323 + $0x7c] sm:$0xf]
      %v648 = vld [vmem:[%s323 + $0x80] sm:$0xf]
      %v649 = vld [vmem:[%s323 + $0x84] sm:$0xf]
      %v650 = vld [vmem:[%s323 + $0x88] sm:$0xf]
      %v651 = vld [vmem:[%s323 + $0x8c] sm:$0xf]
      %v652 = vld [vmem:[%s323 + $0x90] sm:$0xf]
      %v653 = vld [vmem:[%s323 + $0x94] sm:$0xf]
      %v654 = vld [vmem:[%s323 + $0x98] sm:$0xf]
      %v655 = vld [vmem:[%s323 + $0x9c] sm:$0xf]
      %v656 = vld [vmem:[%s323 + $0xa0] sm:$0xf]
      %v657 = vld [vmem:[%s323 + $0xa4] sm:$0xf]
      %v658 = vld [vmem:[%s323 + $0xa8] sm:$0xf]
      %v659 = vld [vmem:[%s323 + $0xac] sm:$0xf]
      %v660 = vld [vmem:[%s323 + $0xb0] sm:$0xf]
      %v661 = vld [vmem:[%s323 + $0xb4] sm:$0xf]
      %v662 = vld [vmem:[%s323 + $0xb8] sm:$0xf]
      %v663 = vld [vmem:[%s323 + $0xbc] sm:$0xf]
      %v664 = vld [vmem:[%s323 + $0xc0] sm:$0xf]
      %v665 = vld [vmem:[%s323 + $0xc4] sm:$0xf]
      %v666 = vld [vmem:[%s323 + $0xc8] sm:$0xf]
      %v667 = vld [vmem:[%s323 + $0xcc] sm:$0xf]
      %v668 = vld [vmem:[%s323 + $0xd0] sm:$0xf]
      %v669 = vld [vmem:[%s323 + $0xd4] sm:$0xf]
      %v670 = vld [vmem:[%s323 + $0xd8] sm:$0xf]
      %v671 = vld [vmem:[%s323 + $0xdc] sm:$0xf]
      %v672 = vld [vmem:[%s323 + $0xe0] sm:$0xf]
      %v673 = vld [vmem:[%s323 + $0xe4] sm:$0xf]
      %v674 = vld [vmem:[%s323 + $0xe8] sm:$0xf]
      %v675 = vld [vmem:[%s323 + $0xec] sm:$0xf]
      %v676 = vld [vmem:[%s323 + $0xf0] sm:$0xf]
      %v677 = vld [vmem:[%s323 + $0xf4] sm:$0xf]
      %v678 = vld [vmem:[%s323 + $0xf8] sm:$0xf]
      %v679 = vld [vmem:[%s323 + $0xfc] sm:$0xf]
      %v680 = vld [vmem:[%s6] sm:$0xf]
      %v681 = vld [vmem:[%s6 + $0x4] sm:$0xf]
      %v682 = vld [vmem:[%s6 + $0x8] sm:$0xf]
      %v683 = vld [vmem:[%s6 + $0xc] sm:$0xf]
      %v684 = vld [vmem:[%s6 + $0x10] sm:$0xf]
      %v685 = vld [vmem:[%s6 + $0x14] sm:$0xf]
      %v686 = vld [vmem:[%s6 + $0x18] sm:$0xf]
      %v687 = vld [vmem:[%s6 + $0x1c] sm:$0xf]
      %v688 = vld [vmem:[%s6 + $0x20] sm:$0xf]
      %v689 = vld [vmem:[%s6 + $0x24] sm:$0xf]
      %v690 = vld [vmem:[%s6 + $0x28] sm:$0xf]
      %v691 = vld [vmem:[%s6 + $0x2c] sm:$0xf]
      %v692 = vld [vmem:[%s6 + $0x30] sm:$0xf]
      %v693 = vld [vmem:[%s6 + $0x34] sm:$0xf]
      %v694 = vld [vmem:[%s6 + $0x38] sm:$0xf]
      %v695 = vld [vmem:[%s6 + $0x3c] sm:$0xf]
      %v696 = vld [vmem:[%s7] sm:$0x1]
      %v698 = vperm.slane %v696, 0
      %v764 = vunpack.c.l.b16 %v616
      %v765 = vunpack.c.l.b16 %v617
      %v766 = vunpack.c.l.b16 %v618
      %v767 = vunpack.c.l.b16 %v619
      %v768 = vunpack.c.l.b16 %v620
      %v769 = vunpack.c.l.b16 %v621
      %v770 = vunpack.c.l.b16 %v622
      %v771 = vunpack.c.l.b16 %v623
      %v772 = vunpack.c.l.b16 %v624
      %v773 = vunpack.c.l.b16 %v625
      %v774 = vunpack.c.l.b16 %v626
      %v775 = vunpack.c.l.b16 %v627
      %v776 = vunpack.c.l.b16 %v628
      %v777 = vunpack.c.l.b16 %v629
      %v778 = vunpack.c.l.b16 %v630
      %v779 = vunpack.c.l.b16 %v631
      %v780 = vunpack.c.l.b16 %v632
      %v781 = vunpack.c.l.b16 %v633
      %v782 = vunpack.c.l.b16 %v634
      %v783 = vunpack.c.l.b16 %v635
      %v784 = vunpack.c.l.b16 %v636
      %v785 = vunpack.c.l.b16 %v637
      %v786 = vunpack.c.l.b16 %v638
      %v787 = vunpack.c.l.b16 %v639
      %v788 = vunpack.c.l.b16 %v640
      %v789 = vunpack.c.l.b16 %v641
      %v790 = vunpack.c.l.b16 %v642
      %v791 = vunpack.c.l.b16 %v643
      %v792 = vunpack.c.l.b16 %v644
      %v793 = vunpack.c.l.b16 %v645
      %v794 = vunpack.c.l.b16 %v646
      %v795 = vunpack.c.l.b16 %v647
      %v796 = vunpack.c.l.b16 %v648
      %v797 = vunpack.c.l.b16 %v649
      %v798 = vunpack.c.l.b16 %v650
      %v799 = vunpack.c.l.b16 %v651
      %v800 = vunpack.c.l.b16 %v652
      %v801 = vunpack.c.l.b16 %v653
      %v802 = vunpack.c.l.b16 %v654
      %v803 = vunpack.c.l.b16 %v655
      %v804 = vunpack.c.l.b16 %v656
      %v805 = vunpack.c.l.b16 %v657
      %v806 = vunpack.c.l.b16 %v658
      %v807 = vunpack.c.l.b16 %v659
      %v808 = vunpack.c.l.b16 %v660
      %v809 = vunpack.c.l.b16 %v661
      %v810 = vunpack.c.l.b16 %v662
      %v811 = vunpack.c.l.b16 %v663
      %v812 = vunpack.c.l.b16 %v664
      %v813 = vunpack.c.l.b16 %v665
      %v814 = vunpack.c.l.b16 %v666
      %v815 = vunpack.c.l.b16 %v667
      %v816 = vunpack.c.l.b16 %v668
      %v817 = vunpack.c.l.b16 %v669
      %v818 = vunpack.c.l.b16 %v670
      %v819 = vunpack.c.l.b16 %v671
      %v820 = vunpack.c.l.b16 %v672
      %v821 = vunpack.c.l.b16 %v673
      %v822 = vunpack.c.l.b16 %v674
      %v823 = vunpack.c.l.b16 %v675
      %v824 = vunpack.c.l.b16 %v676
      %v825 = vunpack.c.l.b16 %v677
      %v826 = vunpack.c.l.b16 %v678
      %v827 = vunpack.c.l.b16 %v679
      %v828 = vpack.c.b16 %v765, %v764
      %v829 = vpack.c.b16 %v767, %v766
      %v830 = vpack.c.b16 %v769, %v768
      %v831 = vpack.c.b16 %v771, %v770
      %v832 = vpack.c.b16 %v773, %v772
      %v833 = vpack.c.b16 %v775, %v774
      %v834 = vpack.c.b16 %v777, %v776
      %v835 = vpack.c.b16 %v779, %v778
      %v836 = vpack.c.b16 %v781, %v780
      %v837 = vpack.c.b16 %v783, %v782
      %v838 = vpack.c.b16 %v785, %v784
      %v839 = vpack.c.b16 %v787, %v786
      %v840 = vpack.c.b16 %v789, %v788
      %v841 = vpack.c.b16 %v791, %v790
      %v842 = vpack.c.b16 %v793, %v792
      %v843 = vpack.c.b16 %v795, %v794
      %v844 = vpack.c.b16 %v797, %v796
      %v845 = vpack.c.b16 %v799, %v798
      %v846 = vpack.c.b16 %v801, %v800
      %v847 = vpack.c.b16 %v803, %v802
      %v848 = vpack.c.b16 %v805, %v804
      %v849 = vpack.c.b16 %v807, %v806
      %v850 = vpack.c.b16 %v809, %v808
      %v851 = vpack.c.b16 %v811, %v810
      %v852 = vpack.c.b16 %v813, %v812
      %v853 = vpack.c.b16 %v815, %v814
      %v854 = vpack.c.b16 %v817, %v816
      %v855 = vpack.c.b16 %v819, %v818
      %v856 = vpack.c.b16 %v821, %v820
      %v857 = vpack.c.b16 %v823, %v822
      %v858 = vpack.c.b16 %v825, %v824
      %v859 = vpack.c.b16 %v827, %v826
      %v908 = vunpack.c.l.b16 %v680
      %v909 = vunpack.c.l.b16 %v681
      %v910 = vunpack.c.l.b16 %v682
      %v911 = vunpack.c.l.b16 %v683
      %v912 = vunpack.c.l.b16 %v684
      %v913 = vunpack.c.l.b16 %v685
      %v914 = vunpack.c.l.b16 %v686
      %v915 = vunpack.c.l.b16 %v687
      %v916 = vunpack.c.l.b16 %v688
      %v917 = vunpack.c.l.b16 %v689
      %v918 = vunpack.c.l.b16 %v690
      %v919 = vunpack.c.l.b16 %v691
      %v920 = vunpack.c.l.b16 %v692
      %v921 = vunpack.c.l.b16 %v693
      %v922 = vunpack.c.l.b16 %v694
      %v923 = vunpack.c.l.b16 %v695
      %v924 = vpack.c.b16 %v909, %v908
      %v925 = vpack.c.b16 %v911, %v910
      %v926 = vpack.c.b16 %v913, %v912
      %v927 = vpack.c.b16 %v915, %v914
      %v928 = vpack.c.b16 %v917, %v916
      %v929 = vpack.c.b16 %v919, %v918
      %v930 = vpack.c.b16 %v921, %v920
      %v931 = vpack.c.b16 %v923, %v922
      %940 = vmatpush.bf16.msra.mxu0 %v931
      %941 = vmatpush.bf16.msra.mxu0 %v930
      %942 = vmatpush.bf16.msra.mxu0 %v929
      %943 = vmatpush.bf16.msra.mxu0 %v928
      %944 = vmatpush.bf16.msra.mxu0 %v927
      %945 = vmatpush.bf16.msra.mxu0 %v926
      %946 = vmatpush.bf16.msra.mxu0 %v925
      %947 = vmatpush.bf16.msra.mxu0 %v924
      %948 = vmatmul.bf16.gmra.mxu0 %v828
      %v949 = vpop.f32.mrf.mxu0
      %v950 = vadd.f32 %v698, %v949
      %v951 = vpop.f32.mrf.mxu0
      %v952 = vadd.f32 %v698, %v951
      %953 = vmatmul.bf16.gmra.mxu0 %v829
      %v954 = vpop.f32.mrf.mxu0
      %v955 = vadd.f32 %v698, %v954
      %v956 = vpop.f32.mrf.mxu0
      %v957 = vadd.f32 %v698, %v956
      %958 = vmatmul.bf16.gmra.mxu0 %v830
      %v959 = vpop.f32.mrf.mxu0
      %v960 = vadd.f32 %v698, %v959
      %v961 = vpop.f32.mrf.mxu0
      %v962 = vadd.f32 %v698, %v961
      %963 = vmatmul.bf16.gmra.mxu0 %v831
      %v964 = vpop.f32.mrf.mxu0
      %v965 = vadd.f32 %v698, %v964
      %v966 = vpop.f32.mrf.mxu0
      %v967 = vadd.f32 %v698, %v966
      %968 = vmatmul.bf16.gmra.mxu0 %v832
      %v969 = vpop.f32.mrf.mxu0
      %v970 = vadd.f32 %v698, %v969
      %v971 = vpop.f32.mrf.mxu0
      %v972 = vadd.f32 %v698, %v971
      %973 = vmatmul.bf16.gmra.mxu0 %v833
      %v974 = vpop.f32.mrf.mxu0
      %v975 = vadd.f32 %v698, %v974
      %v976 = vpop.f32.mrf.mxu0
      %v977 = vadd.f32 %v698, %v976
      %978 = vmatmul.bf16.gmra.mxu0 %v834
      %v979 = vpop.f32.mrf.mxu0
      %v980 = vadd.f32 %v698, %v979
      %v981 = vpop.f32.mrf.mxu0
      %v982 = vadd.f32 %v698, %v981
      %983 = vmatmul.bf16.gmra.mxu0 %v835
      %v984 = vpop.f32.mrf.mxu0
      %v985 = vadd.f32 %v698, %v984
      %v986 = vpop.f32.mrf.mxu0
      %v987 = vadd.f32 %v698, %v986
      %988 = vmatmul.bf16.gmra.mxu0 %v836
      %v989 = vpop.f32.mrf.mxu0
      %v990 = vadd.f32 %v698, %v989
      %v991 = vpop.f32.mrf.mxu0
      %v992 = vadd.f32 %v698, %v991
      %993 = vmatmul.bf16.gmra.mxu0 %v837
      %v994 = vpop.f32.mrf.mxu0
      %v995 = vadd.f32 %v698, %v994
      %v996 = vpop.f32.mrf.mxu0
      %v997 = vadd.f32 %v698, %v996
      %998 = vmatmul.bf16.gmra.mxu0 %v838
      %v999 = vpop.f32.mrf.mxu0
      %v1000 = vadd.f32 %v698, %v999
      %v1001 = vpop.f32.mrf.mxu0
      %v1002 = vadd.f32 %v698, %v1001
      %1003 = vmatmul.bf16.gmra.mxu0 %v839
      %v1004 = vpop.f32.mrf.mxu0
      %v1005 = vadd.f32 %v698, %v1004
      %v1006 = vpop.f32.mrf.mxu0
      %v1007 = vadd.f32 %v698, %v1006
      %1008 = vmatmul.bf16.gmra.mxu0 %v840
      %v1009 = vpop.f32.mrf.mxu0
      %v1010 = vadd.f32 %v698, %v1009
      %v1011 = vpop.f32.mrf.mxu0
      %v1012 = vadd.f32 %v698, %v1011
      %1013 = vmatmul.bf16.gmra.mxu0 %v841
      %v1014 = vpop.f32.mrf.mxu0
      %v1015 = vadd.f32 %v698, %v1014
      %v1016 = vpop.f32.mrf.mxu0
      %v1017 = vadd.f32 %v698, %v1016
      %1018 = vmatmul.bf16.gmra.mxu0 %v842
      %v1019 = vpop.f32.mrf.mxu0
      %v1020 = vadd.f32 %v698, %v1019
      %v1021 = vpop.f32.mrf.mxu0
      %v1022 = vadd.f32 %v698, %v1021
      %1023 = vmatmul.bf16.gmra.mxu0 %v843
      %v1024 = vpop.f32.mrf.mxu0
      %v1025 = vadd.f32 %v698, %v1024
      %v1026 = vpop.f32.mrf.mxu0
      %v1027 = vadd.f32 %v698, %v1026
      %1028 = vmatmul.bf16.gmra.mxu0 %v844
      %v1029 = vpop.f32.mrf.mxu0
      %v1030 = vadd.f32 %v698, %v1029
      %v1031 = vpop.f32.mrf.mxu0
      %v1032 = vadd.f32 %v698, %v1031
      %1033 = vmatmul.bf16.gmra.mxu0 %v845
      %v1034 = vpop.f32.mrf.mxu0
      %v1035 = vadd.f32 %v698, %v1034
      %v1036 = vpop.f32.mrf.mxu0
      %v1037 = vadd.f32 %v698, %v1036
      %1038 = vmatmul.bf16.gmra.mxu0 %v846
      %v1039 = vpop.f32.mrf.mxu0
      %v1040 = vadd.f32 %v698, %v1039
      %v1041 = vpop.f32.mrf.mxu0
      %v1042 = vadd.f32 %v698, %v1041
      %1043 = vmatmul.bf16.gmra.mxu0 %v847
      %v1044 = vpop.f32.mrf.mxu0
      %v1045 = vadd.f32 %v698, %v1044
      %v1046 = vpop.f32.mrf.mxu0
      %v1047 = vadd.f32 %v698, %v1046
      %1048 = vmatmul.bf16.gmra.mxu0 %v848
      %v1049 = vpop.f32.mrf.mxu0
      %v1050 = vadd.f32 %v698, %v1049
      %v1051 = vpop.f32.mrf.mxu0
      %v1052 = vadd.f32 %v698, %v1051
      %1053 = vmatmul.bf16.gmra.mxu0 %v849
      %v1054 = vpop.f32.mrf.mxu0
      %v1055 = vadd.f32 %v698, %v1054
      %v1056 = vpop.f32.mrf.mxu0
      %v1057 = vadd.f32 %v698, %v1056
      %1058 = vmatmul.bf16.gmra.mxu0 %v850
      %v1059 = vpop.f32.mrf.mxu0
      %v1060 = vadd.f32 %v698, %v1059
      %v1061 = vpop.f32.mrf.mxu0
      %v1062 = vadd.f32 %v698, %v1061
      %1063 = vmatmul.bf16.gmra.mxu0 %v851
      %v1064 = vpop.f32.mrf.mxu0
      %v1065 = vadd.f32 %v698, %v1064
      %v1066 = vpop.f32.mrf.mxu0
      %v1067 = vadd.f32 %v698, %v1066
      %1068 = vmatmul.bf16.gmra.mxu0 %v852
      %v1069 = vpop.f32.mrf.mxu0
      %v1070 = vadd.f32 %v698, %v1069
      %v1071 = vpop.f32.mrf.mxu0
      %v1072 = vadd.f32 %v698, %v1071
      %1073 = vmatmul.bf16.gmra.mxu0 %v853
      %v1074 = vpop.f32.mrf.mxu0
      %v1075 = vadd.f32 %v698, %v1074
      %v1076 = vpop.f32.mrf.mxu0
      %v1077 = vadd.f32 %v698, %v1076
      %1078 = vmatmul.bf16.gmra.mxu0 %v854
      %v1079 = vpop.f32.mrf.mxu0
      %v1080 = vadd.f32 %v698, %v1079
      %v1081 = vpop.f32.mrf.mxu0
      %v1082 = vadd.f32 %v698, %v1081
      %1083 = vmatmul.bf16.gmra.mxu0 %v855
      %v1084 = vpop.f32.mrf.mxu0
      %v1085 = vadd.f32 %v698, %v1084
      %v1086 = vpop.f32.mrf.mxu0
      %v1087 = vadd.f32 %v698, %v1086
      %1088 = vmatmul.bf16.gmra.mxu0 %v856
      %v1089 = vpop.f32.mrf.mxu0
      %v1090 = vadd.f32 %v698, %v1089
      %v1091 = vpop.f32.mrf.mxu0
      %v1092 = vadd.f32 %v698, %v1091
      %1093 = vmatmul.bf16.gmra.mxu0 %v857
      %v1094 = vpop.f32.mrf.mxu0
      %v1095 = vadd.f32 %v698, %v1094
      %v1096 = vpop.f32.mrf.mxu0
      %v1097 = vadd.f32 %v698, %v1096
      %1098 = vmatmul.bf16.gmra.mxu0 %v858
      %v1099 = vpop.f32.mrf.mxu0
      %v1100 = vadd.f32 %v698, %v1099
      %v1101 = vpop.f32.mrf.mxu0
      %v1102 = vadd.f32 %v698, %v1101
      %1103 = vmatmul.bf16.gmra.mxu0 %v859
      %v1104 = vpop.f32.mrf.mxu0
      %v1105 = vadd.f32 %v698, %v1104
      %v1106 = vpop.f32.mrf.mxu0
      %v1107 = vadd.f32 %v698, %v1106
      %1108 = vdwg.mxu0
      %v1109 = vadd.f32 %v552, %v950
      %v1110 = vadd.f32 %v553, %v952
      %v1111 = vadd.f32 %v554, %v955
      %v1112 = vadd.f32 %v555, %v957
      %v1113 = vadd.f32 %v556, %v960
      %v1114 = vadd.f32 %v557, %v962
      %v1115 = vadd.f32 %v558, %v965
      %v1116 = vadd.f32 %v559, %v967
      %v1117 = vadd.f32 %v560, %v970
      %v1118 = vadd.f32 %v561, %v972
      %v1119 = vadd.f32 %v562, %v975
      %v1120 = vadd.f32 %v563, %v977
      %v1121 = vadd.f32 %v564, %v980
      %v1122 = vadd.f32 %v565, %v982
      %v1123 = vadd.f32 %v566, %v985
      %v1124 = vadd.f32 %v567, %v987
      %v1125 = vadd.f32 %v568, %v990
      %v1126 = vadd.f32 %v569, %v992
      %v1127 = vadd.f32 %v570, %v995
      %v1128 = vadd.f32 %v571, %v997
      %v1129 = vadd.f32 %v572, %v1000
      %v1130 = vadd.f32 %v573, %v1002
      %v1131 = vadd.f32 %v574, %v1005
      %v1132 = vadd.f32 %v575, %v1007
      %v1133 = vadd.f32 %v576, %v1010
      %v1134 = vadd.f32 %v577, %v1012
      %v1135 = vadd.f32 %v578, %v1015
      %v1136 = vadd.f32 %v579, %v1017
      %v1137 = vadd.f32 %v580, %v1020
      %v1138 = vadd.f32 %v581, %v1022
      %v1139 = vadd.f32 %v582, %v1025
      %v1140 = vadd.f32 %v583, %v1027
      %v1141 = vadd.f32 %v584, %v1030
      %v1142 = vadd.f32 %v585, %v1032
      %v1143 = vadd.f32 %v586, %v1035
      %v1144 = vadd.f32 %v587, %v1037
      %v1145 = vadd.f32 %v588, %v1040
      %v1146 = vadd.f32 %v589, %v1042
      %v1147 = vadd.f32 %v590, %v1045
      %v1148 = vadd.f32 %v591, %v1047
      %v1149 = vadd.f32 %v592, %v1050
      %v1150 = vadd.f32 %v593, %v1052
      %v1151 = vadd.f32 %v594, %v1055
      %v1152 = vadd.f32 %v595, %v1057
      %v1153 = vadd.f32 %v596, %v1060
      %v1154 = vadd.f32 %v597, %v1062
      %v1155 = vadd.f32 %v598, %v1065
      %v1156 = vadd.f32 %v599, %v1067
      %v1157 = vadd.f32 %v600, %v1070
      %v1158 = vadd.f32 %v601, %v1072
      %v1159 = vadd.f32 %v602, %v1075
      %v1160 = vadd.f32 %v603, %v1077
      %v1161 = vadd.f32 %v604, %v1080
      %v1162 = vadd.f32 %v605, %v1082
      %v1163 = vadd.f32 %v606, %v1085
      %v1164 = vadd.f32 %v607, %v1087
      %v1165 = vadd.f32 %v608, %v1090
      %v1166 = vadd.f32 %v609, %v1092
      %v1167 = vadd.f32 %v610, %v1095
      %v1168 = vadd.f32 %v611, %v1097
      %v1169 = vadd.f32 %v612, %v1100
      %v1170 = vadd.f32 %v613, %v1102
      %v1171 = vadd.f32 %v614, %v1105
      %v1172 = vadd.f32 %v615, %v1107
      %v1173 = vmax.f32 %v1109, 0.0
      %v1174 = vmax.f32 %v1110, 0.0
      %v1175 = vmax.f32 %v1111, 0.0
      %v1176 = vmax.f32 %v1112, 0.0
      %v1177 = vmax.f32 %v1113, 0.0
      %v1178 = vmax.f32 %v1114, 0.0
      %v1179 = vmax.f32 %v1115, 0.0
      %v1180 = vmax.f32 %v1116, 0.0
      %v1181 = vmax.f32 %v1117, 0.0
      %v1182 = vmax.f32 %v1118, 0.0
      %v1183 = vmax.f32 %v1119, 0.0
      %v1184 = vmax.f32 %v1120, 0.0
      %v1185 = vmax.f32 %v1121, 0.0
      %v1186 = vmax.f32 %v1122, 0.0
      %v1187 = vmax.f32 %v1123, 0.0
      %v1188 = vmax.f32 %v1124, 0.0
      %v1189 = vmax.f32 %v1125, 0.0
      %v1190 = vmax.f32 %v1126, 0.0
      %v1191 = vmax.f32 %v1127, 0.0
      %v1192 = vmax.f32 %v1128, 0.0
      %v1193 = vmax.f32 %v1129, 0.0
      %v1194 = vmax.f32 %v1130, 0.0
      %v1195 = vmax.f32 %v1131, 0.0
      %v1196 = vmax.f32 %v1132, 0.0
      %v1197 = vmax.f32 %v1133, 0.0
      %v1198 = vmax.f32 %v1134, 0.0
      %v1199 = vmax.f32 %v1135, 0.0
      %v1200 = vmax.f32 %v1136, 0.0
      %v1201 = vmax.f32 %v1137, 0.0
      %v1202 = vmax.f32 %v1138, 0.0
      %v1203 = vmax.f32 %v1139, 0.0
      %v1204 = vmax.f32 %v1140, 0.0
      %v1205 = vmax.f32 %v1141, 0.0
      %v1206 = vmax.f32 %v1142, 0.0
      %v1207 = vmax.f32 %v1143, 0.0
      %v1208 = vmax.f32 %v1144, 0.0
      %v1209 = vmax.f32 %v1145, 0.0
      %v1210 = vmax.f32 %v1146, 0.0
      %v1211 = vmax.f32 %v1147, 0.0
      %v1212 = vmax.f32 %v1148, 0.0
      %v1213 = vmax.f32 %v1149, 0.0
      %v1214 = vmax.f32 %v1150, 0.0
      %v1215 = vmax.f32 %v1151, 0.0
      %v1216 = vmax.f32 %v1152, 0.0
      %v1217 = vmax.f32 %v1153, 0.0
      %v1218 = vmax.f32 %v1154, 0.0
      %v1219 = vmax.f32 %v1155, 0.0
      %v1220 = vmax.f32 %v1156, 0.0
      %v1221 = vmax.f32 %v1157, 0.0
      %v1222 = vmax.f32 %v1158, 0.0
      %v1223 = vmax.f32 %v1159, 0.0
      %v1224 = vmax.f32 %v1160, 0.0
      %v1225 = vmax.f32 %v1161, 0.0
      %v1226 = vmax.f32 %v1162, 0.0
      %v1227 = vmax.f32 %v1163, 0.0
      %v1228 = vmax.f32 %v1164, 0.0
      %v1229 = vmax.f32 %v1165, 0.0
      %v1230 = vmax.f32 %v1166, 0.0
      %v1231 = vmax.f32 %v1167, 0.0
      %v1232 = vmax.f32 %v1168, 0.0
      %v1233 = vmax.f32 %v1169, 0.0
      %v1234 = vmax.f32 %v1170, 0.0
      %v1235 = vmax.f32 %v1171, 0.0
      %v1236 = vmax.f32 %v1172, 0.0
      %1237 = vst [vmem:[%s329] sm:$0xff] %v1173
      %1238 = vst [vmem:[%s329 + $0x8] sm:$0xff] %v1174
      %1239 = vst [vmem:[%s329 + $0x10] sm:$0xff] %v1175
      %1240 = vst [vmem:[%s329 + $0x18] sm:$0xff] %v1176
      %1241 = vst [vmem:[%s329 + $0x20] sm:$0xff] %v1177
      %1242 = vst [vmem:[%s329 + $0x28] sm:$0xff] %v1178
      %1243 = vst [vmem:[%s329 + $0x30] sm:$0xff] %v1179
      %1244 = vst [vmem:[%s329 + $0x38] sm:$0xff] %v1180
      %1245 = vst [vmem:[%s329 + $0x40] sm:$0xff] %v1181
      %1246 = vst [vmem:[%s329 + $0x48] sm:$0xff] %v1182
      %1247 = vst [vmem:[%s329 + $0x50] sm:$0xff] %v1183
      %1248 = vst [vmem:[%s329 + $0x58] sm:$0xff] %v1184
      %1249 = vst [vmem:[%s329 + $0x60] sm:$0xff] %v1185
      %1250 = vst [vmem:[%s329 + $0x68] sm:$0xff] %v1186
      %1251 = vst [vmem:[%s329 + $0x70] sm:$0xff] %v1187
      %1252 = vst [vmem:[%s329 + $0x78] sm:$0xff] %v1188
      %1253 = vst [vmem:[%s329 + $0x80] sm:$0xff] %v1189
      %1254 = vst [vmem:[%s329 + $0x88] sm:$0xff] %v1190
      %1255 = vst [vmem:[%s329 + $0x90] sm:$0xff] %v1191
      %1256 = vst [vmem:[%s329 + $0x98] sm:$0xff] %v1192
      %1257 = vst [vmem:[%s329 + $0xa0] sm:$0xff] %v1193
      %1258 = vst [vmem:[%s329 + $0xa8] sm:$0xff] %v1194
      %1259 = vst [vmem:[%s329 + $0xb0] sm:$0xff] %v1195
      %1260 = vst [vmem:[%s329 + $0xb8] sm:$0xff] %v1196
      %1261 = vst [vmem:[%s329 + $0xc0] sm:$0xff] %v1197
      %1262 = vst [vmem:[%s329 + $0xc8] sm:$0xff] %v1198
      %1263 = vst [vmem:[%s329 + $0xd0] sm:$0xff] %v1199
      %1264 = vst [vmem:[%s329 + $0xd8] sm:$0xff] %v1200
      %1265 = vst [vmem:[%s329 + $0xe0] sm:$0xff] %v1201
      %1266 = vst [vmem:[%s329 + $0xe8] sm:$0xff] %v1202
      %1267 = vst [vmem:[%s329 + $0xf0] sm:$0xff] %v1203
      %1268 = vst [vmem:[%s329 + $0xf8] sm:$0xff] %v1204
      %1269 = vst [vmem:[%s329 + $0x100] sm:$0xff] %v1205
      %1270 = vst [vmem:[%s329 + $0x108] sm:$0xff] %v1206
      %1271 = vst [vmem:[%s329 + $0x110] sm:$0xff] %v1207
      %1272 = vst [vmem:[%s329 + $0x118] sm:$0xff] %v1208
      %1273 = vst [vmem:[%s329 + $0x120] sm:$0xff] %v1209
      %1274 = vst [vmem:[%s329 + $0x128] sm:$0xff] %v1210
      %1275 = vst [vmem:[%s329 + $0x130] sm:$0xff] %v1211
      %1276 = vst [vmem:[%s329 + $0x138] sm:$0xff] %v1212
      %1277 = vst [vmem:[%s329 + $0x140] sm:$0xff] %v1213
      %1278 = vst [vmem:[%s329 + $0x148] sm:$0xff] %v1214
      %1279 = vst [vmem:[%s329 + $0x150] sm:$0xff] %v1215
      %1280 = vst [vmem:[%s329 + $0x158] sm:$0xff] %v1216
      %1281 = vst [vmem:[%s329 + $0x160] sm:$0xff] %v1217
      %1282 = vst [vmem:[%s329 + $0x168] sm:$0xff] %v1218
      %1283 = vst [vmem:[%s329 + $0x170] sm:$0xff] %v1219
      %1284 = vst [vmem:[%s329 + $0x178] sm:$0xff] %v1220
      %1285 = vst [vmem:[%s329 + $0x180] sm:$0xff] %v1221
      %1286 = vst [vmem:[%s329 + $0x188] sm:$0xff] %v1222
      %1287 = vst [vmem:[%s329 + $0x190] sm:$0xff] %v1223
      %1288 = vst [vmem:[%s329 + $0x198] sm:$0xff] %v1224
      %1289 = vst [vmem:[%s329 + $0x1a0] sm:$0xff] %v1225
      %1290 = vst [vmem:[%s329 + $0x1a8] sm:$0xff] %v1226
      %1291 = vst [vmem:[%s329 + $0x1b0] sm:$0xff] %v1227
      %1292 = vst [vmem:[%s329 + $0x1b8] sm:$0xff] %v1228
      %1293 = vst [vmem:[%s329 + $0x1c0] sm:$0xff] %v1229
      %1294 = vst [vmem:[%s329 + $0x1c8] sm:$0xff] %v1230
      %1295 = vst [vmem:[%s329 + $0x1d0] sm:$0xff] %v1231
      %1296 = vst [vmem:[%s329 + $0x1d8] sm:$0xff] %v1232
      %1297 = vst [vmem:[%s329 + $0x1e0] sm:$0xff] %v1233
      %1298 = vst [vmem:[%s329 + $0x1e8] sm:$0xff] %v1234
      %1299 = vst [vmem:[%s329 + $0x1f0] sm:$0xff] %v1235
      %1300 = vst [vmem:[%s329 + $0x1f8] sm:$0xff] %v1236
      %s1301 = smul.u32 64, %s19
      %p1302 = scmp.lt.s32.totalorder %s1301, 127
      %s1303 = scalar_select %p1302, %s1301, 127
      %s1304 = smul.addr %s1303, 8
      %s1305 = scalar_lea.vmem %s8, %s1304
      // Predicated region
      $region53: #{resblock_forward.7} parent=51 // pred_check
        %p1306 = pneg %p215
      $region54: #{resblock_forward.7} parent=51 // pred_check_branch
        %1308 = sbr.rel (%p1306) target = $region56
      $region55: #{resblock_forward.7} parent=51 // pred_region
        %s1309 = smul.u32 64, %s19
      $region56: #{resblock_forward.7} parent=51 // pred_fallthru
        _
    $region52: #{resblock_forward.7} parent=5 // pred_fallthru
      _
    %p1310 = scmp.le.s32.totalorder 2, %s14
    // Predicated region
    $region57: #{resblock_forward.7} parent=5 // pred_check
      %p1311 = pneg %p1310
    $region58: #{resblock_forward.7} parent=5 // pred_check_branch
      %1313 = sbr.rel (%p1311) target = $region60
    $region59: #{resblock_forward.7} parent=5 // pred_region
      %s1314 = ssub.s32 %s14, 2
      // Predicated region
      $region61: #{resblock_forward.7} parent=59 // pred_check
        %p1315 = pneg %p221
      $region62: #{resblock_forward.7} parent=59 // pred_check_branch
        %1317 = sbr.rel (%p1315) target = $region64
      $region63: #{resblock_forward.7} parent=59 // pred_region
        %s1318 = smul.u32 64, %s20
        %p1319 = scmp.lt.s32.totalorder %s1318, 127
        %s1320 = scalar_select %p1319, %s1318, 127
        %s1321 = smul.addr %s1320, 8
        %s1322 = scalar_lea.vmem %s8, %s1321
      $region64: #{resblock_forward.7} parent=59 // pred_fallthru
        _
    $region60: #{resblock_forward.7} parent=5 // pred_fallthru
      _
  $region6: #{resblock_forward.7} parent=0 // loop_footer
    %s18 = sadd.s32 1, %s14
  $region7: #{resblock_forward.7} parent=0 // loop_footer_branch
    %13 = sbr.rel target = $region3
  $region8: #{resblock_forward.7} parent=0 // loop_exit
    _

</llo_original>
